<compile_context>
chip_gen: v7x
topology: tpu7x:2x2x1
jax: 0.10.0
libtpu: 0.0.40
codegen_flags: <defaults>
</compile_context>

<pallas_src>
import numpy as np

import jax
import jax.numpy as jnp
from jax.experimental import pallas as pl
from jax.experimental.pallas import tpu as pltpu


# ----------------------------------------------------------------------------
# Fused kernel: conv+relu stack (banded matmuls over batched slab) + linear.
# ----------------------------------------------------------------------------
def _make_fused_kernel(n_conv, bt, h_in):
    """n_conv conv layers, Bt images per step, input spatial height h_in."""
    valid = [h_in - 2 * (l + 1) for l in range(n_conv)]  # valid rows per image

    def kernel(*refs):
        # refs = [x, (w, b) * n_conv, wl, bl, out, act_scratch * n_conv]
        x_ref = refs[0]                                   # (H*Bt, W*Cin) bf16
        conv_w = [refs[1 + 2 * l] for l in range(n_conv)]  # (3, K_l, F_l) bf16
        conv_b = [refs[2 + 2 * l] for l in range(n_conv)]  # (1, F_l)      f32
        wl_ref = refs[1 + 2 * n_conv]                      # (H_last, F_last, n_cls) bf16
        bl_ref = refs[2 + 2 * n_conv]                      # (1, n_cls)    f32
        o_ref = refs[3 + 2 * n_conv]                       # (Bt, n_cls)   f32
        acts = refs[4 + 2 * n_conv:]                       # bf16 VMEM scratch per layer

        def conv_relu(src_ref, n_rows, w_ref, b_ref):
            # out[h*Bt+b, :] = relu(bias + sum_kh src[(h+kh)*Bt+b, :] @ B[kh])
            acc = jnp.dot(src_ref[0:n_rows, :], w_ref[0],
                          preferred_element_type=jnp.float32)
            for kh in (1, 2):
                acc = acc + jnp.dot(src_ref[kh * bt:kh * bt + n_rows, :],
                                    w_ref[kh],
                                    preferred_element_type=jnp.float32)
            return jnp.maximum(acc + b_ref[...], 0.0)       # f32 epilogue

        src = x_ref
        for l in range(n_conv):
            n_rows = valid[l] * bt
            acts[l][...] = conv_relu(src, n_rows, conv_w[l],
                                     conv_b[l]).astype(acts[l].dtype)
            src = acts[l]

        # Flatten + linear: spatial row h of all Bt images is the contiguous,
        # aligned slice [h*Bt, (h+1)*Bt) of the last activation slab.
        feat = acts[n_conv - 1]                              # (valid_last*Bt, F_last)
        n_cls = o_ref.shape[-1]
        logits = jnp.zeros((bt, n_cls), jnp.float32)
        for hh in range(valid[n_conv - 1]):
            logits = logits + jnp.dot(feat[hh * bt:(hh + 1) * bt, :],
                                      wl_ref[hh],
                                      preferred_element_type=jnp.float32)
        o_ref[...] = (logits + bl_ref[...]).astype(o_ref.dtype)

    return kernel


def conv_model_forward(x_nchw, kparams, *, bt=16):
    """x_nchw: (N, Cin, H, W) float32; kparams from prepare_params()."""
    n, cin, h, w = x_nchw.shape
    n_pad = -(-n // bt) * bt
    if n_pad != n:
        x_nchw = jnp.pad(x_nchw, ((0, n_pad - n), (0, 0), (0, 0), (0, 0)))
    g = n_pad // bt

    # NCHW -> h-major stacked slab per block: row ((gi*H + h)*Bt + b), lane (w*Cin+c).
    xh = jnp.transpose(x_nchw, (0, 2, 3, 1)).reshape(g, bt, h, w * cin)
    xh = jnp.transpose(xh, (0, 2, 1, 3)).reshape(g * h * bt, w * cin)
    x_slab = xh.astype(jnp.bfloat16)

    conv_ws = kparams["conv_w"]       # list of (3, W_in*Cin, W_out*Cout) bf16
    conv_bs = kparams["conv_b"]       # list of (1, W_out*Cout)           f32
    wl = kparams["lin_w"]             # (H_last, W_last*C_last, classes)  bf16
    bl = kparams["lin_b"]             # (1, classes)                      f32
    n_conv = len(conv_ws)
    num_classes = wl.shape[-1]
    valid = [h - 2 * (l + 1) for l in range(n_conv)]

    in_specs = [pl.BlockSpec((h * bt, w * cin), lambda i: (i, 0))]
    for wgt, bia in zip(conv_ws, conv_bs):
        in_specs.append(pl.BlockSpec(wgt.shape, lambda i: (0, 0, 0)))
        in_specs.append(pl.BlockSpec(bia.shape, lambda i: (0, 0)))
    in_specs.append(pl.BlockSpec(wl.shape, lambda i: (0, 0, 0)))
    in_specs.append(pl.BlockSpec(bl.shape, lambda i: (0, 0)))

    scratch = [pltpu.VMEM((v * bt, wgt.shape[-1]), jnp.bfloat16)
               for v, wgt in zip(valid, conv_ws)]

    out = pl.pallas_call(
        _make_fused_kernel(n_conv, bt, h),
        out_shape=jax.ShapeDtypeStruct((n_pad, num_classes), jnp.float32),
        grid=(g,),
        in_specs=in_specs,
        out_specs=pl.BlockSpec((bt, num_classes), lambda i: (i, 0)),
        scratch_shapes=scratch,
        compiler_params=pltpu.CompilerParams(
            dimension_semantics=("parallel",)),
    )(x_slab, *[a for pair in zip(conv_ws, conv_bs) for a in pair], wl, bl)
    return out[:n]


# ----------------------------------------------------------------------------
# Parameter setup (torch layout) + offline repacking into kernel layout.
# ----------------------------------------------------------------------------
def init_params(key, input_size, hidden_sizes, num_classes):
    """Parameters in PyTorch layout, mirroring ConvolutionalModel.__init__."""
    in_ch, h, w = input_size
    n_conv = 1 + len(hidden_sizes)
    keys = iter(jax.random.split(key, 2 * n_conv + 2))

    def conv_layer(cin, cout):
        fan_in = float(cin * 9)
        wgt = jax.random.normal(next(keys), (cout, cin, 3, 3),
                                jnp.float32) / jnp.sqrt(fan_in)
        bia = 0.01 * jax.random.normal(next(keys), (cout,), jnp.float32)
        return {"w": wgt, "b": bia}

    convs = [conv_layer(in_ch, hidden_sizes[0])]
    for i in range(len(hidden_sizes)):
        # mirrors the PyTorch __init__ exactly
        convs.append(conv_layer(hidden_sizes[max(0, i - 1)], hidden_sizes[i]))

    h_out, w_out = h - 2 * n_conv, w - 2 * n_conv
    feat = hidden_sizes[-1] * h_out * w_out
    lin_w = jax.random.normal(next(keys), (num_classes, feat),
                              jnp.float32) / jnp.sqrt(float(feat))
    lin_b = 0.01 * jax.random.normal(next(keys), (num_classes,), jnp.float32)
    return {"convs": convs, "lin_w": lin_w, "lin_b": lin_b}


def _band_conv_weight(wt, w_in):
    """(Cout, Cin, 3, 3) torch conv weight -> (3, W_in*Cin, W_out*Cout) banded
    matrices: kw taps + channel contraction folded into K so a 3x3 valid conv
    becomes 3 row-slab matmuls (one per kh)."""
    wt = np.asarray(wt, np.float32)
    cout, cin, _, _ = wt.shape
    w_out = w_in - 2
    band = np.zeros((3, w_in * cin, w_out * cout), np.float32)
    for kh in range(3):
        for kw in range(3):
            tap = wt[:, :, kh, kw].T                       # (Cin, Cout)
            for wo in range(w_out):
                wi = wo + kw
                band[kh, wi * cin:(wi + 1) * cin,
                     wo * cout:(wo + 1) * cout] = tap
    return jnp.asarray(band)


def prepare_params(params, input_size):
    """One-time offline repack of torch-layout params into kernel layout."""
    _, h, w = input_size
    conv_w, conv_b = [], []
    cur_h, cur_w = h, w
    for layer in params["convs"]:
        conv_w.append(_band_conv_weight(layer["w"], cur_w).astype(jnp.bfloat16))
        conv_b.append(jnp.tile(layer["b"], cur_w - 2)[None, :])  # (1, Wout*Cout) f32
        cur_h, cur_w = cur_h - 2, cur_w - 2
    c_last = params["convs"][-1]["w"].shape[0]
    num_classes = params["lin_w"].shape[0]
    # torch nn.Flatten order is (C, H, W); kernel rows are flattened as (W, C),
    # so pre-permute the linear weight into per-row blocks (H, W*C, classes).
    wl = params["lin_w"].reshape(num_classes, c_last, cur_h, cur_w)
    wl = jnp.transpose(wl, (2, 3, 1, 0)).reshape(cur_h, cur_w * c_last,
                                                 num_classes)
    return {"conv_w": conv_w, "conv_b": conv_b,
            "lin_w": wl.astype(jnp.bfloat16),
            "lin_b": params["lin_b"][None, :]}


# ----------------------------------------------------------------------------
# Pure-JAX references (same math as the PyTorch module) for validation.
#   bf16_ops=True emulates the kernel's bf16 MXU operands (f32 accumulate).
# ----------------------------------------------------------------------------
def reference_forward(x_nchw, params, *, bf16_ops=False):
    if bf16_ops:
        cast = lambda a: a.astype(jnp.bfloat16).astype(jnp.float32)
    else:
        cast = lambda a: a
    x = cast(jnp.transpose(x_nchw, (0, 2, 3, 1)).astype(jnp.float32))  # NHWC
    for layer in params["convs"]:
        wt = cast(jnp.transpose(layer["w"], (2, 3, 1, 0)))   # (kh, kw, cin, cout)
        ho, wo = x.shape[1] - 2, x.shape[2] - 2
        acc = jnp.zeros((x.shape[0], ho, wo, wt.shape[-1]), jnp.float32)
        for kh in range(3):
            for kw in range(3):
                acc = acc + jnp.einsum(
                    "nhwc,co->nhwo", x[:, kh:kh + ho, kw:kw + wo, :],
                    wt[kh, kw], precision=jax.lax.Precision.HIGHEST)
        x = cast(jax.nn.relu(acc + layer["b"]))
    x = jnp.transpose(x, (0, 3, 1, 2)).reshape(x.shape[0], -1)  # torch Flatten
    return jnp.dot(x, cast(params["lin_w"]).T,
                   precision=jax.lax.Precision.HIGHEST) + params["lin_b"]


if __name__ == "__main__":
    input_size = (4, 16, 16)      # (C, H, W)
    hidden_sizes = (8, 8)
    num_classes = 10
    batch = 32                    # 2 grid steps of Bt=16 images each

    key = jax.random.PRNGKey(0)
    k_x, k_p = jax.random.split(key)
    x = jax.random.normal(k_x, (batch, *input_size), dtype=jnp.float32)
    params = init_params(k_p, input_size, hidden_sizes, num_classes)
    kparams = prepare_params(params, input_size)

    out = conv_model_forward(x, kparams, bt=16)
    jax.block_until_ready(out)

    assert out.shape == (batch, num_classes), out.shape
    assert out.dtype == jnp.float32

    # Tight check vs a reference that emulates the kernel's bf16 operands
    # (catches any layout/indexing bug), then a sanity check vs full f32.
    ref_bf16 = reference_forward(x, params, bf16_ops=True)
    ref_f32 = reference_forward(x, params, bf16_ops=False)
    assert bool(jnp.allclose(out, ref_bf16, atol=5e-3, rtol=5e-3)), (
        float(jnp.max(jnp.abs(out - ref_bf16))))
    assert bool(jnp.allclose(out, ref_f32, atol=5e-2, rtol=5e-2)), (
        float(jnp.max(jnp.abs(out - ref_f32))))
    print("KERNEL_OK")
</pallas_src>

<mosaic_0001>
module attributes {stable_mosaic.version = 11 : i64} {
  func.func @kernel(%arg0: i32, %arg1: memref<256x64xbf16, #tpu.memory_space<vmem>>, %arg2: memref<3x64x112xbf16, #tpu.memory_space<vmem>>, %arg3: memref<1x112xf32, #tpu.memory_space<vmem>>, %arg4: memref<3x112x96xbf16, #tpu.memory_space<vmem>>, %arg5: memref<1x96xf32, #tpu.memory_space<vmem>>, %arg6: memref<3x96x80xbf16, #tpu.memory_space<vmem>>, %arg7: memref<1x80xf32, #tpu.memory_space<vmem>>, %arg8: memref<10x80x10xbf16, #tpu.memory_space<vmem>>, %arg9: memref<1x10xf32, #tpu.memory_space<vmem>>, %arg10: memref<16x10xf32, #tpu.memory_space<vmem>>, %arg11: memref<224x112xbf16, #tpu.memory_space<vmem>>, %arg12: memref<192x96xbf16, #tpu.memory_space<vmem>>, %arg13: memref<160x80xbf16, #tpu.memory_space<vmem>>) attributes {dimension_semantics = [#tpu.dimension_semantics<parallel>], iteration_bounds = array<i64: 2>, scalar_prefetch = 0 : i64, scratch_operands = 3 : i64, tpu.core_type = #tpu.core_type<tc>, window_params = [{transform_indices = @transform_0, window_bounds = array<i64: 256, 64>}, {pipeline_mode = #tpu.pipeline_mode<synchronous>, transform_indices = @transform_1, window_bounds = array<i64: 3, 64, 112>}, {pipeline_mode = #tpu.pipeline_mode<synchronous>, transform_indices = @transform_2, window_bounds = array<i64: 1, 112>}, {pipeline_mode = #tpu.pipeline_mode<synchronous>, transform_indices = @transform_3, window_bounds = array<i64: 3, 112, 96>}, {pipeline_mode = #tpu.pipeline_mode<synchronous>, transform_indices = @transform_4, window_bounds = array<i64: 1, 96>}, {pipeline_mode = #tpu.pipeline_mode<synchronous>, transform_indices = @transform_5, window_bounds = array<i64: 3, 96, 80>}, {pipeline_mode = #tpu.pipeline_mode<synchronous>, transform_indices = @transform_6, window_bounds = array<i64: 1, 80>}, {pipeline_mode = #tpu.pipeline_mode<synchronous>, transform_indices = @transform_7, window_bounds = array<i64: 10, 80, 10>}, {pipeline_mode = #tpu.pipeline_mode<synchronous>, transform_indices = @transform_8, window_bounds = array<i64: 1, 10>}, {transform_indices = @transform_9, window_bounds = array<i64: 16, 10>}]} {
    %c0 = arith.constant 0 : index
    %c0_0 = arith.constant 0 : index
    %0 = vector.load %arg1[%c0, %c0_0] : memref<256x64xbf16, #tpu.memory_space<vmem>>, vector<224x64xbf16>
    %c0_1 = arith.constant 0 : index
    %c0_2 = arith.constant 0 : index
    %c0_3 = arith.constant 0 : index
    %1 = vector.load %arg2[%c0_1, %c0_2, %c0_3] : memref<3x64x112xbf16, #tpu.memory_space<vmem>>, vector<1x64x112xbf16>
    %2 = vector.shape_cast %1 : vector<1x64x112xbf16> to vector<64x112xbf16>
    %cst = arith.constant dense<0.000000e+00> : vector<224x112xf32>
    %3 = tpu.matmul %0, %2, %cst {dimension_numbers = #tpu.dot_dimension_numbers<[1], [0], [0], [1], [0, 0, 1, 1], [], []>} : vector<224x64xbf16>, vector<64x112xbf16>, vector<224x112xf32> -> vector<224x112xf32>
    %c16 = arith.constant 16 : index
    %c0_4 = arith.constant 0 : index
    %4 = vector.load %arg1[%c16, %c0_4] : memref<256x64xbf16, #tpu.memory_space<vmem>>, vector<224x64xbf16>
    %c1 = arith.constant 1 : index
    %c0_5 = arith.constant 0 : index
    %c0_6 = arith.constant 0 : index
    %5 = vector.load %arg2[%c1, %c0_5, %c0_6] : memref<3x64x112xbf16, #tpu.memory_space<vmem>>, vector<1x64x112xbf16>
    %6 = vector.shape_cast %5 : vector<1x64x112xbf16> to vector<64x112xbf16>
    %cst_7 = arith.constant dense<0.000000e+00> : vector<224x112xf32>
    %7 = tpu.matmul %4, %6, %cst_7 {dimension_numbers = #tpu.dot_dimension_numbers<[1], [0], [0], [1], [0, 0, 1, 1], [], []>} : vector<224x64xbf16>, vector<64x112xbf16>, vector<224x112xf32> -> vector<224x112xf32>
    %8 = arith.addf %3, %7 : vector<224x112xf32>
    %c32 = arith.constant 32 : index
    %c0_8 = arith.constant 0 : index
    %9 = vector.load %arg1[%c32, %c0_8] : memref<256x64xbf16, #tpu.memory_space<vmem>>, vector<224x64xbf16>
    %c2 = arith.constant 2 : index
    %c0_9 = arith.constant 0 : index
    %c0_10 = arith.constant 0 : index
    %10 = vector.load %arg2[%c2, %c0_9, %c0_10] : memref<3x64x112xbf16, #tpu.memory_space<vmem>>, vector<1x64x112xbf16>
    %11 = vector.shape_cast %10 : vector<1x64x112xbf16> to vector<64x112xbf16>
    %cst_11 = arith.constant dense<0.000000e+00> : vector<224x112xf32>
    %12 = tpu.matmul %9, %11, %cst_11 {dimension_numbers = #tpu.dot_dimension_numbers<[1], [0], [0], [1], [0, 0, 1, 1], [], []>} : vector<224x64xbf16>, vector<64x112xbf16>, vector<224x112xf32> -> vector<224x112xf32>
    %13 = arith.addf %8, %12 : vector<224x112xf32>
    %c0_12 = arith.constant 0 : index
    %c0_13 = arith.constant 0 : index
    %14 = vector.load %arg3[%c0_12, %c0_13] : memref<1x112xf32, #tpu.memory_space<vmem>>, vector<1x112xf32>
    %15 = vector.broadcast %14 : vector<1x112xf32> to vector<224x112xf32>
    %16 = arith.addf %13, %15 : vector<224x112xf32>
    %cst_14 = arith.constant 0.000000e+00 : f32
    %17 = vector.broadcast %cst_14 : f32 to vector<224x112xf32>
    %18 = arith.maximumf %16, %17 : vector<224x112xf32>
    %19 = arith.truncf %18 : vector<224x112xf32> to vector<224x112xbf16>
    %c0_15 = arith.constant 0 : index
    %c0_16 = arith.constant 0 : index
    %20 = vector.load %arg11[%c0_15, %c0_16] : memref<224x112xbf16, #tpu.memory_space<vmem>>, vector<224x112xbf16>
    tpu.vector_store %arg11[%c0_15, %c0_16], %19 {strides = array<i32>} : memref<224x112xbf16, #tpu.memory_space<vmem>>, vector<224x112xbf16>,
    %c0_17 = arith.constant 0 : index
    %c0_18 = arith.constant 0 : index
    %21 = vector.load %arg11[%c0_17, %c0_18] : memref<224x112xbf16, #tpu.memory_space<vmem>>, vector<192x112xbf16>
    %c0_19 = arith.constant 0 : index
    %c0_20 = arith.constant 0 : index
    %c0_21 = arith.constant 0 : index
    %22 = vector.load %arg4[%c0_19, %c0_20, %c0_21] : memref<3x112x96xbf16, #tpu.memory_space<vmem>>, vector<1x112x96xbf16>
    %23 = vector.shape_cast %22 : vector<1x112x96xbf16> to vector<112x96xbf16>
    %cst_22 = arith.constant dense<0.000000e+00> : vector<192x96xf32>
    %24 = tpu.matmul %21, %23, %cst_22 {dimension_numbers = #tpu.dot_dimension_numbers<[1], [0], [0], [1], [0, 0, 1, 1], [], []>} : vector<192x112xbf16>, vector<112x96xbf16>, vector<192x96xf32> -> vector<192x96xf32>
    %c16_23 = arith.constant 16 : index
    %c0_24 = arith.constant 0 : index
    %25 = vector.load %arg11[%c16_23, %c0_24] : memref<224x112xbf16, #tpu.memory_space<vmem>>, vector<192x112xbf16>
    %c1_25 = arith.constant 1 : index
    %c0_26 = arith.constant 0 : index
    %c0_27 = arith.constant 0 : index
    %26 = vector.load %arg4[%c1_25, %c0_26, %c0_27] : memref<3x112x96xbf16, #tpu.memory_space<vmem>>, vector<1x112x96xbf16>
    %27 = vector.shape_cast %26 : vector<1x112x96xbf16> to vector<112x96xbf16>
    %cst_28 = arith.constant dense<0.000000e+00> : vector<192x96xf32>
    %28 = tpu.matmul %25, %27, %cst_28 {dimension_numbers = #tpu.dot_dimension_numbers<[1], [0], [0], [1], [0, 0, 1, 1], [], []>} : vector<192x112xbf16>, vector<112x96xbf16>, vector<192x96xf32> -> vector<192x96xf32>
    %29 = arith.addf %24, %28 : vector<192x96xf32>
    %c32_29 = arith.constant 32 : index
    %c0_30 = arith.constant 0 : index
    %30 = vector.load %arg11[%c32_29, %c0_30] : memref<224x112xbf16, #tpu.memory_space<vmem>>, vector<192x112xbf16>
    %c2_31 = arith.constant 2 : index
    %c0_32 = arith.constant 0 : index
    %c0_33 = arith.constant 0 : index
    %31 = vector.load %arg4[%c2_31, %c0_32, %c0_33] : memref<3x112x96xbf16, #tpu.memory_space<vmem>>, vector<1x112x96xbf16>
    %32 = vector.shape_cast %31 : vector<1x112x96xbf16> to vector<112x96xbf16>
    %cst_34 = arith.constant dense<0.000000e+00> : vector<192x96xf32>
    %33 = tpu.matmul %30, %32, %cst_34 {dimension_numbers = #tpu.dot_dimension_numbers<[1], [0], [0], [1], [0, 0, 1, 1], [], []>} : vector<192x112xbf16>, vector<112x96xbf16>, vector<192x96xf32> -> vector<192x96xf32>
    %34 = arith.addf %29, %33 : vector<192x96xf32>
    %c0_35 = arith.constant 0 : index
    %c0_36 = arith.constant 0 : index
    %35 = vector.load %arg5[%c0_35, %c0_36] : memref<1x96xf32, #tpu.memory_space<vmem>>, vector<1x96xf32>
    %36 = vector.broadcast %35 : vector<1x96xf32> to vector<192x96xf32>
    %37 = arith.addf %34, %36 : vector<192x96xf32>
    %cst_37 = arith.constant 0.000000e+00 : f32
    %38 = vector.broadcast %cst_37 : f32 to vector<192x96xf32>
    %39 = arith.maximumf %37, %38 : vector<192x96xf32>
    %40 = arith.truncf %39 : vector<192x96xf32> to vector<192x96xbf16>
    %c0_38 = arith.constant 0 : index
    %c0_39 = arith.constant 0 : index
    %41 = vector.load %arg12[%c0_38, %c0_39] : memref<192x96xbf16, #tpu.memory_space<vmem>>, vector<192x96xbf16>
    tpu.vector_store %arg12[%c0_38, %c0_39], %40 {strides = array<i32>} : memref<192x96xbf16, #tpu.memory_space<vmem>>, vector<192x96xbf16>,
    %c0_40 = arith.constant 0 : index
    %c0_41 = arith.constant 0 : index
    %42 = vector.load %arg12[%c0_40, %c0_41] : memref<192x96xbf16, #tpu.memory_space<vmem>>, vector<160x96xbf16>
    %c0_42 = arith.constant 0 : index
    %c0_43 = arith.constant 0 : index
    %c0_44 = arith.constant 0 : index
    %43 = vector.load %arg6[%c0_42, %c0_43, %c0_44] : memref<3x96x80xbf16, #tpu.memory_space<vmem>>, vector<1x96x80xbf16>
    %44 = vector.shape_cast %43 : vector<1x96x80xbf16> to vector<96x80xbf16>
    %cst_45 = arith.constant dense<0.000000e+00> : vector<160x80xf32>
    %45 = tpu.matmul %42, %44, %cst_45 {dimension_numbers = #tpu.dot_dimension_numbers<[1], [0], [0], [1], [0, 0, 1, 1], [], []>} : vector<160x96xbf16>, vector<96x80xbf16>, vector<160x80xf32> -> vector<160x80xf32>
    %c16_46 = arith.constant 16 : index
    %c0_47 = arith.constant 0 : index
    %46 = vector.load %arg12[%c16_46, %c0_47] : memref<192x96xbf16, #tpu.memory_space<vmem>>, vector<160x96xbf16>
    %c1_48 = arith.constant 1 : index
    %c0_49 = arith.constant 0 : index
    %c0_50 = arith.constant 0 : index
    %47 = vector.load %arg6[%c1_48, %c0_49, %c0_50] : memref<3x96x80xbf16, #tpu.memory_space<vmem>>, vector<1x96x80xbf16>
    %48 = vector.shape_cast %47 : vector<1x96x80xbf16> to vector<96x80xbf16>
    %cst_51 = arith.constant dense<0.000000e+00> : vector<160x80xf32>
    %49 = tpu.matmul %46, %48, %cst_51 {dimension_numbers = #tpu.dot_dimension_numbers<[1], [0], [0], [1], [0, 0, 1, 1], [], []>} : vector<160x96xbf16>, vector<96x80xbf16>, vector<160x80xf32> -> vector<160x80xf32>
    %50 = arith.addf %45, %49 : vector<160x80xf32>
    %c32_52 = arith.constant 32 : index
    %c0_53 = arith.constant 0 : index
    %51 = vector.load %arg12[%c32_52, %c0_53] : memref<192x96xbf16, #tpu.memory_space<vmem>>, vector<160x96xbf16>
    %c2_54 = arith.constant 2 : index
    %c0_55 = arith.constant 0 : index
    %c0_56 = arith.constant 0 : index
    %52 = vector.load %arg6[%c2_54, %c0_55, %c0_56] : memref<3x96x80xbf16, #tpu.memory_space<vmem>>, vector<1x96x80xbf16>
    %53 = vector.shape_cast %52 : vector<1x96x80xbf16> to vector<96x80xbf16>
    %cst_57 = arith.constant dense<0.000000e+00> : vector<160x80xf32>
    %54 = tpu.matmul %51, %53, %cst_57 {dimension_numbers = #tpu.dot_dimension_numbers<[1], [0], [0], [1], [0, 0, 1, 1], [], []>} : vector<160x96xbf16>, vector<96x80xbf16>, vector<160x80xf32> -> vector<160x80xf32>
    %55 = arith.addf %50, %54 : vector<160x80xf32>
    %c0_58 = arith.constant 0 : index
    %c0_59 = arith.constant 0 : index
    %56 = vector.load %arg7[%c0_58, %c0_59] : memref<1x80xf32, #tpu.memory_space<vmem>>, vector<1x80xf32>
    %57 = vector.broadcast %56 : vector<1x80xf32> to vector<160x80xf32>
    %58 = arith.addf %55, %57 : vector<160x80xf32>
    %cst_60 = arith.constant 0.000000e+00 : f32
    %59 = vector.broadcast %cst_60 : f32 to vector<160x80xf32>
    %60 = arith.maximumf %58, %59 : vector<160x80xf32>
    %61 = arith.truncf %60 : vector<160x80xf32> to vector<160x80xbf16>
    %c0_61 = arith.constant 0 : index
    %c0_62 = arith.constant 0 : index
    %62 = vector.load %arg13[%c0_61, %c0_62] : memref<160x80xbf16, #tpu.memory_space<vmem>>, vector<160x80xbf16>
    tpu.vector_store %arg13[%c0_61, %c0_62], %61 {strides = array<i32>} : memref<160x80xbf16, #tpu.memory_space<vmem>>, vector<160x80xbf16>,
    %cst_63 = arith.constant 0.000000e+00 : f32
    %63 = vector.broadcast %cst_63 : f32 to vector<16x10xf32>
    %c0_64 = arith.constant 0 : index
    %c0_65 = arith.constant 0 : index
    %64 = vector.load %arg13[%c0_64, %c0_65] : memref<160x80xbf16, #tpu.memory_space<vmem>>, vector<16x80xbf16>
    %c0_66 = arith.constant 0 : index
    %c0_67 = arith.constant 0 : index
    %c0_68 = arith.constant 0 : index
    %65 = vector.load %arg8[%c0_66, %c0_67, %c0_68] : memref<10x80x10xbf16, #tpu.memory_space<vmem>>, vector<1x80x10xbf16>
    %66 = vector.shape_cast %65 : vector<1x80x10xbf16> to vector<80x10xbf16>
    %cst_69 = arith.constant dense<0.000000e+00> : vector<16x10xf32>
    %67 = tpu.matmul %64, %66, %cst_69 {dimension_numbers = #tpu.dot_dimension_numbers<[1], [0], [0], [1], [0, 0, 1, 1], [], []>} : vector<16x80xbf16>, vector<80x10xbf16>, vector<16x10xf32> -> vector<16x10xf32>
    %68 = arith.addf %63, %67 : vector<16x10xf32>
    %c16_70 = arith.constant 16 : index
    %c0_71 = arith.constant 0 : index
    %69 = vector.load %arg13[%c16_70, %c0_71] : memref<160x80xbf16, #tpu.memory_space<vmem>>, vector<16x80xbf16>
    %c1_72 = arith.constant 1 : index
    %c0_73 = arith.constant 0 : index
    %c0_74 = arith.constant 0 : index
    %70 = vector.load %arg8[%c1_72, %c0_73, %c0_74] : memref<10x80x10xbf16, #tpu.memory_space<vmem>>, vector<1x80x10xbf16>
    %71 = vector.shape_cast %70 : vector<1x80x10xbf16> to vector<80x10xbf16>
    %cst_75 = arith.constant dense<0.000000e+00> : vector<16x10xf32>
    %72 = tpu.matmul %69, %71, %cst_75 {dimension_numbers = #tpu.dot_dimension_numbers<[1], [0], [0], [1], [0, 0, 1, 1], [], []>} : vector<16x80xbf16>, vector<80x10xbf16>, vector<16x10xf32> -> vector<16x10xf32>
    %73 = arith.addf %68, %72 : vector<16x10xf32>
    %c32_76 = arith.constant 32 : index
    %c0_77 = arith.constant 0 : index
    %74 = vector.load %arg13[%c32_76, %c0_77] : memref<160x80xbf16, #tpu.memory_space<vmem>>, vector<16x80xbf16>
    %c2_78 = arith.constant 2 : index
    %c0_79 = arith.constant 0 : index
    %c0_80 = arith.constant 0 : index
    %75 = vector.load %arg8[%c2_78, %c0_79, %c0_80] : memref<10x80x10xbf16, #tpu.memory_space<vmem>>, vector<1x80x10xbf16>
    %76 = vector.shape_cast %75 : vector<1x80x10xbf16> to vector<80x10xbf16>
    %cst_81 = arith.constant dense<0.000000e+00> : vector<16x10xf32>
    %77 = tpu.matmul %74, %76, %cst_81 {dimension_numbers = #tpu.dot_dimension_numbers<[1], [0], [0], [1], [0, 0, 1, 1], [], []>} : vector<16x80xbf16>, vector<80x10xbf16>, vector<16x10xf32> -> vector<16x10xf32>
    %78 = arith.addf %73, %77 : vector<16x10xf32>
    %c48 = arith.constant 48 : index
    %c0_82 = arith.constant 0 : index
    %79 = vector.load %arg13[%c48, %c0_82] : memref<160x80xbf16, #tpu.memory_space<vmem>>, vector<16x80xbf16>
    %c3 = arith.constant 3 : index
    %c0_83 = arith.constant 0 : index
    %c0_84 = arith.constant 0 : index
    %80 = vector.load %arg8[%c3, %c0_83, %c0_84] : memref<10x80x10xbf16, #tpu.memory_space<vmem>>, vector<1x80x10xbf16>
    %81 = vector.shape_cast %80 : vector<1x80x10xbf16> to vector<80x10xbf16>
    %cst_85 = arith.constant dense<0.000000e+00> : vector<16x10xf32>
    %82 = tpu.matmul %79, %81, %cst_85 {dimension_numbers = #tpu.dot_dimension_numbers<[1], [0], [0], [1], [0, 0, 1, 1], [], []>} : vector<16x80xbf16>, vector<80x10xbf16>, vector<16x10xf32> -> vector<16x10xf32>
    %83 = arith.addf %78, %82 : vector<16x10xf32>
    %c64 = arith.constant 64 : index
    %c0_86 = arith.constant 0 : index
    %84 = vector.load %arg13[%c64, %c0_86] : memref<160x80xbf16, #tpu.memory_space<vmem>>, vector<16x80xbf16>
    %c4 = arith.constant 4 : index
    %c0_87 = arith.constant 0 : index
    %c0_88 = arith.constant 0 : index
    %85 = vector.load %arg8[%c4, %c0_87, %c0_88] : memref<10x80x10xbf16, #tpu.memory_space<vmem>>, vector<1x80x10xbf16>
    %86 = vector.shape_cast %85 : vector<1x80x10xbf16> to vector<80x10xbf16>
    %cst_89 = arith.constant dense<0.000000e+00> : vector<16x10xf32>
    %87 = tpu.matmul %84, %86, %cst_89 {dimension_numbers = #tpu.dot_dimension_numbers<[1], [0], [0], [1], [0, 0, 1, 1], [], []>} : vector<16x80xbf16>, vector<80x10xbf16>, vector<16x10xf32> -> vector<16x10xf32>
    %88 = arith.addf %83, %87 : vector<16x10xf32>
    %c80 = arith.constant 80 : index
    %c0_90 = arith.constant 0 : index
    %89 = vector.load %arg13[%c80, %c0_90] : memref<160x80xbf16, #tpu.memory_space<vmem>>, vector<16x80xbf16>
    %c5 = arith.constant 5 : index
    %c0_91 = arith.constant 0 : index
    %c0_92 = arith.constant 0 : index
    %90 = vector.load %arg8[%c5, %c0_91, %c0_92] : memref<10x80x10xbf16, #tpu.memory_space<vmem>>, vector<1x80x10xbf16>
    %91 = vector.shape_cast %90 : vector<1x80x10xbf16> to vector<80x10xbf16>
    %cst_93 = arith.constant dense<0.000000e+00> : vector<16x10xf32>
    %92 = tpu.matmul %89, %91, %cst_93 {dimension_numbers = #tpu.dot_dimension_numbers<[1], [0], [0], [1], [0, 0, 1, 1], [], []>} : vector<16x80xbf16>, vector<80x10xbf16>, vector<16x10xf32> -> vector<16x10xf32>
    %93 = arith.addf %88, %92 : vector<16x10xf32>
    %c96 = arith.constant 96 : index
    %c0_94 = arith.constant 0 : index
    %94 = vector.load %arg13[%c96, %c0_94] : memref<160x80xbf16, #tpu.memory_space<vmem>>, vector<16x80xbf16>
    %c6 = arith.constant 6 : index
    %c0_95 = arith.constant 0 : index
    %c0_96 = arith.constant 0 : index
    %95 = vector.load %arg8[%c6, %c0_95, %c0_96] : memref<10x80x10xbf16, #tpu.memory_space<vmem>>, vector<1x80x10xbf16>
    %96 = vector.shape_cast %95 : vector<1x80x10xbf16> to vector<80x10xbf16>
    %cst_97 = arith.constant dense<0.000000e+00> : vector<16x10xf32>
    %97 = tpu.matmul %94, %96, %cst_97 {dimension_numbers = #tpu.dot_dimension_numbers<[1], [0], [0], [1], [0, 0, 1, 1], [], []>} : vector<16x80xbf16>, vector<80x10xbf16>, vector<16x10xf32> -> vector<16x10xf32>
    %98 = arith.addf %93, %97 : vector<16x10xf32>
    %c112 = arith.constant 112 : index
    %c0_98 = arith.constant 0 : index
    %99 = vector.load %arg13[%c112, %c0_98] : memref<160x80xbf16, #tpu.memory_space<vmem>>, vector<16x80xbf16>
    %c7 = arith.constant 7 : index
    %c0_99 = arith.constant 0 : index
    %c0_100 = arith.constant 0 : index
    %100 = vector.load %arg8[%c7, %c0_99, %c0_100] : memref<10x80x10xbf16, #tpu.memory_space<vmem>>, vector<1x80x10xbf16>
    %101 = vector.shape_cast %100 : vector<1x80x10xbf16> to vector<80x10xbf16>
    %cst_101 = arith.constant dense<0.000000e+00> : vector<16x10xf32>
    %102 = tpu.matmul %99, %101, %cst_101 {dimension_numbers = #tpu.dot_dimension_numbers<[1], [0], [0], [1], [0, 0, 1, 1], [], []>} : vector<16x80xbf16>, vector<80x10xbf16>, vector<16x10xf32> -> vector<16x10xf32>
    %103 = arith.addf %98, %102 : vector<16x10xf32>
    %c128 = arith.constant 128 : index
    %c0_102 = arith.constant 0 : index
    %104 = vector.load %arg13[%c128, %c0_102] : memref<160x80xbf16, #tpu.memory_space<vmem>>, vector<16x80xbf16>
    %c8 = arith.constant 8 : index
    %c0_103 = arith.constant 0 : index
    %c0_104 = arith.constant 0 : index
    %105 = vector.load %arg8[%c8, %c0_103, %c0_104] : memref<10x80x10xbf16, #tpu.memory_space<vmem>>, vector<1x80x10xbf16>
    %106 = vector.shape_cast %105 : vector<1x80x10xbf16> to vector<80x10xbf16>
    %cst_105 = arith.constant dense<0.000000e+00> : vector<16x10xf32>
    %107 = tpu.matmul %104, %106, %cst_105 {dimension_numbers = #tpu.dot_dimension_numbers<[1], [0], [0], [1], [0, 0, 1, 1], [], []>} : vector<16x80xbf16>, vector<80x10xbf16>, vector<16x10xf32> -> vector<16x10xf32>
    %108 = arith.addf %103, %107 : vector<16x10xf32>
    %c144 = arith.constant 144 : index
    %c0_106 = arith.constant 0 : index
    %109 = vector.load %arg13[%c144, %c0_106] : memref<160x80xbf16, #tpu.memory_space<vmem>>, vector<16x80xbf16>
    %c9 = arith.constant 9 : index
    %c0_107 = arith.constant 0 : index
    %c0_108 = arith.constant 0 : index
    %110 = vector.load %arg8[%c9, %c0_107, %c0_108] : memref<10x80x10xbf16, #tpu.memory_space<vmem>>, vector<1x80x10xbf16>
    %111 = vector.shape_cast %110 : vector<1x80x10xbf16> to vector<80x10xbf16>
    %cst_109 = arith.constant dense<0.000000e+00> : vector<16x10xf32>
    %112 = tpu.matmul %109, %111, %cst_109 {dimension_numbers = #tpu.dot_dimension_numbers<[1], [0], [0], [1], [0, 0, 1, 1], [], []>} : vector<16x80xbf16>, vector<80x10xbf16>, vector<16x10xf32> -> vector<16x10xf32>
    %113 = arith.addf %108, %112 : vector<16x10xf32>
    %c0_110 = arith.constant 0 : index
    %c0_111 = arith.constant 0 : index
    %114 = vector.load %arg9[%c0_110, %c0_111] : memref<1x10xf32, #tpu.memory_space<vmem>>, vector<1x10xf32>
    %115 = vector.broadcast %114 : vector<1x10xf32> to vector<16x10xf32>
    %116 = arith.addf %113, %115 : vector<16x10xf32>
    %c0_112 = arith.constant 0 : index
    %c0_113 = arith.constant 0 : index
    %117 = vector.load %arg10[%c0_112, %c0_113] : memref<16x10xf32, #tpu.memory_space<vmem>>, vector<16x10xf32>
    tpu.vector_store %arg10[%c0_112, %c0_113], %116 {strides = array<i32>} : memref<16x10xf32, #tpu.memory_space<vmem>>, vector<16x10xf32>,
    return
  }
  func.func @transform_0(%arg0: i32) -> (i32, i32) {
    %c0_i32 = arith.constant 0 : i32
    %c0_i32_0 = arith.constant 0 : i32
    return %arg0, %c0_i32 : i32, i32
  }
  func.func @transform_1(%arg0: i32) -> (i32, i32, i32) {
    %c0_i32 = arith.constant 0 : i32
    %c0_i32_0 = arith.constant 0 : i32
    %c0_i32_1 = arith.constant 0 : i32
    %c0_i32_2 = arith.constant 0 : i32
    return %c0_i32, %c0_i32_0, %c0_i32_1 : i32, i32, i32
  }
  func.func @transform_2(%arg0: i32) -> (i32, i32) {
    %c0_i32 = arith.constant 0 : i32
    %c0_i32_0 = arith.constant 0 : i32
    %c0_i32_1 = arith.constant 0 : i32
    return %c0_i32, %c0_i32_0 : i32, i32
  }
  func.func @transform_3(%arg0: i32) -> (i32, i32, i32) {
    %c0_i32 = arith.constant 0 : i32
    %c0_i32_0 = arith.constant 0 : i32
    %c0_i32_1 = arith.constant 0 : i32
    %c0_i32_2 = arith.constant 0 : i32
    return %c0_i32, %c0_i32_0, %c0_i32_1 : i32, i32, i32
  }
  func.func @transform_4(%arg0: i32) -> (i32, i32) {
    %c0_i32 = arith.constant 0 : i32
    %c0_i32_0 = arith.constant 0 : i32
    %c0_i32_1 = arith.constant 0 : i32
    return %c0_i32, %c0_i32_0 : i32, i32
  }
  func.func @transform_5(%arg0: i32) -> (i32, i32, i32) {
    %c0_i32 = arith.constant 0 : i32
    %c0_i32_0 = arith.constant 0 : i32
    %c0_i32_1 = arith.constant 0 : i32
    %c0_i32_2 = arith.constant 0 : i32
    return %c0_i32, %c0_i32_0, %c0_i32_1 : i32, i32, i32
  }
  func.func @transform_6(%arg0: i32) -> (i32, i32) {
    %c0_i32 = arith.constant 0 : i32
    %c0_i32_0 = arith.constant 0 : i32
    %c0_i32_1 = arith.constant 0 : i32
    return %c0_i32, %c0_i32_0 : i32, i32
  }
  func.func @transform_7(%arg0: i32) -> (i32, i32, i32) {
    %c0_i32 = arith.constant 0 : i32
    %c0_i32_0 = arith.constant 0 : i32
    %c0_i32_1 = arith.constant 0 : i32
    %c0_i32_2 = arith.constant 0 : i32
    return %c0_i32, %c0_i32_0, %c0_i32_1 : i32, i32, i32
  }
  func.func @transform_8(%arg0: i32) -> (i32, i32) {
    %c0_i32 = arith.constant 0 : i32
    %c0_i32_0 = arith.constant 0 : i32
    %c0_i32_1 = arith.constant 0 : i32
    return %c0_i32, %c0_i32_0 : i32, i32
  }
  func.func @transform_9(%arg0: i32) -> (i32, i32) {
    %c0_i32 = arith.constant 0 : i32
    %c0_i32_0 = arith.constant 0 : i32
    return %arg0, %c0_i32 : i32, i32
  }
}

</mosaic_0001>

<llo_original>
// kernel: tpu_custom_call.1
$region0: #{tpu_custom_call.1}
  #allocation0 [shape = 'u32[]', space=smem, size = 0x4, offset = 0x4, fixed_abs, tag = 'smem constant byte address 0x4 - core index']
  #allocation1 [shape = 'u32[144,128]{1,0:T(1,128)}', space=vmem, size = 0x12000, scoped, tag = 'internal scratch']
  #allocation2 [shape = 'bf16[224,112]{1,0:T(16,128)(2,1)}', space=vmem, size = 0xe000, scoped, tag = 'scratch operand']
  #allocation3 [shape = 'bf16[192,96]{1,0:T(16,128)(2,1)}', space=vmem, size = 0xc000, scoped, tag = 'scratch operand']
  #allocation4 [shape = 'bf16[160,80]{1,0:T(16,128)(2,1)}', space=vmem, size = 0xa000, scoped, tag = 'scratch operand']
  %s0 = inlined_call_operand.vmem [shape: bf16[512,64], index: 0, kind: input, shape index: {}]
  %s1 = inlined_call_operand.vmem [shape: bf16[3,64,112], index: 1, kind: input, shape index: {}]
  %s2 = inlined_call_operand.vmem [shape: f32[1,112], index: 2, kind: input, shape index: {}]
  %s3 = inlined_call_operand.vmem [shape: bf16[3,112,96], index: 3, kind: input, shape index: {}]
  %s4 = inlined_call_operand.vmem [shape: f32[1,96], index: 4, kind: input, shape index: {}]
  %s5 = inlined_call_operand.vmem [shape: bf16[3,96,80], index: 5, kind: input, shape index: {}]
  %s6 = inlined_call_operand.vmem [shape: f32[1,80], index: 6, kind: input, shape index: {}]
  %s7 = inlined_call_operand.vmem [shape: bf16[10,80,10], index: 7, kind: input, shape index: {}]
  %s8 = inlined_call_operand.vmem [shape: f32[1,10], index: 8, kind: input, shape index: {}]
  %s9 = inlined_call_operand.vmem [shape: f32[32,10], index: 9, kind: output, shape index: {}]
  %s10 = sld [smem:[#allocation0]]
  $region69: #{tpu_custom_call.1} parent=0
    _
  %s12 = ssub.s32 1, %s10
  %s13 = scalar_select 0, %s12, %s10
  loop: start=0, step=1, limit=4
  $region2: #{tpu_custom_call.1} parent=0 // loop_pre_header
    _
  $region3: #{tpu_custom_call.1} parent=0 // loop_header
    %s15 = sphi 0, %s19
    %p16 = scmp.ge.s32.totalorder %s15, 4
    %s25 = sphi 0, %s27
    %s28 = sphi 0, %s25
    %s29 = sphi 0, %s28
    %s45 = sphi 0, %s29
    %s49 = sphi 0, %s49
    %s51 = sphi 0, %s49
    %s52 = sphi 0, %s51
    %s66 = sphi 0, %s52
    %s70 = sphi 0, %s70
    %s72 = sphi 0, %s70
    %s73 = sphi 0, %s72
    %s87 = sphi 0, %s73
    %s91 = sphi 0, %s91
    %s93 = sphi 0, %s91
    %s94 = sphi 0, %s93
    %s108 = sphi 0, %s94
    %s112 = sphi 0, %s112
    %s114 = sphi 0, %s112
    %s115 = sphi 0, %s114
    %s129 = sphi 0, %s115
    %s133 = sphi 0, %s133
    %s135 = sphi 0, %s133
    %s136 = sphi 0, %s135
    %s150 = sphi 0, %s136
    %s154 = sphi 0, %s154
    %s156 = sphi 0, %s154
    %s157 = sphi 0, %s156
    %s171 = sphi 0, %s157
    %s175 = sphi 0, %s175
    %s177 = sphi 0, %s175
    %s178 = sphi 0, %s177
    %s192 = sphi 0, %s178
    %s196 = sphi 0, %s196
    %s198 = sphi 0, %s196
    %s199 = sphi 0, %s198
    %s213 = sphi 0, %s199
    %s219 = sphi 0, %s221
    %s222 = sphi 0, %s219
    %s223 = sphi 0, %s222
    %s239 = sphi 0, %s223
  $region4: #{tpu_custom_call.1} parent=0 // loop_header_branch
    %18 = sbr.rel (%p16) target = $region8
  $region5: #{tpu_custom_call.1} parent=0 // loop_body
    %s20 = ssub.s32 %s15, 1
    %s21 = ssub.s32 %s15, 2
    %s22 = sadd.s32 %s15, 1
    %s23 = ssub.s32 %s15, %s22
    %p24 = scmp.eq.s32.totalorder %s23, 0
    %s26 = sadd.s32 %s25, 1
    %s27 = scalar_select %p24, %s25, %s26
    %p30 = pneg %p24
    %p31 = scmp.eq.s32.totalorder %s15, 1
    %p32 = por %p30, %p31
    %p33 = scmp.ne.s32.totalorder %s25, %s28
    %p34 = scmp.eq.s32.totalorder %s15, 0
    %p35 = por %p33, %p34
    %p36 = scmp.ne.s32.totalorder %s25, %s28
    %p37 = scmp.eq.s32.totalorder %s20, 1
    %p38 = por %p36, %p37
    %p39 = scmp.ne.s32.totalorder %s28, %s29
    %p40 = scmp.eq.s32.totalorder %s20, 0
    %p41 = por %p39, %p40
    %p42 = scmp.ne.s32.totalorder %s28, %s29
    %p43 = scmp.eq.s32.totalorder %s21, 1
    %p44 = por %p42, %p43
    %p46 = scmp.ne.s32.totalorder %s29, %s45
    %p47 = scmp.eq.s32.totalorder %s21, 0
    %p48 = por %p46, %p47
    %s50 = sadd.s32 %s49, 1
    %p53 = scmp.eq.s32.totalorder %s15, 1
    %p54 = scmp.ne.s32.totalorder %s49, %s51
    %p55 = scmp.eq.s32.totalorder %s15, 0
    %p56 = por %p54, %p55
    %p57 = scmp.ne.s32.totalorder %s49, %s51
    %p58 = scmp.eq.s32.totalorder %s20, 1
    %p59 = por %p57, %p58
    %p60 = scmp.ne.s32.totalorder %s51, %s52
    %p61 = scmp.eq.s32.totalorder %s20, 0
    %p62 = por %p60, %p61
    %p63 = scmp.ne.s32.totalorder %s51, %s52
    %p64 = scmp.eq.s32.totalorder %s21, 1
    %p65 = por %p63, %p64
    %p67 = scmp.ne.s32.totalorder %s52, %s66
    %p68 = scmp.eq.s32.totalorder %s21, 0
    %p69 = por %p67, %p68
    %s71 = sadd.s32 %s70, 1
    %p74 = scmp.eq.s32.totalorder %s15, 1
    %p75 = scmp.ne.s32.totalorder %s70, %s72
    %p76 = scmp.eq.s32.totalorder %s15, 0
    %p77 = por %p75, %p76
    %p78 = scmp.ne.s32.totalorder %s70, %s72
    %p79 = scmp.eq.s32.totalorder %s20, 1
    %p80 = por %p78, %p79
    %p81 = scmp.ne.s32.totalorder %s72, %s73
    %p82 = scmp.eq.s32.totalorder %s20, 0
    %p83 = por %p81, %p82
    %p84 = scmp.ne.s32.totalorder %s72, %s73
    %p85 = scmp.eq.s32.totalorder %s21, 1
    %p86 = por %p84, %p85
    %p88 = scmp.ne.s32.totalorder %s73, %s87
    %p89 = scmp.eq.s32.totalorder %s21, 0
    %p90 = por %p88, %p89
    %s92 = sadd.s32 %s91, 1
    %p95 = scmp.eq.s32.totalorder %s15, 1
    %p96 = scmp.ne.s32.totalorder %s91, %s93
    %p97 = scmp.eq.s32.totalorder %s15, 0
    %p98 = por %p96, %p97
    %p99 = scmp.ne.s32.totalorder %s91, %s93
    %p100 = scmp.eq.s32.totalorder %s20, 1
    %p101 = por %p99, %p100
    %p102 = scmp.ne.s32.totalorder %s93, %s94
    %p103 = scmp.eq.s32.totalorder %s20, 0
    %p104 = por %p102, %p103
    %p105 = scmp.ne.s32.totalorder %s93, %s94
    %p106 = scmp.eq.s32.totalorder %s21, 1
    %p107 = por %p105, %p106
    %p109 = scmp.ne.s32.totalorder %s94, %s108
    %p110 = scmp.eq.s32.totalorder %s21, 0
    %p111 = por %p109, %p110
    %s113 = sadd.s32 %s112, 1
    %p116 = scmp.eq.s32.totalorder %s15, 1
    %p117 = scmp.ne.s32.totalorder %s112, %s114
    %p118 = scmp.eq.s32.totalorder %s15, 0
    %p119 = por %p117, %p118
    %p120 = scmp.ne.s32.totalorder %s112, %s114
    %p121 = scmp.eq.s32.totalorder %s20, 1
    %p122 = por %p120, %p121
    %p123 = scmp.ne.s32.totalorder %s114, %s115
    %p124 = scmp.eq.s32.totalorder %s20, 0
    %p125 = por %p123, %p124
    %p126 = scmp.ne.s32.totalorder %s114, %s115
    %p127 = scmp.eq.s32.totalorder %s21, 1
    %p128 = por %p126, %p127
    %p130 = scmp.ne.s32.totalorder %s115, %s129
    %p131 = scmp.eq.s32.totalorder %s21, 0
    %p132 = por %p130, %p131
    %s134 = sadd.s32 %s133, 1
    %p137 = scmp.eq.s32.totalorder %s15, 1
    %p138 = scmp.ne.s32.totalorder %s133, %s135
    %p139 = scmp.eq.s32.totalorder %s15, 0
    %p140 = por %p138, %p139
    %p141 = scmp.ne.s32.totalorder %s133, %s135
    %p142 = scmp.eq.s32.totalorder %s20, 1
    %p143 = por %p141, %p142
    %p144 = scmp.ne.s32.totalorder %s135, %s136
    %p145 = scmp.eq.s32.totalorder %s20, 0
    %p146 = por %p144, %p145
    %p147 = scmp.ne.s32.totalorder %s135, %s136
    %p148 = scmp.eq.s32.totalorder %s21, 1
    %p149 = por %p147, %p148
    %p151 = scmp.ne.s32.totalorder %s136, %s150
    %p152 = scmp.eq.s32.totalorder %s21, 0
    %p153 = por %p151, %p152
    %s155 = sadd.s32 %s154, 1
    %p158 = scmp.eq.s32.totalorder %s15, 1
    %p159 = scmp.ne.s32.totalorder %s154, %s156
    %p160 = scmp.eq.s32.totalorder %s15, 0
    %p161 = por %p159, %p160
    %p162 = scmp.ne.s32.totalorder %s154, %s156
    %p163 = scmp.eq.s32.totalorder %s20, 1
    %p164 = por %p162, %p163
    %p165 = scmp.ne.s32.totalorder %s156, %s157
    %p166 = scmp.eq.s32.totalorder %s20, 0
    %p167 = por %p165, %p166
    %p168 = scmp.ne.s32.totalorder %s156, %s157
    %p169 = scmp.eq.s32.totalorder %s21, 1
    %p170 = por %p168, %p169
    %p172 = scmp.ne.s32.totalorder %s157, %s171
    %p173 = scmp.eq.s32.totalorder %s21, 0
    %p174 = por %p172, %p173
    %s176 = sadd.s32 %s175, 1
    %p179 = scmp.eq.s32.totalorder %s15, 1
    %p180 = scmp.ne.s32.totalorder %s175, %s177
    %p181 = scmp.eq.s32.totalorder %s15, 0
    %p182 = por %p180, %p181
    %p183 = scmp.ne.s32.totalorder %s175, %s177
    %p184 = scmp.eq.s32.totalorder %s20, 1
    %p185 = por %p183, %p184
    %p186 = scmp.ne.s32.totalorder %s177, %s178
    %p187 = scmp.eq.s32.totalorder %s20, 0
    %p188 = por %p186, %p187
    %p189 = scmp.ne.s32.totalorder %s177, %s178
    %p190 = scmp.eq.s32.totalorder %s21, 1
    %p191 = por %p189, %p190
    %p193 = scmp.ne.s32.totalorder %s178, %s192
    %p194 = scmp.eq.s32.totalorder %s21, 0
    %p195 = por %p193, %p194
    %s197 = sadd.s32 %s196, 1
    %p200 = scmp.eq.s32.totalorder %s15, 1
    %p201 = scmp.ne.s32.totalorder %s196, %s198
    %p202 = scmp.eq.s32.totalorder %s15, 0
    %p203 = por %p201, %p202
    %p204 = scmp.ne.s32.totalorder %s196, %s198
    %p205 = scmp.eq.s32.totalorder %s20, 1
    %p206 = por %p204, %p205
    %p207 = scmp.ne.s32.totalorder %s198, %s199
    %p208 = scmp.eq.s32.totalorder %s20, 0
    %p209 = por %p207, %p208
    %p210 = scmp.ne.s32.totalorder %s198, %s199
    %p211 = scmp.eq.s32.totalorder %s21, 1
    %p212 = por %p210, %p211
    %p214 = scmp.ne.s32.totalorder %s199, %s213
    %p215 = scmp.eq.s32.totalorder %s21, 0
    %p216 = por %p214, %p215
    %s217 = ssub.s32 %s15, %s22
    %p218 = scmp.eq.s32.totalorder %s217, 0
    %s220 = sadd.s32 %s219, 1
    %s221 = scalar_select %p218, %s219, %s220
    %p224 = pneg %p218
    %p225 = scmp.eq.s32.totalorder %s15, 1
    %p226 = por %p224, %p225
    %p227 = scmp.ne.s32.totalorder %s219, %s222
    %p228 = scmp.eq.s32.totalorder %s15, 0
    %p229 = por %p227, %p228
    %p230 = scmp.ne.s32.totalorder %s219, %s222
    %p231 = scmp.eq.s32.totalorder %s20, 1
    %p232 = por %p230, %p231
    %p233 = scmp.ne.s32.totalorder %s222, %s223
    %p234 = scmp.eq.s32.totalorder %s20, 0
    %p235 = por %p233, %p234
    %p236 = scmp.ne.s32.totalorder %s222, %s223
    %p237 = scmp.eq.s32.totalorder %s21, 1
    %p238 = por %p236, %p237
    %p240 = scmp.ne.s32.totalorder %s223, %s239
    %p241 = scmp.eq.s32.totalorder %s21, 0
    %p242 = por %p240, %p241
    %p243 = scmp.le.s32.totalorder 1, %s15
    %p244 = scmp.lt.s32.totalorder %s15, 3
    %p245 = pnand %p243, %p244
    %p246 = pneg %p245
    // Predicated region
    $region9: #{tpu_custom_call.1} parent=5 // pred_check
      _
    $region10: #{tpu_custom_call.1} parent=5 // pred_check_branch
      %248 = sbr.rel (%p245) target = $region12
    $region11: #{tpu_custom_call.1} parent=5 // pred_region
      %s249 = ssub.s32 %s15, 1
      // Predicated region
      $region13: #{tpu_custom_call.1} parent=11 // pred_check
        %p250 = pneg %p62
      $region14: #{tpu_custom_call.1} parent=11 // pred_check_branch
        %252 = sbr.rel (%p250) target = $region16
      $region15: #{tpu_custom_call.1} parent=11 // pred_region
        _
      $region16: #{tpu_custom_call.1} parent=11 // pred_fallthru
        _
      // Predicated region
      $region17: #{tpu_custom_call.1} parent=11 // pred_check
        %p253 = pneg %p83
      $region18: #{tpu_custom_call.1} parent=11 // pred_check_branch
        %255 = sbr.rel (%p253) target = $region20
      $region19: #{tpu_custom_call.1} parent=11 // pred_region
        _
      $region20: #{tpu_custom_call.1} parent=11 // pred_fallthru
        _
      // Predicated region
      $region21: #{tpu_custom_call.1} parent=11 // pred_check
        %p256 = pneg %p104
      $region22: #{tpu_custom_call.1} parent=11 // pred_check_branch
        %258 = sbr.rel (%p256) target = $region24
      $region23: #{tpu_custom_call.1} parent=11 // pred_region
        _
      $region24: #{tpu_custom_call.1} parent=11 // pred_fallthru
        _
      // Predicated region
      $region25: #{tpu_custom_call.1} parent=11 // pred_check
        %p259 = pneg %p125
      $region26: #{tpu_custom_call.1} parent=11 // pred_check_branch
        %261 = sbr.rel (%p259) target = $region28
      $region27: #{tpu_custom_call.1} parent=11 // pred_region
        _
      $region28: #{tpu_custom_call.1} parent=11 // pred_fallthru
        _
      // Predicated region
      $region29: #{tpu_custom_call.1} parent=11 // pred_check
        %p262 = pneg %p146
      $region30: #{tpu_custom_call.1} parent=11 // pred_check_branch
        %264 = sbr.rel (%p262) target = $region32
      $region31: #{tpu_custom_call.1} parent=11 // pred_region
        _
      $region32: #{tpu_custom_call.1} parent=11 // pred_fallthru
        _
      // Predicated region
      $region33: #{tpu_custom_call.1} parent=11 // pred_check
        %p265 = pneg %p167
      $region34: #{tpu_custom_call.1} parent=11 // pred_check_branch
        %267 = sbr.rel (%p265) target = $region36
      $region35: #{tpu_custom_call.1} parent=11 // pred_region
        _
      $region36: #{tpu_custom_call.1} parent=11 // pred_fallthru
        _
      // Predicated region
      $region37: #{tpu_custom_call.1} parent=11 // pred_check
        %p268 = pneg %p188
      $region38: #{tpu_custom_call.1} parent=11 // pred_check_branch
        %270 = sbr.rel (%p268) target = $region40
      $region39: #{tpu_custom_call.1} parent=11 // pred_region
        _
      $region40: #{tpu_custom_call.1} parent=11 // pred_fallthru
        _
      // Predicated region
      $region41: #{tpu_custom_call.1} parent=11 // pred_check
        %p271 = pneg %p209
      $region42: #{tpu_custom_call.1} parent=11 // pred_check_branch
        %273 = sbr.rel (%p271) target = $region44
      $region43: #{tpu_custom_call.1} parent=11 // pred_region
        _
      $region44: #{tpu_custom_call.1} parent=11 // pred_fallthru
        _
    $region12: #{tpu_custom_call.1} parent=5 // pred_fallthru
      _
    %p274 = scmp.lt.s32.totalorder %s15, 2
    // Predicated region
    $region45: #{tpu_custom_call.1} parent=5 // pred_check
      %p275 = pneg %p274
    $region46: #{tpu_custom_call.1} parent=5 // pred_check_branch
      %277 = sbr.rel (%p275) target = $region48
    $region47: #{tpu_custom_call.1} parent=5 // pred_region
      // Predicated region
      $region49: #{tpu_custom_call.1} parent=47 // pred_check
        %p278 = pneg %p35
      $region50: #{tpu_custom_call.1} parent=47 // pred_check_branch
        %280 = sbr.rel (%p278) target = $region52
      $region51: #{tpu_custom_call.1} parent=47 // pred_region
        %s281 = smul.u32 32, %s15
        %p282 = scmp.lt.s32.totalorder %s281, 63
        %s283 = scalar_select %p282, %s281, 63
        %s284 = smul.addr %s283, 4
        %s285 = scalar_lea.vmem %s0, %s284
        %s286 = smul.u32 32, %s15
      $region52: #{tpu_custom_call.1} parent=47 // pred_fallthru
        _
    $region48: #{tpu_custom_call.1} parent=5 // pred_fallthru
      _
    %p287 = scmp.le.s32.totalorder 1, %s15
    %p288 = scmp.lt.s32.totalorder %s15, 3
    %p289 = pnand %p287, %p288
    %p290 = pneg %p289
    // Predicated region
    $region53: #{tpu_custom_call.1} parent=5 // pred_check
      _
    $region54: #{tpu_custom_call.1} parent=5 // pred_check_branch
      %292 = sbr.rel (%p289) target = $region56
    $region55: #{tpu_custom_call.1} parent=5 // pred_region
      %s293 = ssub.s32 %s15, 1
      %s294 = smul.u32 32, %s20
      %p295 = scmp.lt.s32.totalorder %s294, 63
      %s296 = scalar_select %p295, %s294, 63
      %s297 = smul.addr %s296, 4
      %s298 = scalar_lea.vmem %s0, %s297
      %p299 = pneg %p41
      %p300 = pneg %p38
      %p301 = pneg %p62
      %p302 = pneg %p59
      %p303 = pneg %p83
      %p304 = pneg %p80
      %p305 = pneg %p104
      %p306 = pneg %p101
      %p307 = pneg %p125
      %p308 = pneg %p122
      %p309 = pneg %p146
      %p310 = pneg %p143
      %p311 = pneg %p167
      %p312 = pneg %p164
      %p313 = pneg %p188
      %p314 = pneg %p185
      %p315 = pneg %p209
      %p316 = pneg %p206
      %p317 = pneg %p235
      %p318 = pneg %p232
      %s319 = smul.u32 2, %s20
      %p320 = scmp.lt.s32.totalorder %s319, 3
      %s321 = scalar_select %p320, %s319, 3
      %s322 = smul.addr %s321, 8
      %s323 = scalar_lea.vmem %s9, %s322
      %s324 = smul.u32 32, %s20
      %p325 = scmp.lt.s32.totalorder %s324, 63
      %s326 = scalar_select %p325, %s324, 63
      %s327 = smul.addr %s326, 4
      %s328 = scalar_lea.vmem %s0, %s327
      %s329 = smul.u32 32, %s20
      %s330 = smul.u32 2, %s20
      %p331 = scmp.lt.s32.totalorder %s330, 3
      %s332 = scalar_select %p331, %s330, 3
      %s333 = smul.addr %s332, 8
      %s334 = scalar_lea.vmem %s9, %s333
      %s335 = smul.u32 2, %s20
      %v337 = vld [vmem:[%s328] sm:$0xf]
      %v338 = vld [vmem:[%s328 + $0x4] sm:$0xf]
      %v339 = vld [vmem:[%s328 + $0x8] sm:$0xf]
      %v340 = vld [vmem:[%s328 + $0xc] sm:$0xf]
      %v341 = vld [vmem:[%s328 + $0x10] sm:$0xf]
      %v342 = vld [vmem:[%s328 + $0x14] sm:$0xf]
      %v343 = vld [vmem:[%s328 + $0x18] sm:$0xf]
      %v344 = vld [vmem:[%s328 + $0x1c] sm:$0xf]
      %v345 = vld [vmem:[%s328 + $0x20] sm:$0xf]
      %v346 = vld [vmem:[%s328 + $0x24] sm:$0xf]
      %v347 = vld [vmem:[%s328 + $0x28] sm:$0xf]
      %v348 = vld [vmem:[%s328 + $0x2c] sm:$0xf]
      %v349 = vld [vmem:[%s328 + $0x30] sm:$0xf]
      %v350 = vld [vmem:[%s328 + $0x34] sm:$0xf]
      %v351 = vld [vmem:[%s328 + $0x38] sm:$0xf]
      %v352 = vld [vmem:[%s328 + $0x3c] sm:$0xf]
      %v353 = vld [vmem:[%s328 + $0x40] sm:$0xf]
      %v354 = vld [vmem:[%s328 + $0x44] sm:$0xf]
      %v355 = vld [vmem:[%s328 + $0x48] sm:$0xf]
      %v356 = vld [vmem:[%s328 + $0x4c] sm:$0xf]
      %v357 = vld [vmem:[%s328 + $0x50] sm:$0xf]
      %v358 = vld [vmem:[%s328 + $0x54] sm:$0xf]
      %v359 = vld [vmem:[%s328 + $0x58] sm:$0xf]
      %v360 = vld [vmem:[%s328 + $0x5c] sm:$0xf]
      %v361 = vld [vmem:[%s328 + $0x60] sm:$0xf]
      %v362 = vld [vmem:[%s328 + $0x64] sm:$0xf]
      %v363 = vld [vmem:[%s328 + $0x68] sm:$0xf]
      %v364 = vld [vmem:[%s328 + $0x6c] sm:$0xf]
      %v365 = vld [vmem:[%s1] sm:$0xf]
      %v366 = vld [vmem:[%s1 + $0x4] sm:$0xf]
      %v367 = vld [vmem:[%s1 + $0x8] sm:$0xf]
      %v368 = vld [vmem:[%s1 + $0xc] sm:$0xf]
      %v369 = vld [vmem:[%s1 + $0x10] sm:$0xf]
      %v370 = vld [vmem:[%s1 + $0x14] sm:$0xf]
      %v371 = vld [vmem:[%s1 + $0x18] sm:$0xf]
      %v372 = vld [vmem:[%s1 + $0x1c] sm:$0xf]
      %v373 = vld [vmem:[%s328 + $0x70] sm:$0xf]
      %v374 = vld [vmem:[%s328 + $0x74] sm:$0xf]
      %s375 = scalar_lea.vmem %s1, 32
      %v376 = vld [vmem:[%s375] sm:$0xf]
      %v377 = vld [vmem:[%s375 + $0x4] sm:$0xf]
      %v378 = vld [vmem:[%s375 + $0x8] sm:$0xf]
      %v379 = vld [vmem:[%s375 + $0xc] sm:$0xf]
      %v380 = vld [vmem:[%s375 + $0x10] sm:$0xf]
      %v381 = vld [vmem:[%s375 + $0x14] sm:$0xf]
      %v382 = vld [vmem:[%s375 + $0x18] sm:$0xf]
      %v383 = vld [vmem:[%s375 + $0x1c] sm:$0xf]
      %v412 = vunpack.c.l.b16 %v339
      %v413 = vunpack.c.l.b16 %v340
      %v414 = vunpack.c.l.b16 %v341
      %v415 = vunpack.c.l.b16 %v342
      %v416 = vunpack.c.l.b16 %v343
      %v417 = vunpack.c.l.b16 %v344
      %v418 = vunpack.c.l.b16 %v345
      %v419 = vunpack.c.l.b16 %v346
      %v420 = vunpack.c.l.b16 %v347
      %v421 = vunpack.c.l.b16 %v348
      %v422 = vunpack.c.l.b16 %v349
      %v423 = vunpack.c.l.b16 %v350
      %v424 = vunpack.c.l.b16 %v351
      %v425 = vunpack.c.l.b16 %v352
      %v426 = vunpack.c.l.b16 %v353
      %v427 = vunpack.c.l.b16 %v354
      %v428 = vunpack.c.l.b16 %v355
      %v429 = vunpack.c.l.b16 %v356
      %v430 = vunpack.c.l.b16 %v357
      %v431 = vunpack.c.l.b16 %v358
      %v432 = vunpack.c.l.b16 %v359
      %v433 = vunpack.c.l.b16 %v360
      %v434 = vunpack.c.l.b16 %v361
      %v435 = vunpack.c.l.b16 %v362
      %v436 = vunpack.c.l.b16 %v363
      %v437 = vunpack.c.l.b16 %v364
      %v438 = vunpack.c.l.b16 %v373
      %v439 = vunpack.c.l.b16 %v374
      %v440 = vpack.c.b16 %v413, %v412
      %v441 = vpack.c.b16 %v415, %v414
      %v442 = vpack.c.b16 %v417, %v416
      %v443 = vpack.c.b16 %v419, %v418
      %v444 = vpack.c.b16 %v421, %v420
      %v445 = vpack.c.b16 %v423, %v422
      %v446 = vpack.c.b16 %v425, %v424
      %v447 = vpack.c.b16 %v427, %v426
      %v448 = vpack.c.b16 %v429, %v428
      %v449 = vpack.c.b16 %v431, %v430
      %v450 = vpack.c.b16 %v433, %v432
      %v451 = vpack.c.b16 %v435, %v434
      %v452 = vpack.c.b16 %v437, %v436
      %v453 = vpack.c.b16 %v439, %v438
      %v462 = vunpack.c.l.b16 %v376
      %v463 = vunpack.c.l.b16 %v377
      %v464 = vunpack.c.l.b16 %v378
      %v465 = vunpack.c.l.b16 %v379
      %v466 = vunpack.c.l.b16 %v380
      %v467 = vunpack.c.l.b16 %v381
      %v468 = vunpack.c.l.b16 %v382
      %v469 = vunpack.c.l.b16 %v383
      %v470 = vpack.c.b16 %v463, %v462
      %v471 = vpack.c.b16 %v465, %v464
      %v472 = vpack.c.b16 %v467, %v466
      %v473 = vpack.c.b16 %v469, %v468
      %vm478 = vcmask 523264
      %v480 = vsel %vm478, %v440, 0
      %v483 = vsel %vm478, %v441, 0
      %v486 = vsel %vm478, %v442, 0
      %v489 = vsel %vm478, %v443, 0
      %v492 = vsel %vm478, %v444, 0
      %v495 = vsel %vm478, %v445, 0
      %v498 = vsel %vm478, %v446, 0
      %v501 = vsel %vm478, %v447, 0
      %v504 = vsel %vm478, %v448, 0
      %v507 = vsel %vm478, %v449, 0
      %v510 = vsel %vm478, %v450, 0
      %v513 = vsel %vm478, %v451, 0
      %v516 = vsel %vm478, %v452, 0
      %v519 = vsel %vm478, %v453, 0
      %521 = vmatprep.subr.bf16.mxu0 0
      %522 = vmatpush1.bf16.msra.mxu0 %v470
      %523 = vmatprep.subr.bf16.mxu0 0
      %524 = vmatpush1.bf16.msra.mxu0 %v471
      %525 = vmatprep.subr.bf16.mxu0 0
      %526 = vmatpush1.bf16.msra.mxu0 %v472
      %527 = vmatprep.subr.bf16.mxu0 0
      %528 = vmatpush1.bf16.msra.mxu0 %v473
      %529 = vmatprep.subr.bf16.mxu0 0
      %530 = vmatpush1.bf16.msra.mxu0 0
      %531 = vmatprep.subr.bf16.mxu0 0
      %532 = vmatpush1.bf16.msra.mxu0 0
      %533 = vmatprep.subr.bf16.mxu0 0
      %534 = vmatpush1.bf16.msra.mxu0 0
      %535 = vmatprep.subr.bf16.mxu0 0
      %536 = vmatpush1.bf16.msra.mxu0 0
      %537 = vmatprep.subr.bf16.mxu0 0
      %538 = vmatpush1.bf16.msra.mxu0 0
      %539 = vmatprep.subr.bf16.mxu0 0
      %540 = vmatpush1.bf16.msra.mxu0 0
      %541 = vmatprep.subr.bf16.mxu0 0
      %542 = vmatpush1.bf16.msra.mxu0 0
      %543 = vmatprep.subr.bf16.mxu0 0
      %544 = vmatpush1.bf16.msra.mxu0 0
      %545 = vmatprep.subr.bf16.mxu0 0
      %546 = vmatpush1.bf16.msra.mxu0 0
      %547 = vmatprep.subr.bf16.mxu0 0
      %548 = vmatpush1.bf16.msra.mxu0 0
      %549 = vmatprep.subr.bf16.mxu0 0
      %550 = vmatpush1.bf16.msra.mxu0 0
      %551 = vmatprep.subr.bf16.mxu0 0
      %552 = vmatpush1.bf16.msra.mxu0 0
      %553 = vmatprep.mubr.bf16.mxu0 0
      %554 = vmatmul.mubr.bf16.gmra.mrb[0].mxu0 %v480
      %v555 = vpop.f32.mrb[0].mxu0
      %v556 = vadd.f32 0.0, %v555
      %v557 = vpop.f32.mrb[0].mxu0
      %v558 = vpop.f32.mrb[0].mxu0
      %v559 = vadd.f32 0.0, %v558
      %v560 = vpop.f32.mrb[0].mxu0
      %561 = vmatprep.mubr.bf16.mxu0 0
      %562 = vmatmul.mubr.bf16.gmra.mrb[0].mxu0 %v483
      %v563 = vpop.f32.mrb[0].mxu0
      %v564 = vadd.f32 0.0, %v563
      %v565 = vpop.f32.mrb[0].mxu0
      %v566 = vpop.f32.mrb[0].mxu0
      %v567 = vadd.f32 0.0, %v566
      %v568 = vpop.f32.mrb[0].mxu0
      %569 = vmatprep.mubr.bf16.mxu0 0
      %570 = vmatmul.mubr.bf16.gmra.mrb[0].mxu0 %v486
      %v571 = vpop.f32.mrb[0].mxu0
      %v572 = vadd.f32 0.0, %v571
      %v573 = vpop.f32.mrb[0].mxu0
      %v574 = vpop.f32.mrb[0].mxu0
      %v575 = vadd.f32 0.0, %v574
      %v576 = vpop.f32.mrb[0].mxu0
      %577 = vmatprep.mubr.bf16.mxu0 0
      %578 = vmatmul.mubr.bf16.gmra.mrb[0].mxu0 %v489
      %v579 = vpop.f32.mrb[0].mxu0
      %v580 = vadd.f32 0.0, %v579
      %v581 = vpop.f32.mrb[0].mxu0
      %v582 = vpop.f32.mrb[0].mxu0
      %v583 = vadd.f32 0.0, %v582
      %v584 = vpop.f32.mrb[0].mxu0
      %585 = vmatprep.mubr.bf16.mxu0 0
      %586 = vmatmul.mubr.bf16.gmra.mrb[0].mxu0 %v492
      %v587 = vpop.f32.mrb[0].mxu0
      %v588 = vadd.f32 0.0, %v587
      %v589 = vpop.f32.mrb[0].mxu0
      %v590 = vpop.f32.mrb[0].mxu0
      %v591 = vadd.f32 0.0, %v590
      %v592 = vpop.f32.mrb[0].mxu0
      %593 = vmatprep.mubr.bf16.mxu0 0
      %594 = vmatmul.mubr.bf16.gmra.mrb[0].mxu0 %v495
      %v595 = vpop.f32.mrb[0].mxu0
      %v596 = vadd.f32 0.0, %v595
      %v597 = vpop.f32.mrb[0].mxu0
      %v598 = vpop.f32.mrb[0].mxu0
      %v599 = vadd.f32 0.0, %v598
      %v600 = vpop.f32.mrb[0].mxu0
      %601 = vmatprep.mubr.bf16.mxu0 0
      %602 = vmatmul.mubr.bf16.gmra.mrb[0].mxu0 %v498
      %v603 = vpop.f32.mrb[0].mxu0
      %v604 = vadd.f32 0.0, %v603
      %v605 = vpop.f32.mrb[0].mxu0
      %v606 = vpop.f32.mrb[0].mxu0
      %v607 = vadd.f32 0.0, %v606
      %v608 = vpop.f32.mrb[0].mxu0
      %609 = vmatprep.mubr.bf16.mxu0 0
      %610 = vmatmul.mubr.bf16.gmra.mrb[0].mxu0 %v501
      %v611 = vpop.f32.mrb[0].mxu0
      %v612 = vadd.f32 0.0, %v611
      %v613 = vpop.f32.mrb[0].mxu0
      %v614 = vpop.f32.mrb[0].mxu0
      %v615 = vadd.f32 0.0, %v614
      %v616 = vpop.f32.mrb[0].mxu0
      %617 = vmatprep.mubr.bf16.mxu0 0
      %618 = vmatmul.mubr.bf16.gmra.mrb[0].mxu0 %v504
      %v619 = vpop.f32.mrb[0].mxu0
      %v620 = vadd.f32 0.0, %v619
      %v621 = vpop.f32.mrb[0].mxu0
      %v622 = vpop.f32.mrb[0].mxu0
      %v623 = vadd.f32 0.0, %v622
      %v624 = vpop.f32.mrb[0].mxu0
      %625 = vmatprep.mubr.bf16.mxu0 0
      %626 = vmatmul.mubr.bf16.gmra.mrb[0].mxu0 %v507
      %v627 = vpop.f32.mrb[0].mxu0
      %v628 = vadd.f32 0.0, %v627
      %v629 = vpop.f32.mrb[0].mxu0
      %v630 = vpop.f32.mrb[0].mxu0
      %v631 = vadd.f32 0.0, %v630
      %v632 = vpop.f32.mrb[0].mxu0
      %633 = vmatprep.mubr.bf16.mxu0 0
      %634 = vmatmul.mubr.bf16.gmra.mrb[0].mxu0 %v510
      %v635 = vpop.f32.mrb[0].mxu0
      %v636 = vadd.f32 0.0, %v635
      %v637 = vpop.f32.mrb[0].mxu0
      %v638 = vpop.f32.mrb[0].mxu0
      %v639 = vadd.f32 0.0, %v638
      %v640 = vpop.f32.mrb[0].mxu0
      %641 = vmatprep.mubr.bf16.mxu0 0
      %642 = vmatmul.mubr.bf16.gmra.mrb[0].mxu0 %v513
      %v643 = vpop.f32.mrb[0].mxu0
      %v644 = vadd.f32 0.0, %v643
      %v645 = vpop.f32.mrb[0].mxu0
      %v646 = vpop.f32.mrb[0].mxu0
      %v647 = vadd.f32 0.0, %v646
      %v648 = vpop.f32.mrb[0].mxu0
      %649 = vmatprep.mubr.bf16.mxu0 0
      %650 = vmatmul.mubr.bf16.gmra.mrb[0].mxu0 %v516
      %v651 = vpop.f32.mrb[0].mxu0
      %v652 = vadd.f32 0.0, %v651
      %v653 = vpop.f32.mrb[0].mxu0
      %v654 = vpop.f32.mrb[0].mxu0
      %v655 = vadd.f32 0.0, %v654
      %v656 = vpop.f32.mrb[0].mxu0
      %657 = vmatprep.mubr.bf16.mxu0 0
      %658 = vmatmul.mubr.bf16.gmra.mrb[0].mxu0 %v519
      %v659 = vpop.f32.mrb[0].mxu0
      %v660 = vadd.f32 0.0, %v659
      %v661 = vpop.f32.mrb[0].mxu0
      %v662 = vpop.f32.mrb[0].mxu0
      %v663 = vadd.f32 0.0, %v662
      %v664 = vpop.f32.mrb[0].mxu0
      %665 = vdwg.mxu0
      %v668 = vunpack.c.l.b16 %v337
      %v669 = vunpack.c.l.b16 %v338
      %v670 = vpack.c.b16 %v669, %v668
      %v679 = vunpack.c.l.b16 %v365
      %v680 = vunpack.c.l.b16 %v366
      %v681 = vunpack.c.l.b16 %v367
      %v682 = vunpack.c.l.b16 %v368
      %v683 = vunpack.c.l.b16 %v369
      %v684 = vunpack.c.l.b16 %v370
      %v685 = vunpack.c.l.b16 %v371
      %v686 = vunpack.c.l.b16 %v372
      %v687 = vpack.c.b16 %v680, %v679
      %v688 = vpack.c.b16 %v682, %v681
      %v689 = vpack.c.b16 %v684, %v683
      %v690 = vpack.c.b16 %v686, %v685
      %v696 = vsel %vm478, %v670, 0
      %698 = vmatprep.subr.bf16.mxu0 0
      %699 = vmatpush1.bf16.msra.mxu0 %v687
      %700 = vmatprep.subr.bf16.mxu0 0
      %701 = vmatpush1.bf16.msra.mxu0 %v688
      %702 = vmatprep.subr.bf16.mxu0 0
      %703 = vmatpush1.bf16.msra.mxu0 %v689
      %704 = vmatprep.subr.bf16.mxu0 0
      %705 = vmatpush1.bf16.msra.mxu0 %v690
      %706 = vmatprep.subr.bf16.mxu0 0
      %707 = vmatpush1.bf16.msra.mxu0 0
      %708 = vmatprep.subr.bf16.mxu0 0
      %709 = vmatpush1.bf16.msra.mxu0 0
      %710 = vmatprep.subr.bf16.mxu0 0
      %711 = vmatpush1.bf16.msra.mxu0 0
      %712 = vmatprep.subr.bf16.mxu0 0
      %713 = vmatpush1.bf16.msra.mxu0 0
      %714 = vmatprep.subr.bf16.mxu0 0
      %715 = vmatpush1.bf16.msra.mxu0 0
      %716 = vmatprep.subr.bf16.mxu0 0
      %717 = vmatpush1.bf16.msra.mxu0 0
      %718 = vmatprep.subr.bf16.mxu0 0
      %719 = vmatpush1.bf16.msra.mxu0 0
      %720 = vmatprep.subr.bf16.mxu0 0
      %721 = vmatpush1.bf16.msra.mxu0 0
      %722 = vmatprep.subr.bf16.mxu0 0
      %723 = vmatpush1.bf16.msra.mxu0 0
      %724 = vmatprep.subr.bf16.mxu0 0
      %725 = vmatpush1.bf16.msra.mxu0 0
      %726 = vmatprep.subr.bf16.mxu0 0
      %727 = vmatpush1.bf16.msra.mxu0 0
      %728 = vmatprep.subr.bf16.mxu0 0
      %729 = vmatpush1.bf16.msra.mxu0 0
      %730 = vmatprep.mubr.bf16.mxu0 0
      %731 = vmatmul.mubr.bf16.gmra.mrb[0].mxu0 %v696
      %v732 = vpop.f32.mrb[0].mxu0
      %v733 = vadd.f32 %v556, %v732
      %v734 = vpop.f32.mrb[0].mxu0
      %v735 = vpop.f32.mrb[0].mxu0
      %v736 = vadd.f32 %v559, %v735
      %v737 = vpop.f32.mrb[0].mxu0
      %738 = vmatprep.mubr.bf16.mxu0 0
      %739 = vmatmul.mubr.bf16.gmra.mrb[0].mxu0 %v480
      %v740 = vpop.f32.mrb[0].mxu0
      %v741 = vadd.f32 %v564, %v740
      %v742 = vpop.f32.mrb[0].mxu0
      %v743 = vpop.f32.mrb[0].mxu0
      %v744 = vadd.f32 %v567, %v743
      %v745 = vpop.f32.mrb[0].mxu0
      %746 = vmatprep.mubr.bf16.mxu0 0
      %747 = vmatmul.mubr.bf16.gmra.mrb[0].mxu0 %v483
      %v748 = vpop.f32.mrb[0].mxu0
      %v749 = vadd.f32 %v572, %v748
      %v750 = vpop.f32.mrb[0].mxu0
      %v751 = vpop.f32.mrb[0].mxu0
      %v752 = vadd.f32 %v575, %v751
      %v753 = vpop.f32.mrb[0].mxu0
      %754 = vmatprep.mubr.bf16.mxu0 0
      %755 = vmatmul.mubr.bf16.gmra.mrb[0].mxu0 %v486
      %v756 = vpop.f32.mrb[0].mxu0
      %v757 = vadd.f32 %v580, %v756
      %v758 = vpop.f32.mrb[0].mxu0
      %v759 = vpop.f32.mrb[0].mxu0
      %v760 = vadd.f32 %v583, %v759
      %v761 = vpop.f32.mrb[0].mxu0
      %762 = vmatprep.mubr.bf16.mxu0 0
      %763 = vmatmul.mubr.bf16.gmra.mrb[0].mxu0 %v489
      %v764 = vpop.f32.mrb[0].mxu0
      %v765 = vadd.f32 %v588, %v764
      %v766 = vpop.f32.mrb[0].mxu0
      %v767 = vpop.f32.mrb[0].mxu0
      %v768 = vadd.f32 %v591, %v767
      %v769 = vpop.f32.mrb[0].mxu0
      %770 = vmatprep.mubr.bf16.mxu0 0
      %771 = vmatmul.mubr.bf16.gmra.mrb[0].mxu0 %v492
      %v772 = vpop.f32.mrb[0].mxu0
      %v773 = vadd.f32 %v596, %v772
      %v774 = vpop.f32.mrb[0].mxu0
      %v775 = vpop.f32.mrb[0].mxu0
      %v776 = vadd.f32 %v599, %v775
      %v777 = vpop.f32.mrb[0].mxu0
      %778 = vmatprep.mubr.bf16.mxu0 0
      %779 = vmatmul.mubr.bf16.gmra.mrb[0].mxu0 %v495
      %v780 = vpop.f32.mrb[0].mxu0
      %v781 = vadd.f32 %v604, %v780
      %v782 = vpop.f32.mrb[0].mxu0
      %v783 = vpop.f32.mrb[0].mxu0
      %v784 = vadd.f32 %v607, %v783
      %v785 = vpop.f32.mrb[0].mxu0
      %786 = vmatprep.mubr.bf16.mxu0 0
      %787 = vmatmul.mubr.bf16.gmra.mrb[0].mxu0 %v498
      %v788 = vpop.f32.mrb[0].mxu0
      %v789 = vadd.f32 %v612, %v788
      %v790 = vpop.f32.mrb[0].mxu0
      %v791 = vpop.f32.mrb[0].mxu0
      %v792 = vadd.f32 %v615, %v791
      %v793 = vpop.f32.mrb[0].mxu0
      %794 = vmatprep.mubr.bf16.mxu0 0
      %795 = vmatmul.mubr.bf16.gmra.mrb[0].mxu0 %v501
      %v796 = vpop.f32.mrb[0].mxu0
      %v797 = vadd.f32 %v620, %v796
      %v798 = vpop.f32.mrb[0].mxu0
      %v799 = vpop.f32.mrb[0].mxu0
      %v800 = vadd.f32 %v623, %v799
      %v801 = vpop.f32.mrb[0].mxu0
      %802 = vmatprep.mubr.bf16.mxu0 0
      %803 = vmatmul.mubr.bf16.gmra.mrb[0].mxu0 %v504
      %v804 = vpop.f32.mrb[0].mxu0
      %v805 = vadd.f32 %v628, %v804
      %v806 = vpop.f32.mrb[0].mxu0
      %v807 = vpop.f32.mrb[0].mxu0
      %v808 = vadd.f32 %v631, %v807
      %v809 = vpop.f32.mrb[0].mxu0
      %810 = vmatprep.mubr.bf16.mxu0 0
      %811 = vmatmul.mubr.bf16.gmra.mrb[0].mxu0 %v507
      %v812 = vpop.f32.mrb[0].mxu0
      %v813 = vadd.f32 %v636, %v812
      %v814 = vpop.f32.mrb[0].mxu0
      %v815 = vpop.f32.mrb[0].mxu0
      %v816 = vadd.f32 %v639, %v815
      %v817 = vpop.f32.mrb[0].mxu0
      %818 = vmatprep.mubr.bf16.mxu0 0
      %819 = vmatmul.mubr.bf16.gmra.mrb[0].mxu0 %v510
      %v820 = vpop.f32.mrb[0].mxu0
      %v821 = vadd.f32 %v644, %v820
      %v822 = vpop.f32.mrb[0].mxu0
      %v823 = vpop.f32.mrb[0].mxu0
      %v824 = vadd.f32 %v647, %v823
      %v825 = vpop.f32.mrb[0].mxu0
      %826 = vmatprep.mubr.bf16.mxu0 0
      %827 = vmatmul.mubr.bf16.gmra.mrb[0].mxu0 %v513
      %v828 = vpop.f32.mrb[0].mxu0
      %v829 = vadd.f32 %v652, %v828
      %v830 = vpop.f32.mrb[0].mxu0
      %v831 = vpop.f32.mrb[0].mxu0
      %v832 = vadd.f32 %v655, %v831
      %v833 = vpop.f32.mrb[0].mxu0
      %834 = vmatprep.mubr.bf16.mxu0 0
      %835 = vmatmul.mubr.bf16.gmra.mrb[0].mxu0 %v516
      %v836 = vpop.f32.mrb[0].mxu0
      %v837 = vadd.f32 %v660, %v836
      %v838 = vpop.f32.mrb[0].mxu0
      %v839 = vpop.f32.mrb[0].mxu0
      %v840 = vadd.f32 %v663, %v839
      %v841 = vpop.f32.mrb[0].mxu0
      %842 = vdwg.mxu0
      %v843 = vld [vmem:[%s328 + $0x10] sm:$0xf]
      %v844 = vld [vmem:[%s328 + $0x14] sm:$0xf]
      %v845 = vld [vmem:[%s328 + $0x18] sm:$0xf]
      %v846 = vld [vmem:[%s328 + $0x1c] sm:$0xf]
      %v847 = vld [vmem:[%s328 + $0x20] sm:$0xf]
      %v848 = vld [vmem:[%s328 + $0x24] sm:$0xf]
      %v849 = vld [vmem:[%s328 + $0x28] sm:$0xf]
      %v850 = vld [vmem:[%s328 + $0x2c] sm:$0xf]
      %v851 = vld [vmem:[%s328 + $0x30] sm:$0xf]
      %v852 = vld [vmem:[%s328 + $0x34] sm:$0xf]
      %v853 = vld [vmem:[%s328 + $0x38] sm:$0xf]
      %v854 = vld [vmem:[%s328 + $0x3c] sm:$0xf]
      %v855 = vld [vmem:[%s328 + $0x40] sm:$0xf]
      %v856 = vld [vmem:[%s328 + $0x44] sm:$0xf]
      %v857 = vld [vmem:[%s328 + $0x48] sm:$0xf]
      %v858 = vld [vmem:[%s328 + $0x4c] sm:$0xf]
      %v859 = vld [vmem:[%s328 + $0x50] sm:$0xf]
      %v860 = vld [vmem:[%s328 + $0x54] sm:$0xf]
      %v861 = vld [vmem:[%s328 + $0x58] sm:$0xf]
      %v862 = vld [vmem:[%s328 + $0x5c] sm:$0xf]
      %v863 = vld [vmem:[%s328 + $0x60] sm:$0xf]
      %v864 = vld [vmem:[%s328 + $0x64] sm:$0xf]
      %v865 = vld [vmem:[%s328 + $0x68] sm:$0xf]
      %v866 = vld [vmem:[%s328 + $0x6c] sm:$0xf]
      %v867 = vld [vmem:[%s328 + $0x70] sm:$0xf]
      %v868 = vld [vmem:[%s328 + $0x74] sm:$0xf]
      %v869 = vld [vmem:[%s328 + $0x78] sm:$0xf]
      %v870 = vld [vmem:[%s328 + $0x7c] sm:$0xf]
      %s871 = scalar_lea.vmem %s1, 64
      %v872 = vld [vmem:[%s871] sm:$0xf]
      %v873 = vld [vmem:[%s871 + $0x4] sm:$0xf]
      %v874 = vld [vmem:[%s871 + $0x8] sm:$0xf]
      %v875 = vld [vmem:[%s871 + $0xc] sm:$0xf]
      %v876 = vld [vmem:[%s871 + $0x10] sm:$0xf]
      %v877 = vld [vmem:[%s871 + $0x14] sm:$0xf]
      %v878 = vld [vmem:[%s871 + $0x18] sm:$0xf]
      %v879 = vld [vmem:[%s871 + $0x1c] sm:$0xf]
      %v908 = vunpack.c.l.b16 %v843
      %v909 = vunpack.c.l.b16 %v844
      %v910 = vunpack.c.l.b16 %v845
      %v911 = vunpack.c.l.b16 %v846
      %v912 = vunpack.c.l.b16 %v847
      %v913 = vunpack.c.l.b16 %v848
      %v914 = vunpack.c.l.b16 %v849
      %v915 = vunpack.c.l.b16 %v850
      %v916 = vunpack.c.l.b16 %v851
      %v917 = vunpack.c.l.b16 %v852
      %v918 = vunpack.c.l.b16 %v853
      %v919 = vunpack.c.l.b16 %v854
      %v920 = vunpack.c.l.b16 %v855
      %v921 = vunpack.c.l.b16 %v856
      %v922 = vunpack.c.l.b16 %v857
      %v923 = vunpack.c.l.b16 %v858
      %v924 = vunpack.c.l.b16 %v859
      %v925 = vunpack.c.l.b16 %v860
      %v926 = vunpack.c.l.b16 %v861
      %v927 = vunpack.c.l.b16 %v862
      %v928 = vunpack.c.l.b16 %v863
      %v929 = vunpack.c.l.b16 %v864
      %v930 = vunpack.c.l.b16 %v865
      %v931 = vunpack.c.l.b16 %v866
      %v932 = vunpack.c.l.b16 %v867
      %v933 = vunpack.c.l.b16 %v868
      %v934 = vunpack.c.l.b16 %v869
      %v935 = vunpack.c.l.b16 %v870
      %v936 = vpack.c.b16 %v909, %v908
      %v937 = vpack.c.b16 %v911, %v910
      %v938 = vpack.c.b16 %v913, %v912
      %v939 = vpack.c.b16 %v915, %v914
      %v940 = vpack.c.b16 %v917, %v916
      %v941 = vpack.c.b16 %v919, %v918
      %v942 = vpack.c.b16 %v921, %v920
      %v943 = vpack.c.b16 %v923, %v922
      %v944 = vpack.c.b16 %v925, %v924
      %v945 = vpack.c.b16 %v927, %v926
      %v946 = vpack.c.b16 %v929, %v928
      %v947 = vpack.c.b16 %v931, %v930
      %v948 = vpack.c.b16 %v933, %v932
      %v949 = vpack.c.b16 %v935, %v934
      %v958 = vunpack.c.l.b16 %v872
      %v959 = vunpack.c.l.b16 %v873
      %v960 = vunpack.c.l.b16 %v874
      %v961 = vunpack.c.l.b16 %v875
      %v962 = vunpack.c.l.b16 %v876
      %v963 = vunpack.c.l.b16 %v877
      %v964 = vunpack.c.l.b16 %v878
      %v965 = vunpack.c.l.b16 %v879
      %v966 = vpack.c.b16 %v959, %v958
      %v967 = vpack.c.b16 %v961, %v960
      %v968 = vpack.c.b16 %v963, %v962
      %v969 = vpack.c.b16 %v965, %v964
      %v975 = vsel %vm478, %v936, 0
      %v978 = vsel %vm478, %v937, 0
      %v981 = vsel %vm478, %v938, 0
      %v984 = vsel %vm478, %v939, 0
      %v987 = vsel %vm478, %v940, 0
      %v990 = vsel %vm478, %v941, 0
      %v993 = vsel %vm478, %v942, 0
      %v996 = vsel %vm478, %v943, 0
      %v999 = vsel %vm478, %v944, 0
      %v1002 = vsel %vm478, %v945, 0
      %v1005 = vsel %vm478, %v946, 0
      %v1008 = vsel %vm478, %v947, 0
      %v1011 = vsel %vm478, %v948, 0
      %v1014 = vsel %vm478, %v949, 0
      %1016 = vmatprep.subr.bf16.mxu0 0
      %1017 = vmatpush1.bf16.msra.mxu0 %v966
      %1018 = vmatprep.subr.bf16.mxu0 0
      %1019 = vmatpush1.bf16.msra.mxu0 %v967
      %1020 = vmatprep.subr.bf16.mxu0 0
      %1021 = vmatpush1.bf16.msra.mxu0 %v968
      %1022 = vmatprep.subr.bf16.mxu0 0
      %1023 = vmatpush1.bf16.msra.mxu0 %v969
      %1024 = vmatprep.subr.bf16.mxu0 0
      %1025 = vmatpush1.bf16.msra.mxu0 0
      %1026 = vmatprep.subr.bf16.mxu0 0
      %1027 = vmatpush1.bf16.msra.mxu0 0
      %1028 = vmatprep.subr.bf16.mxu0 0
      %1029 = vmatpush1.bf16.msra.mxu0 0
      %1030 = vmatprep.subr.bf16.mxu0 0
      %1031 = vmatpush1.bf16.msra.mxu0 0
      %1032 = vmatprep.subr.bf16.mxu0 0
      %1033 = vmatpush1.bf16.msra.mxu0 0
      %1034 = vmatprep.subr.bf16.mxu0 0
      %1035 = vmatpush1.bf16.msra.mxu0 0
      %1036 = vmatprep.subr.bf16.mxu0 0
      %1037 = vmatpush1.bf16.msra.mxu0 0
      %1038 = vmatprep.subr.bf16.mxu0 0
      %1039 = vmatpush1.bf16.msra.mxu0 0
      %1040 = vmatprep.subr.bf16.mxu0 0
      %1041 = vmatpush1.bf16.msra.mxu0 0
      %1042 = vmatprep.subr.bf16.mxu0 0
      %1043 = vmatpush1.bf16.msra.mxu0 0
      %1044 = vmatprep.subr.bf16.mxu0 0
      %1045 = vmatpush1.bf16.msra.mxu0 0
      %1046 = vmatprep.subr.bf16.mxu0 0
      %1047 = vmatpush1.bf16.msra.mxu0 0
      %1048 = vmatprep.mubr.bf16.mxu0 0
      %1049 = vmatmul.mubr.bf16.gmra.mrb[0].mxu0 %v975
      %v1050 = vpop.f32.mrb[0].mxu0
      %v1051 = vadd.f32 0.0, %v1050
      %v1052 = vpop.f32.mrb[0].mxu0
      %v1053 = vpop.f32.mrb[0].mxu0
      %v1054 = vadd.f32 0.0, %v1053
      %v1055 = vpop.f32.mrb[0].mxu0
      %1056 = vmatprep.mubr.bf16.mxu0 0
      %1057 = vmatmul.mubr.bf16.gmra.mrb[0].mxu0 %v978
      %v1058 = vpop.f32.mrb[0].mxu0
      %v1059 = vadd.f32 0.0, %v1058
      %v1060 = vpop.f32.mrb[0].mxu0
      %v1061 = vpop.f32.mrb[0].mxu0
      %v1062 = vadd.f32 0.0, %v1061
      %v1063 = vpop.f32.mrb[0].mxu0
      %1064 = vmatprep.mubr.bf16.mxu0 0
      %1065 = vmatmul.mubr.bf16.gmra.mrb[0].mxu0 %v981
      %v1066 = vpop.f32.mrb[0].mxu0
      %v1067 = vadd.f32 0.0, %v1066
      %v1068 = vpop.f32.mrb[0].mxu0
      %v1069 = vpop.f32.mrb[0].mxu0
      %v1070 = vadd.f32 0.0, %v1069
      %v1071 = vpop.f32.mrb[0].mxu0
      %1072 = vmatprep.mubr.bf16.mxu0 0
      %1073 = vmatmul.mubr.bf16.gmra.mrb[0].mxu0 %v984
      %v1074 = vpop.f32.mrb[0].mxu0
      %v1075 = vadd.f32 0.0, %v1074
      %v1076 = vpop.f32.mrb[0].mxu0
      %v1077 = vpop.f32.mrb[0].mxu0
      %v1078 = vadd.f32 0.0, %v1077
      %v1079 = vpop.f32.mrb[0].mxu0
      %1080 = vmatprep.mubr.bf16.mxu0 0
      %1081 = vmatmul.mubr.bf16.gmra.mrb[0].mxu0 %v987
      %v1082 = vpop.f32.mrb[0].mxu0
      %v1083 = vadd.f32 0.0, %v1082
      %v1084 = vpop.f32.mrb[0].mxu0
      %v1085 = vpop.f32.mrb[0].mxu0
      %v1086 = vadd.f32 0.0, %v1085
      %v1087 = vpop.f32.mrb[0].mxu0
      %1088 = vmatprep.mubr.bf16.mxu0 0
      %1089 = vmatmul.mubr.bf16.gmra.mrb[0].mxu0 %v990
      %v1090 = vpop.f32.mrb[0].mxu0
      %v1091 = vadd.f32 0.0, %v1090
      %v1092 = vpop.f32.mrb[0].mxu0
      %v1093 = vpop.f32.mrb[0].mxu0
      %v1094 = vadd.f32 0.0, %v1093
      %v1095 = vpop.f32.mrb[0].mxu0
      %1096 = vmatprep.mubr.bf16.mxu0 0
      %1097 = vmatmul.mubr.bf16.gmra.mrb[0].mxu0 %v993
      %v1098 = vpop.f32.mrb[0].mxu0
      %v1099 = vadd.f32 0.0, %v1098
      %v1100 = vpop.f32.mrb[0].mxu0
      %v1101 = vpop.f32.mrb[0].mxu0
      %v1102 = vadd.f32 0.0, %v1101
      %v1103 = vpop.f32.mrb[0].mxu0
      %1104 = vmatprep.mubr.bf16.mxu0 0
      %1105 = vmatmul.mubr.bf16.gmra.mrb[0].mxu0 %v996
      %v1106 = vpop.f32.mrb[0].mxu0
      %v1107 = vadd.f32 0.0, %v1106
      %v1108 = vpop.f32.mrb[0].mxu0
      %v1109 = vpop.f32.mrb[0].mxu0
      %v1110 = vadd.f32 0.0, %v1109
      %v1111 = vpop.f32.mrb[0].mxu0
      %1112 = vmatprep.mubr.bf16.mxu0 0
      %1113 = vmatmul.mubr.bf16.gmra.mrb[0].mxu0 %v999
      %v1114 = vpop.f32.mrb[0].mxu0
      %v1115 = vadd.f32 0.0, %v1114
      %v1116 = vpop.f32.mrb[0].mxu0
      %v1117 = vpop.f32.mrb[0].mxu0
      %v1118 = vadd.f32 0.0, %v1117
      %v1119 = vpop.f32.mrb[0].mxu0
      %1120 = vmatprep.mubr.bf16.mxu0 0
      %1121 = vmatmul.mubr.bf16.gmra.mrb[0].mxu0 %v1002
      %v1122 = vpop.f32.mrb[0].mxu0
      %v1123 = vadd.f32 0.0, %v1122
      %v1124 = vpop.f32.mrb[0].mxu0
      %v1125 = vpop.f32.mrb[0].mxu0
      %v1126 = vadd.f32 0.0, %v1125
      %v1127 = vpop.f32.mrb[0].mxu0
      %1128 = vmatprep.mubr.bf16.mxu0 0
      %1129 = vmatmul.mubr.bf16.gmra.mrb[0].mxu0 %v1005
      %v1130 = vpop.f32.mrb[0].mxu0
      %v1131 = vadd.f32 0.0, %v1130
      %v1132 = vpop.f32.mrb[0].mxu0
      %v1133 = vpop.f32.mrb[0].mxu0
      %v1134 = vadd.f32 0.0, %v1133
      %v1135 = vpop.f32.mrb[0].mxu0
      %1136 = vmatprep.mubr.bf16.mxu0 0
      %1137 = vmatmul.mubr.bf16.gmra.mrb[0].mxu0 %v1008
      %v1138 = vpop.f32.mrb[0].mxu0
      %v1139 = vadd.f32 0.0, %v1138
      %v1140 = vpop.f32.mrb[0].mxu0
      %v1141 = vpop.f32.mrb[0].mxu0
      %v1142 = vadd.f32 0.0, %v1141
      %v1143 = vpop.f32.mrb[0].mxu0
      %1144 = vmatprep.mubr.bf16.mxu0 0
      %1145 = vmatmul.mubr.bf16.gmra.mrb[0].mxu0 %v1011
      %v1146 = vpop.f32.mrb[0].mxu0
      %v1147 = vadd.f32 0.0, %v1146
      %v1148 = vpop.f32.mrb[0].mxu0
      %v1149 = vpop.f32.mrb[0].mxu0
      %v1150 = vadd.f32 0.0, %v1149
      %v1151 = vpop.f32.mrb[0].mxu0
      %1152 = vmatprep.mubr.bf16.mxu0 0
      %1153 = vmatmul.mubr.bf16.gmra.mrb[0].mxu0 %v1014
      %v1154 = vpop.f32.mrb[0].mxu0
      %v1155 = vadd.f32 0.0, %v1154
      %v1156 = vpop.f32.mrb[0].mxu0
      %v1157 = vpop.f32.mrb[0].mxu0
      %v1158 = vadd.f32 0.0, %v1157
      %v1159 = vpop.f32.mrb[0].mxu0
      %1160 = vdwg.mxu0
      %v1161 = vadd.f32 %v733, %v1051
      %v1162 = vadd.f32 %v736, %v1054
      %v1163 = vadd.f32 %v741, %v1059
      %v1164 = vadd.f32 %v744, %v1062
      %v1165 = vadd.f32 %v749, %v1067
      %v1166 = vadd.f32 %v752, %v1070
      %v1167 = vadd.f32 %v757, %v1075
      %v1168 = vadd.f32 %v760, %v1078
      %v1169 = vadd.f32 %v765, %v1083
      %v1170 = vadd.f32 %v768, %v1086
      %v1171 = vadd.f32 %v773, %v1091
      %v1172 = vadd.f32 %v776, %v1094
      %v1173 = vadd.f32 %v781, %v1099
      %v1174 = vadd.f32 %v784, %v1102
      %v1175 = vadd.f32 %v789, %v1107
      %v1176 = vadd.f32 %v792, %v1110
      %v1177 = vadd.f32 %v797, %v1115
      %v1178 = vadd.f32 %v800, %v1118
      %v1179 = vadd.f32 %v805, %v1123
      %v1180 = vadd.f32 %v808, %v1126
      %v1181 = vadd.f32 %v813, %v1131
      %v1182 = vadd.f32 %v816, %v1134
      %v1183 = vadd.f32 %v821, %v1139
      %v1184 = vadd.f32 %v824, %v1142
      %v1185 = vadd.f32 %v829, %v1147
      %v1186 = vadd.f32 %v832, %v1150
      %v1187 = vadd.f32 %v837, %v1155
      %v1188 = vadd.f32 %v840, %v1158
      %v1189 = vld [vmem:[%s2] sm:$0x1]
      %v1191 = vlaneseq
      %v1192 = vshrl.u32 %v1191, 7
      %v1193 = vsub.s32 0, %v1192
      %v1194 = vrot.slane %v1189, %v1193
      %v1196 = vadd.f32 %v1161, %v1194
      %v1197 = vadd.f32 %v1162, %v1194
      %v1198 = vadd.f32 %v1163, %v1194
      %v1199 = vadd.f32 %v1164, %v1194
      %v1200 = vadd.f32 %v1165, %v1194
      %v1201 = vadd.f32 %v1166, %v1194
      %v1202 = vadd.f32 %v1167, %v1194
      %v1203 = vadd.f32 %v1168, %v1194
      %v1204 = vadd.f32 %v1169, %v1194
      %v1205 = vadd.f32 %v1170, %v1194
      %v1206 = vadd.f32 %v1171, %v1194
      %v1207 = vadd.f32 %v1172, %v1194
      %v1208 = vadd.f32 %v1173, %v1194
      %v1209 = vadd.f32 %v1174, %v1194
      %v1210 = vadd.f32 %v1175, %v1194
      %v1211 = vadd.f32 %v1176, %v1194
      %v1212 = vadd.f32 %v1177, %v1194
      %v1213 = vadd.f32 %v1178, %v1194
      %v1214 = vadd.f32 %v1179, %v1194
      %v1215 = vadd.f32 %v1180, %v1194
      %v1216 = vadd.f32 %v1181, %v1194
      %v1217 = vadd.f32 %v1182, %v1194
      %v1218 = vadd.f32 %v1183, %v1194
      %v1219 = vadd.f32 %v1184, %v1194
      %v1220 = vadd.f32 %v1185, %v1194
      %v1221 = vadd.f32 %v1186, %v1194
      %v1222 = vadd.f32 %v1187, %v1194
      %v1223 = vadd.f32 %v1188, %v1194
      %v1224 = vmax.f32 %v1196, 0.0
      %v1225 = vmax.f32 %v1197, 0.0
      %v1226 = vmax.f32 %v1198, 0.0
      %v1227 = vmax.f32 %v1199, 0.0
      %v1228 = vmax.f32 %v1200, 0.0
      %v1229 = vmax.f32 %v1201, 0.0
      %v1230 = vmax.f32 %v1202, 0.0
      %v1231 = vmax.f32 %v1203, 0.0
      %v1232 = vmax.f32 %v1204, 0.0
      %v1233 = vmax.f32 %v1205, 0.0
      %v1234 = vmax.f32 %v1206, 0.0
      %v1235 = vmax.f32 %v1207, 0.0
      %v1236 = vmax.f32 %v1208, 0.0
      %v1237 = vmax.f32 %v1209, 0.0
      %v1238 = vmax.f32 %v1210, 0.0
      %v1239 = vmax.f32 %v1211, 0.0
      %v1240 = vmax.f32 %v1212, 0.0
      %v1241 = vmax.f32 %v1213, 0.0
      %v1242 = vmax.f32 %v1214, 0.0
      %v1243 = vmax.f32 %v1215, 0.0
      %v1244 = vmax.f32 %v1216, 0.0
      %v1245 = vmax.f32 %v1217, 0.0
      %v1246 = vmax.f32 %v1218, 0.0
      %v1247 = vmax.f32 %v1219, 0.0
      %v1248 = vmax.f32 %v1220, 0.0
      %v1249 = vmax.f32 %v1221, 0.0
      %v1250 = vmax.f32 %v1222, 0.0
      %v1251 = vmax.f32 %v1223, 0.0
      %v1252 = vpack.c.bf16 %v1225, %v1224
      %v1253 = vpack.c.bf16 %v1227, %v1226
      %v1254 = vpack.c.bf16 %v1229, %v1228
      %v1255 = vpack.c.bf16 %v1231, %v1230
      %v1256 = vpack.c.bf16 %v1233, %v1232
      %v1257 = vpack.c.bf16 %v1235, %v1234
      %v1258 = vpack.c.bf16 %v1237, %v1236
      %v1259 = vpack.c.bf16 %v1239, %v1238
      %v1260 = vpack.c.bf16 %v1241, %v1240
      %v1261 = vpack.c.bf16 %v1243, %v1242
      %v1262 = vpack.c.bf16 %v1245, %v1244
      %v1263 = vpack.c.bf16 %v1247, %v1246
      %v1264 = vpack.c.bf16 %v1249, %v1248
      %v1265 = vpack.c.bf16 %v1251, %v1250
      %vm1266 = vcmask 916480
      %1267 = vst.msk [vmem:[#allocation2] sm:$0xff] %vm1266, %v1252
      %1268 = vst.msk [vmem:[#allocation2 + $0x8] sm:$0xff] %vm1266, %v1253
      %1269 = vst.msk [vmem:[#allocation2 + $0x10] sm:$0xff] %vm1266, %v1254
      %1270 = vst.msk [vmem:[#allocation2 + $0x18] sm:$0xff] %vm1266, %v1255
      %1271 = vst.msk [vmem:[#allocation2 + $0x20] sm:$0xff] %vm1266, %v1256
      %1272 = vst.msk [vmem:[#allocation2 + $0x28] sm:$0xff] %vm1266, %v1257
      %1273 = vst.msk [vmem:[#allocation2 + $0x30] sm:$0xff] %vm1266, %v1258
      %1274 = vst.msk [vmem:[#allocation2 + $0x38] sm:$0xff] %vm1266, %v1259
      %1275 = vst.msk [vmem:[#allocation2 + $0x40] sm:$0xff] %vm1266, %v1260
      %1276 = vst.msk [vmem:[#allocation2 + $0x48] sm:$0xff] %vm1266, %v1261
      %1277 = vst.msk [vmem:[#allocation2 + $0x50] sm:$0xff] %vm1266, %v1262
      %1278 = vst.msk [vmem:[#allocation2 + $0x58] sm:$0xff] %vm1266, %v1263
      %1279 = vst.msk [vmem:[#allocation2 + $0x60] sm:$0xff] %vm1266, %v1264
      %1280 = vst.msk [vmem:[#allocation2 + $0x68] sm:$0xff] %vm1266, %v1265
      %v1281 = vld [vmem:[#allocation2] sm:$0xff]
      %v1282 = vld [vmem:[#allocation2 + $0x8] sm:$0xff]
      %v1283 = vld [vmem:[#allocation2 + $0x10] sm:$0xff]
      %v1284 = vld [vmem:[#allocation2 + $0x18] sm:$0xff]
      %v1285 = vld [vmem:[#allocation2 + $0x20] sm:$0xff]
      %v1286 = vld [vmem:[#allocation2 + $0x28] sm:$0xff]
      %v1287 = vld [vmem:[#allocation2 + $0x30] sm:$0xff]
      %v1288 = vld [vmem:[#allocation2 + $0x38] sm:$0xff]
      %v1289 = vld [vmem:[#allocation2 + $0x40] sm:$0xff]
      %v1290 = vld [vmem:[#allocation2 + $0x48] sm:$0xff]
      %v1291 = vld [vmem:[#allocation2 + $0x50] sm:$0xff]
      %v1292 = vld [vmem:[#allocation2 + $0x58] sm:$0xff]
      %v1293 = vld [vmem:[%s3] sm:$0xf]
      %v1294 = vld [vmem:[%s3 + $0x4] sm:$0xf]
      %v1295 = vld [vmem:[%s3 + $0x8] sm:$0xf]
      %v1296 = vld [vmem:[%s3 + $0xc] sm:$0xf]
      %v1297 = vld [vmem:[%s3 + $0x10] sm:$0xf]
      %v1298 = vld [vmem:[%s3 + $0x14] sm:$0xf]
      %v1299 = vld [vmem:[%s3 + $0x18] sm:$0xf]
      %v1300 = vld [vmem:[%s3 + $0x1c] sm:$0xf]
      %v1301 = vld [vmem:[%s3 + $0x20] sm:$0xf]
      %v1302 = vld [vmem:[%s3 + $0x24] sm:$0xf]
      %v1303 = vld [vmem:[%s3 + $0x28] sm:$0xf]
      %v1304 = vld [vmem:[%s3 + $0x2c] sm:$0xf]
      %v1305 = vld [vmem:[%s3 + $0x30] sm:$0xf]
      %v1306 = vld [vmem:[%s3 + $0x34] sm:$0xf]
      %v1307 = vld [vmem:[#allocation2 + $0x60] sm:$0xff]
      %s1308 = scalar_lea.vmem %s3, 56
      %v1309 = vld [vmem:[%s1308] sm:$0xf]
      %v1310 = vld [vmem:[%s1308 + $0x4] sm:$0xf]
      %v1311 = vld [vmem:[%s1308 + $0x8] sm:$0xf]
      %v1312 = vld [vmem:[%s1308 + $0xc] sm:$0xf]
      %v1313 = vld [vmem:[%s1308 + $0x10] sm:$0xf]
      %v1314 = vld [vmem:[%s1308 + $0x14] sm:$0xf]
      %v1315 = vld [vmem:[%s1308 + $0x18] sm:$0xf]
      %v1316 = vld [vmem:[%s1308 + $0x1c] sm:$0xf]
      %v1317 = vld [vmem:[%s1308 + $0x20] sm:$0xf]
      %v1318 = vld [vmem:[%s1308 + $0x24] sm:$0xf]
      %v1319 = vld [vmem:[%s1308 + $0x28] sm:$0xf]
      %v1320 = vld [vmem:[%s1308 + $0x2c] sm:$0xf]
      %v1321 = vld [vmem:[%s1308 + $0x30] sm:$0xf]
      %v1322 = vld [vmem:[%s1308 + $0x34] sm:$0xf]
      %v1337 = vunpack.c.l.b16 %v1309
      %v1338 = vunpack.c.l.b16 %v1310
      %v1339 = vunpack.c.l.b16 %v1311
      %v1340 = vunpack.c.l.b16 %v1312
      %v1341 = vunpack.c.l.b16 %v1313
      %v1342 = vunpack.c.l.b16 %v1314
      %v1343 = vunpack.c.l.b16 %v1315
      %v1344 = vunpack.c.l.b16 %v1316
      %v1345 = vunpack.c.l.b16 %v1317
      %v1346 = vunpack.c.l.b16 %v1318
      %v1347 = vunpack.c.l.b16 %v1319
      %v1348 = vunpack.c.l.b16 %v1320
      %v1349 = vunpack.c.l.b16 %v1321
      %v1350 = vunpack.c.l.b16 %v1322
      %v1351 = vpack.c.b16 %v1338, %v1337
      %v1352 = vpack.c.b16 %v1340, %v1339
      %v1353 = vpack.c.b16 %v1342, %v1341
      %v1354 = vpack.c.b16 %v1344, %v1343
      %v1355 = vpack.c.b16 %v1346, %v1345
      %v1356 = vpack.c.b16 %v1348, %v1347
      %v1357 = vpack.c.b16 %v1350, %v1349
      %v1366 = vsel %vm1266, %v1282, 0
      %v1369 = vsel %vm1266, %v1283, 0
      %v1372 = vsel %vm1266, %v1284, 0
      %v1375 = vsel %vm1266, %v1285, 0
      %v1378 = vsel %vm1266, %v1286, 0
      %v1381 = vsel %vm1266, %v1287, 0
      %v1384 = vsel %vm1266, %v1288, 0
      %v1387 = vsel %vm1266, %v1289, 0
      %v1390 = vsel %vm1266, %v1290, 0
      %v1393 = vsel %vm1266, %v1291, 0
      %v1396 = vsel %vm1266, %v1292, 0
      %v1399 = vsel %vm1266, %v1307, 0
      %1401 = vmatprep.subr.bf16.mxu0 0
      %1402 = vmatpush1.bf16.msra.mxu0 %v1351
      %1403 = vmatprep.subr.bf16.mxu0 0
      %1404 = vmatpush1.bf16.msra.mxu0 %v1352
      %1405 = vmatprep.subr.bf16.mxu0 0
      %1406 = vmatpush1.bf16.msra.mxu0 %v1353
      %1407 = vmatprep.subr.bf16.mxu0 0
      %1408 = vmatpush1.bf16.msra.mxu0 %v1354
      %1409 = vmatprep.subr.bf16.mxu0 0
      %1410 = vmatpush1.bf16.msra.mxu0 %v1355
      %1411 = vmatprep.subr.bf16.mxu0 0
      %1412 = vmatpush1.bf16.msra.mxu0 %v1356
      %1413 = vmatprep.subr.bf16.mxu0 0
      %1414 = vmatpush1.bf16.msra.mxu0 %v1357
      %1415 = vmatprep.subr.bf16.mxu0 0
      %1416 = vmatpush1.bf16.msra.mxu0 0
      %1417 = vmatprep.subr.bf16.mxu0 0
      %1418 = vmatpush1.bf16.msra.mxu0 0
      %1419 = vmatprep.subr.bf16.mxu0 0
      %1420 = vmatpush1.bf16.msra.mxu0 0
      %1421 = vmatprep.subr.bf16.mxu0 0
      %1422 = vmatpush1.bf16.msra.mxu0 0
      %1423 = vmatprep.subr.bf16.mxu0 0
      %1424 = vmatpush1.bf16.msra.mxu0 0
      %1425 = vmatprep.subr.bf16.mxu0 0
      %1426 = vmatpush1.bf16.msra.mxu0 0
      %1427 = vmatprep.subr.bf16.mxu0 0
      %1428 = vmatpush1.bf16.msra.mxu0 0
      %1429 = vmatprep.subr.bf16.mxu0 0
      %1430 = vmatpush1.bf16.msra.mxu0 0
      %1431 = vmatprep.subr.bf16.mxu0 0
      %1432 = vmatpush1.bf16.msra.mxu0 0
      %1433 = vmatprep.mubr.bf16.mxu0 0
      %1434 = vmatmul.mubr.bf16.gmra.mrb[0].mxu0 %v1366
      %v1435 = vpop.f32.mrb[0].mxu0
      %v1436 = vadd.f32 0.0, %v1435
      %v1437 = vpop.f32.mrb[0].mxu0
      %v1438 = vpop.f32.mrb[0].mxu0
      %v1439 = vadd.f32 0.0, %v1438
      %v1440 = vpop.f32.mrb[0].mxu0
      %1441 = vmatprep.mubr.bf16.mxu0 0
      %1442 = vmatmul.mubr.bf16.gmra.mrb[0].mxu0 %v1369
      %v1443 = vpop.f32.mrb[0].mxu0
      %v1444 = vadd.f32 0.0, %v1443
      %v1445 = vpop.f32.mrb[0].mxu0
      %v1446 = vpop.f32.mrb[0].mxu0
      %v1447 = vadd.f32 0.0, %v1446
      %v1448 = vpop.f32.mrb[0].mxu0
      %1449 = vmatprep.mubr.bf16.mxu0 0
      %1450 = vmatmul.mubr.bf16.gmra.mrb[0].mxu0 %v1372
      %v1451 = vpop.f32.mrb[0].mxu0
      %v1452 = vadd.f32 0.0, %v1451
      %v1453 = vpop.f32.mrb[0].mxu0
      %v1454 = vpop.f32.mrb[0].mxu0
      %v1455 = vadd.f32 0.0, %v1454
      %v1456 = vpop.f32.mrb[0].mxu0
      %1457 = vmatprep.mubr.bf16.mxu0 0
      %1458 = vmatmul.mubr.bf16.gmra.mrb[0].mxu0 %v1375
      %v1459 = vpop.f32.mrb[0].mxu0
      %v1460 = vadd.f32 0.0, %v1459
      %v1461 = vpop.f32.mrb[0].mxu0
      %v1462 = vpop.f32.mrb[0].mxu0
      %v1463 = vadd.f32 0.0, %v1462
      %v1464 = vpop.f32.mrb[0].mxu0
      %1465 = vmatprep.mubr.bf16.mxu0 0
      %1466 = vmatmul.mubr.bf16.gmra.mrb[0].mxu0 %v1378
      %v1467 = vpop.f32.mrb[0].mxu0
      %v1468 = vadd.f32 0.0, %v1467
      %v1469 = vpop.f32.mrb[0].mxu0
      %v1470 = vpop.f32.mrb[0].mxu0
      %v1471 = vadd.f32 0.0, %v1470
      %v1472 = vpop.f32.mrb[0].mxu0
      %1473 = vmatprep.mubr.bf16.mxu0 0
      %1474 = vmatmul.mubr.bf16.gmra.mrb[0].mxu0 %v1381
      %v1475 = vpop.f32.mrb[0].mxu0
      %v1476 = vadd.f32 0.0, %v1475
      %v1477 = vpop.f32.mrb[0].mxu0
      %v1478 = vpop.f32.mrb[0].mxu0
      %v1479 = vadd.f32 0.0, %v1478
      %v1480 = vpop.f32.mrb[0].mxu0
      %1481 = vmatprep.mubr.bf16.mxu0 0
      %1482 = vmatmul.mubr.bf16.gmra.mrb[0].mxu0 %v1384
      %v1483 = vpop.f32.mrb[0].mxu0
      %v1484 = vadd.f32 0.0, %v1483
      %v1485 = vpop.f32.mrb[0].mxu0
      %v1486 = vpop.f32.mrb[0].mxu0
      %v1487 = vadd.f32 0.0, %v1486
      %v1488 = vpop.f32.mrb[0].mxu0
      %1489 = vmatprep.mubr.bf16.mxu0 0
      %1490 = vmatmul.mubr.bf16.gmra.mrb[0].mxu0 %v1387
      %v1491 = vpop.f32.mrb[0].mxu0
      %v1492 = vadd.f32 0.0, %v1491
      %v1493 = vpop.f32.mrb[0].mxu0
      %v1494 = vpop.f32.mrb[0].mxu0
      %v1495 = vadd.f32 0.0, %v1494
      %v1496 = vpop.f32.mrb[0].mxu0
      %1497 = vmatprep.mubr.bf16.mxu0 0
      %1498 = vmatmul.mubr.bf16.gmra.mrb[0].mxu0 %v1390
      %v1499 = vpop.f32.mrb[0].mxu0
      %v1500 = vadd.f32 0.0, %v1499
      %v1501 = vpop.f32.mrb[0].mxu0
      %v1502 = vpop.f32.mrb[0].mxu0
      %v1503 = vadd.f32 0.0, %v1502
      %v1504 = vpop.f32.mrb[0].mxu0
      %1505 = vmatprep.mubr.bf16.mxu0 0
      %1506 = vmatmul.mubr.bf16.gmra.mrb[0].mxu0 %v1393
      %v1507 = vpop.f32.mrb[0].mxu0
      %v1508 = vadd.f32 0.0, %v1507
      %v1509 = vpop.f32.mrb[0].mxu0
      %v1510 = vpop.f32.mrb[0].mxu0
      %v1511 = vadd.f32 0.0, %v1510
      %v1512 = vpop.f32.mrb[0].mxu0
      %1513 = vmatprep.mubr.bf16.mxu0 0
      %1514 = vmatmul.mubr.bf16.gmra.mrb[0].mxu0 %v1396
      %v1515 = vpop.f32.mrb[0].mxu0
      %v1516 = vadd.f32 0.0, %v1515
      %v1517 = vpop.f32.mrb[0].mxu0
      %v1518 = vpop.f32.mrb[0].mxu0
      %v1519 = vadd.f32 0.0, %v1518
      %v1520 = vpop.f32.mrb[0].mxu0
      %1521 = vmatprep.mubr.bf16.mxu0 0
      %1522 = vmatmul.mubr.bf16.gmra.mrb[0].mxu0 %v1399
      %v1523 = vpop.f32.mrb[0].mxu0
      %v1524 = vadd.f32 0.0, %v1523
      %v1525 = vpop.f32.mrb[0].mxu0
      %v1526 = vpop.f32.mrb[0].mxu0
      %v1527 = vadd.f32 0.0, %v1526
      %v1528 = vpop.f32.mrb[0].mxu0
      %1529 = vdwg.mxu0
      %v1544 = vunpack.c.l.b16 %v1293
      %v1545 = vunpack.c.l.b16 %v1294
      %v1546 = vunpack.c.l.b16 %v1295
      %v1547 = vunpack.c.l.b16 %v1296
      %v1548 = vunpack.c.l.b16 %v1297
      %v1549 = vunpack.c.l.b16 %v1298
      %v1550 = vunpack.c.l.b16 %v1299
      %v1551 = vunpack.c.l.b16 %v1300
      %v1552 = vunpack.c.l.b16 %v1301
      %v1553 = vunpack.c.l.b16 %v1302
      %v1554 = vunpack.c.l.b16 %v1303
      %v1555 = vunpack.c.l.b16 %v1304
      %v1556 = vunpack.c.l.b16 %v1305
      %v1557 = vunpack.c.l.b16 %v1306
      %v1558 = vpack.c.b16 %v1545, %v1544
      %v1559 = vpack.c.b16 %v1547, %v1546
      %v1560 = vpack.c.b16 %v1549, %v1548
      %v1561 = vpack.c.b16 %v1551, %v1550
      %v1562 = vpack.c.b16 %v1553, %v1552
      %v1563 = vpack.c.b16 %v1555, %v1554
      %v1564 = vpack.c.b16 %v1557, %v1556
      %v1573 = vsel %vm1266, %v1281, 0
      %1575 = vmatprep.subr.bf16.mxu0 0
      %1576 = vmatpush1.bf16.msra.mxu0 %v1558
      %1577 = vmatprep.subr.bf16.mxu0 0
      %1578 = vmatpush1.bf16.msra.mxu0 %v1559
      %1579 = vmatprep.subr.bf16.mxu0 0
      %1580 = vmatpush1.bf16.msra.mxu0 %v1560
      %1581 = vmatprep.subr.bf16.mxu0 0
      %1582 = vmatpush1.bf16.msra.mxu0 %v1561
      %1583 = vmatprep.subr.bf16.mxu0 0
      %1584 = vmatpush1.bf16.msra.mxu0 %v1562
      %1585 = vmatprep.subr.bf16.mxu0 0
      %1586 = vmatpush1.bf16.msra.mxu0 %v1563
      %1587 = vmatprep.subr.bf16.mxu0 0
      %1588 = vmatpush1.bf16.msra.mxu0 %v1564
      %1589 = vmatprep.subr.bf16.mxu0 0
      %1590 = vmatpush1.bf16.msra.mxu0 0
      %1591 = vmatprep.subr.bf16.mxu0 0
      %1592 = vmatpush1.bf16.msra.mxu0 0
      %1593 = vmatprep.subr.bf16.mxu0 0
      %1594 = vmatpush1.bf16.msra.mxu0 0
      %1595 = vmatprep.subr.bf16.mxu0 0
      %1596 = vmatpush1.bf16.msra.mxu0 0
      %1597 = vmatprep.subr.bf16.mxu0 0
      %1598 = vmatpush1.bf16.msra.mxu0 0
      %1599 = vmatprep.subr.bf16.mxu0 0
      %1600 = vmatpush1.bf16.msra.mxu0 0
      %1601 = vmatprep.subr.bf16.mxu0 0
      %1602 = vmatpush1.bf16.msra.mxu0 0
      %1603 = vmatprep.subr.bf16.mxu0 0
      %1604 = vmatpush1.bf16.msra.mxu0 0
      %1605 = vmatprep.subr.bf16.mxu0 0
      %1606 = vmatpush1.bf16.msra.mxu0 0
      %1607 = vmatprep.mubr.bf16.mxu0 0
      %1608 = vmatmul.mubr.bf16.gmra.mrb[0].mxu0 %v1573
      %v1609 = vpop.f32.mrb[0].mxu0
      %v1610 = vadd.f32 %v1436, %v1609
      %v1611 = vpop.f32.mrb[0].mxu0
      %v1612 = vpop.f32.mrb[0].mxu0
      %v1613 = vadd.f32 %v1439, %v1612
      %v1614 = vpop.f32.mrb[0].mxu0
      %1615 = vmatprep.mubr.bf16.mxu0 0
      %1616 = vmatmul.mubr.bf16.gmra.mrb[0].mxu0 %v1366
      %v1617 = vpop.f32.mrb[0].mxu0
      %v1618 = vadd.f32 %v1444, %v1617
      %v1619 = vpop.f32.mrb[0].mxu0
      %v1620 = vpop.f32.mrb[0].mxu0
      %v1621 = vadd.f32 %v1447, %v1620
      %v1622 = vpop.f32.mrb[0].mxu0
      %1623 = vmatprep.mubr.bf16.mxu0 0
      %1624 = vmatmul.mubr.bf16.gmra.mrb[0].mxu0 %v1369
      %v1625 = vpop.f32.mrb[0].mxu0
      %v1626 = vadd.f32 %v1452, %v1625
      %v1627 = vpop.f32.mrb[0].mxu0
      %v1628 = vpop.f32.mrb[0].mxu0
      %v1629 = vadd.f32 %v1455, %v1628
      %v1630 = vpop.f32.mrb[0].mxu0
      %1631 = vmatprep.mubr.bf16.mxu0 0
      %1632 = vmatmul.mubr.bf16.gmra.mrb[0].mxu0 %v1372
      %v1633 = vpop.f32.mrb[0].mxu0
      %v1634 = vadd.f32 %v1460, %v1633
      %v1635 = vpop.f32.mrb[0].mxu0
      %v1636 = vpop.f32.mrb[0].mxu0
      %v1637 = vadd.f32 %v1463, %v1636
      %v1638 = vpop.f32.mrb[0].mxu0
      %1639 = vmatprep.mubr.bf16.mxu0 0
      %1640 = vmatmul.mubr.bf16.gmra.mrb[0].mxu0 %v1375
      %v1641 = vpop.f32.mrb[0].mxu0
      %v1642 = vadd.f32 %v1468, %v1641
      %v1643 = vpop.f32.mrb[0].mxu0
      %v1644 = vpop.f32.mrb[0].mxu0
      %v1645 = vadd.f32 %v1471, %v1644
      %v1646 = vpop.f32.mrb[0].mxu0
      %1647 = vmatprep.mubr.bf16.mxu0 0
      %1648 = vmatmul.mubr.bf16.gmra.mrb[0].mxu0 %v1378
      %v1649 = vpop.f32.mrb[0].mxu0
      %v1650 = vadd.f32 %v1476, %v1649
      %v1651 = vpop.f32.mrb[0].mxu0
      %v1652 = vpop.f32.mrb[0].mxu0
      %v1653 = vadd.f32 %v1479, %v1652
      %v1654 = vpop.f32.mrb[0].mxu0
      %1655 = vmatprep.mubr.bf16.mxu0 0
      %1656 = vmatmul.mubr.bf16.gmra.mrb[0].mxu0 %v1381
      %v1657 = vpop.f32.mrb[0].mxu0
      %v1658 = vadd.f32 %v1484, %v1657
      %v1659 = vpop.f32.mrb[0].mxu0
      %v1660 = vpop.f32.mrb[0].mxu0
      %v1661 = vadd.f32 %v1487, %v1660
      %v1662 = vpop.f32.mrb[0].mxu0
      %1663 = vmatprep.mubr.bf16.mxu0 0
      %1664 = vmatmul.mubr.bf16.gmra.mrb[0].mxu0 %v1384
      %v1665 = vpop.f32.mrb[0].mxu0
      %v1666 = vadd.f32 %v1492, %v1665
      %v1667 = vpop.f32.mrb[0].mxu0
      %v1668 = vpop.f32.mrb[0].mxu0
      %v1669 = vadd.f32 %v1495, %v1668
      %v1670 = vpop.f32.mrb[0].mxu0
      %1671 = vmatprep.mubr.bf16.mxu0 0
      %1672 = vmatmul.mubr.bf16.gmra.mrb[0].mxu0 %v1387
      %v1673 = vpop.f32.mrb[0].mxu0
      %v1674 = vadd.f32 %v1500, %v1673
      %v1675 = vpop.f32.mrb[0].mxu0
      %v1676 = vpop.f32.mrb[0].mxu0
      %v1677 = vadd.f32 %v1503, %v1676
      %v1678 = vpop.f32.mrb[0].mxu0
      %1679 = vmatprep.mubr.bf16.mxu0 0
      %1680 = vmatmul.mubr.bf16.gmra.mrb[0].mxu0 %v1390
      %v1681 = vpop.f32.mrb[0].mxu0
      %v1682 = vadd.f32 %v1508, %v1681
      %v1683 = vpop.f32.mrb[0].mxu0
      %v1684 = vpop.f32.mrb[0].mxu0
      %v1685 = vadd.f32 %v1511, %v1684
      %v1686 = vpop.f32.mrb[0].mxu0
      %1687 = vmatprep.mubr.bf16.mxu0 0
      %1688 = vmatmul.mubr.bf16.gmra.mrb[0].mxu0 %v1393
      %v1689 = vpop.f32.mrb[0].mxu0
      %v1690 = vadd.f32 %v1516, %v1689
      %v1691 = vpop.f32.mrb[0].mxu0
      %v1692 = vpop.f32.mrb[0].mxu0
      %v1693 = vadd.f32 %v1519, %v1692
      %v1694 = vpop.f32.mrb[0].mxu0
      %1695 = vmatprep.mubr.bf16.mxu0 0
      %1696 = vmatmul.mubr.bf16.gmra.mrb[0].mxu0 %v1396
      %v1697 = vpop.f32.mrb[0].mxu0
      %v1698 = vadd.f32 %v1524, %v1697
      %v1699 = vpop.f32.mrb[0].mxu0
      %v1700 = vpop.f32.mrb[0].mxu0
      %v1701 = vadd.f32 %v1527, %v1700
      %v1702 = vpop.f32.mrb[0].mxu0
      %1703 = vdwg.mxu0
      %v1704 = vld [vmem:[#allocation2 + $0x10] sm:$0xff]
      %v1705 = vld [vmem:[#allocation2 + $0x18] sm:$0xff]
      %v1706 = vld [vmem:[#allocation2 + $0x20] sm:$0xff]
      %v1707 = vld [vmem:[#allocation2 + $0x28] sm:$0xff]
      %v1708 = vld [vmem:[#allocation2 + $0x30] sm:$0xff]
      %v1709 = vld [vmem:[#allocation2 + $0x38] sm:$0xff]
      %v1710 = vld [vmem:[#allocation2 + $0x40] sm:$0xff]
      %v1711 = vld [vmem:[#allocation2 + $0x48] sm:$0xff]
      %v1712 = vld [vmem:[#allocation2 + $0x50] sm:$0xff]
      %v1713 = vld [vmem:[#allocation2 + $0x58] sm:$0xff]
      %v1714 = vld [vmem:[#allocation2 + $0x60] sm:$0xff]
      %v1715 = vld [vmem:[#allocation2 + $0x68] sm:$0xff]
      %s1716 = scalar_lea.vmem %s3, 112
      %v1717 = vld [vmem:[%s1716] sm:$0xf]
      %v1718 = vld [vmem:[%s1716 + $0x4] sm:$0xf]
      %v1719 = vld [vmem:[%s1716 + $0x8] sm:$0xf]
      %v1720 = vld [vmem:[%s1716 + $0xc] sm:$0xf]
      %v1721 = vld [vmem:[%s1716 + $0x10] sm:$0xf]
      %v1722 = vld [vmem:[%s1716 + $0x14] sm:$0xf]
      %v1723 = vld [vmem:[%s1716 + $0x18] sm:$0xf]
      %v1724 = vld [vmem:[%s1716 + $0x1c] sm:$0xf]
      %v1725 = vld [vmem:[%s1716 + $0x20] sm:$0xf]
      %v1726 = vld [vmem:[%s1716 + $0x24] sm:$0xf]
      %v1727 = vld [vmem:[%s1716 + $0x28] sm:$0xf]
      %v1728 = vld [vmem:[%s1716 + $0x2c] sm:$0xf]
      %v1729 = vld [vmem:[%s1716 + $0x30] sm:$0xf]
      %v1730 = vld [vmem:[%s1716 + $0x34] sm:$0xf]
      %v1745 = vunpack.c.l.b16 %v1717
      %v1746 = vunpack.c.l.b16 %v1718
      %v1747 = vunpack.c.l.b16 %v1719
      %v1748 = vunpack.c.l.b16 %v1720
      %v1749 = vunpack.c.l.b16 %v1721
      %v1750 = vunpack.c.l.b16 %v1722
      %v1751 = vunpack.c.l.b16 %v1723
      %v1752 = vunpack.c.l.b16 %v1724
      %v1753 = vunpack.c.l.b16 %v1725
      %v1754 = vunpack.c.l.b16 %v1726
      %v1755 = vunpack.c.l.b16 %v1727
      %v1756 = vunpack.c.l.b16 %v1728
      %v1757 = vunpack.c.l.b16 %v1729
      %v1758 = vunpack.c.l.b16 %v1730
      %v1759 = vpack.c.b16 %v1746, %v1745
      %v1760 = vpack.c.b16 %v1748, %v1747
      %v1761 = vpack.c.b16 %v1750, %v1749
      %v1762 = vpack.c.b16 %v1752, %v1751
      %v1763 = vpack.c.b16 %v1754, %v1753
      %v1764 = vpack.c.b16 %v1756, %v1755
      %v1765 = vpack.c.b16 %v1758, %v1757
      %v1774 = vsel %vm1266, %v1704, 0
      %v1777 = vsel %vm1266, %v1705, 0
      %v1780 = vsel %vm1266, %v1706, 0
      %v1783 = vsel %vm1266, %v1707, 0
      %v1786 = vsel %vm1266, %v1708, 0
      %v1789 = vsel %vm1266, %v1709, 0
      %v1792 = vsel %vm1266, %v1710, 0
      %v1795 = vsel %vm1266, %v1711, 0
      %v1798 = vsel %vm1266, %v1712, 0
      %v1801 = vsel %vm1266, %v1713, 0
      %v1804 = vsel %vm1266, %v1714, 0
      %v1807 = vsel %vm1266, %v1715, 0
      %1809 = vmatprep.subr.bf16.mxu0 0
      %1810 = vmatpush1.bf16.msra.mxu0 %v1759
      %1811 = vmatprep.subr.bf16.mxu0 0
      %1812 = vmatpush1.bf16.msra.mxu0 %v1760
      %1813 = vmatprep.subr.bf16.mxu0 0
      %1814 = vmatpush1.bf16.msra.mxu0 %v1761
      %1815 = vmatprep.subr.bf16.mxu0 0
      %1816 = vmatpush1.bf16.msra.mxu0 %v1762
      %1817 = vmatprep.subr.bf16.mxu0 0
      %1818 = vmatpush1.bf16.msra.mxu0 %v1763
      %1819 = vmatprep.subr.bf16.mxu0 0
      %1820 = vmatpush1.bf16.msra.mxu0 %v1764
      %1821 = vmatprep.subr.bf16.mxu0 0
      %1822 = vmatpush1.bf16.msra.mxu0 %v1765
      %1823 = vmatprep.subr.bf16.mxu0 0
      %1824 = vmatpush1.bf16.msra.mxu0 0
      %1825 = vmatprep.subr.bf16.mxu0 0
      %1826 = vmatpush1.bf16.msra.mxu0 0
      %1827 = vmatprep.subr.bf16.mxu0 0
      %1828 = vmatpush1.bf16.msra.mxu0 0
      %1829 = vmatprep.subr.bf16.mxu0 0
      %1830 = vmatpush1.bf16.msra.mxu0 0
      %1831 = vmatprep.subr.bf16.mxu0 0
      %1832 = vmatpush1.bf16.msra.mxu0 0
      %1833 = vmatprep.subr.bf16.mxu0 0
      %1834 = vmatpush1.bf16.msra.mxu0 0
      %1835 = vmatprep.subr.bf16.mxu0 0
      %1836 = vmatpush1.bf16.msra.mxu0 0
      %1837 = vmatprep.subr.bf16.mxu0 0
      %1838 = vmatpush1.bf16.msra.mxu0 0
      %1839 = vmatprep.subr.bf16.mxu0 0
      %1840 = vmatpush1.bf16.msra.mxu0 0
      %1841 = vmatprep.mubr.bf16.mxu0 0
      %1842 = vmatmul.mubr.bf16.gmra.mrb[0].mxu0 %v1774
      %v1843 = vpop.f32.mrb[0].mxu0
      %v1844 = vadd.f32 0.0, %v1843
      %v1845 = vpop.f32.mrb[0].mxu0
      %v1846 = vpop.f32.mrb[0].mxu0
      %v1847 = vadd.f32 0.0, %v1846
      %v1848 = vpop.f32.mrb[0].mxu0
      %1849 = vmatprep.mubr.bf16.mxu0 0
      %1850 = vmatmul.mubr.bf16.gmra.mrb[0].mxu0 %v1777
      %v1851 = vpop.f32.mrb[0].mxu0
      %v1852 = vadd.f32 0.0, %v1851
      %v1853 = vpop.f32.mrb[0].mxu0
      %v1854 = vpop.f32.mrb[0].mxu0
      %v1855 = vadd.f32 0.0, %v1854
      %v1856 = vpop.f32.mrb[0].mxu0
      %1857 = vmatprep.mubr.bf16.mxu0 0
      %1858 = vmatmul.mubr.bf16.gmra.mrb[0].mxu0 %v1780
      %v1859 = vpop.f32.mrb[0].mxu0
      %v1860 = vadd.f32 0.0, %v1859
      %v1861 = vpop.f32.mrb[0].mxu0
      %v1862 = vpop.f32.mrb[0].mxu0
      %v1863 = vadd.f32 0.0, %v1862
      %v1864 = vpop.f32.mrb[0].mxu0
      %1865 = vmatprep.mubr.bf16.mxu0 0
      %1866 = vmatmul.mubr.bf16.gmra.mrb[0].mxu0 %v1783
      %v1867 = vpop.f32.mrb[0].mxu0
      %v1868 = vadd.f32 0.0, %v1867
      %v1869 = vpop.f32.mrb[0].mxu0
      %v1870 = vpop.f32.mrb[0].mxu0
      %v1871 = vadd.f32 0.0, %v1870
      %v1872 = vpop.f32.mrb[0].mxu0
      %1873 = vmatprep.mubr.bf16.mxu0 0
      %1874 = vmatmul.mubr.bf16.gmra.mrb[0].mxu0 %v1786
      %v1875 = vpop.f32.mrb[0].mxu0
      %v1876 = vadd.f32 0.0, %v1875
      %v1877 = vpop.f32.mrb[0].mxu0
      %v1878 = vpop.f32.mrb[0].mxu0
      %v1879 = vadd.f32 0.0, %v1878
      %v1880 = vpop.f32.mrb[0].mxu0
      %1881 = vmatprep.mubr.bf16.mxu0 0
      %1882 = vmatmul.mubr.bf16.gmra.mrb[0].mxu0 %v1789
      %v1883 = vpop.f32.mrb[0].mxu0
      %v1884 = vadd.f32 0.0, %v1883
      %v1885 = vpop.f32.mrb[0].mxu0
      %v1886 = vpop.f32.mrb[0].mxu0
      %v1887 = vadd.f32 0.0, %v1886
      %v1888 = vpop.f32.mrb[0].mxu0
      %1889 = vmatprep.mubr.bf16.mxu0 0
      %1890 = vmatmul.mubr.bf16.gmra.mrb[0].mxu0 %v1792
      %v1891 = vpop.f32.mrb[0].mxu0
      %v1892 = vadd.f32 0.0, %v1891
      %v1893 = vpop.f32.mrb[0].mxu0
      %v1894 = vpop.f32.mrb[0].mxu0
      %v1895 = vadd.f32 0.0, %v1894
      %v1896 = vpop.f32.mrb[0].mxu0
      %1897 = vmatprep.mubr.bf16.mxu0 0
      %1898 = vmatmul.mubr.bf16.gmra.mrb[0].mxu0 %v1795
      %v1899 = vpop.f32.mrb[0].mxu0
      %v1900 = vadd.f32 0.0, %v1899
      %v1901 = vpop.f32.mrb[0].mxu0
      %v1902 = vpop.f32.mrb[0].mxu0
      %v1903 = vadd.f32 0.0, %v1902
      %v1904 = vpop.f32.mrb[0].mxu0
      %1905 = vmatprep.mubr.bf16.mxu0 0
      %1906 = vmatmul.mubr.bf16.gmra.mrb[0].mxu0 %v1798
      %v1907 = vpop.f32.mrb[0].mxu0
      %v1908 = vadd.f32 0.0, %v1907
      %v1909 = vpop.f32.mrb[0].mxu0
      %v1910 = vpop.f32.mrb[0].mxu0
      %v1911 = vadd.f32 0.0, %v1910
      %v1912 = vpop.f32.mrb[0].mxu0
      %1913 = vmatprep.mubr.bf16.mxu0 0
      %1914 = vmatmul.mubr.bf16.gmra.mrb[0].mxu0 %v1801
      %v1915 = vpop.f32.mrb[0].mxu0
      %v1916 = vadd.f32 0.0, %v1915
      %v1917 = vpop.f32.mrb[0].mxu0
      %v1918 = vpop.f32.mrb[0].mxu0
      %v1919 = vadd.f32 0.0, %v1918
      %v1920 = vpop.f32.mrb[0].mxu0
      %1921 = vmatprep.mubr.bf16.mxu0 0
      %1922 = vmatmul.mubr.bf16.gmra.mrb[0].mxu0 %v1804
      %v1923 = vpop.f32.mrb[0].mxu0
      %v1924 = vadd.f32 0.0, %v1923
      %v1925 = vpop.f32.mrb[0].mxu0
      %v1926 = vpop.f32.mrb[0].mxu0
      %v1927 = vadd.f32 0.0, %v1926
      %v1928 = vpop.f32.mrb[0].mxu0
      %1929 = vmatprep.mubr.bf16.mxu0 0
      %1930 = vmatmul.mubr.bf16.gmra.mrb[0].mxu0 %v1807
      %v1931 = vpop.f32.mrb[0].mxu0
      %v1932 = vadd.f32 0.0, %v1931
      %v1933 = vpop.f32.mrb[0].mxu0
      %v1934 = vpop.f32.mrb[0].mxu0
      %v1935 = vadd.f32 0.0, %v1934
      %v1936 = vpop.f32.mrb[0].mxu0
      %1937 = vdwg.mxu0
      %v1938 = vadd.f32 %v1610, %v1844
      %v1939 = vadd.f32 %v1613, %v1847
      %v1940 = vadd.f32 %v1618, %v1852
      %v1941 = vadd.f32 %v1621, %v1855
      %v1942 = vadd.f32 %v1626, %v1860
      %v1943 = vadd.f32 %v1629, %v1863
      %v1944 = vadd.f32 %v1634, %v1868
      %v1945 = vadd.f32 %v1637, %v1871
      %v1946 = vadd.f32 %v1642, %v1876
      %v1947 = vadd.f32 %v1645, %v1879
      %v1948 = vadd.f32 %v1650, %v1884
      %v1949 = vadd.f32 %v1653, %v1887
      %v1950 = vadd.f32 %v1658, %v1892
      %v1951 = vadd.f32 %v1661, %v1895
      %v1952 = vadd.f32 %v1666, %v1900
      %v1953 = vadd.f32 %v1669, %v1903
      %v1954 = vadd.f32 %v1674, %v1908
      %v1955 = vadd.f32 %v1677, %v1911
      %v1956 = vadd.f32 %v1682, %v1916
      %v1957 = vadd.f32 %v1685, %v1919
      %v1958 = vadd.f32 %v1690, %v1924
      %v1959 = vadd.f32 %v1693, %v1927
      %v1960 = vadd.f32 %v1698, %v1932
      %v1961 = vadd.f32 %v1701, %v1935
      %v1962 = vld [vmem:[%s4] sm:$0x1]
      %v1964 = vlaneseq
      %v1965 = vshrl.u32 %v1964, 7
      %v1966 = vsub.s32 0, %v1965
      %v1967 = vrot.slane %v1962, %v1966
      %v1969 = vadd.f32 %v1938, %v1967
      %v1970 = vadd.f32 %v1939, %v1967
      %v1971 = vadd.f32 %v1940, %v1967
      %v1972 = vadd.f32 %v1941, %v1967
      %v1973 = vadd.f32 %v1942, %v1967
      %v1974 = vadd.f32 %v1943, %v1967
      %v1975 = vadd.f32 %v1944, %v1967
      %v1976 = vadd.f32 %v1945, %v1967
      %v1977 = vadd.f32 %v1946, %v1967
      %v1978 = vadd.f32 %v1947, %v1967
      %v1979 = vadd.f32 %v1948, %v1967
      %v1980 = vadd.f32 %v1949, %v1967
      %v1981 = vadd.f32 %v1950, %v1967
      %v1982 = vadd.f32 %v1951, %v1967
      %v1983 = vadd.f32 %v1952, %v1967
      %v1984 = vadd.f32 %v1953, %v1967
      %v1985 = vadd.f32 %v1954, %v1967
      %v1986 = vadd.f32 %v1955, %v1967
      %v1987 = vadd.f32 %v1956, %v1967
      %v1988 = vadd.f32 %v1957, %v1967
      %v1989 = vadd.f32 %v1958, %v1967
      %v1990 = vadd.f32 %v1959, %v1967
      %v1991 = vadd.f32 %v1960, %v1967
      %v1992 = vadd.f32 %v1961, %v1967
      %v1993 = vmax.f32 %v1969, 0.0
      %v1994 = vmax.f32 %v1970, 0.0
      %v1995 = vmax.f32 %v1971, 0.0
      %v1996 = vmax.f32 %v1972, 0.0
      %v1997 = vmax.f32 %v1973, 0.0
      %v1998 = vmax.f32 %v1974, 0.0
      %v1999 = vmax.f32 %v1975, 0.0
      %v2000 = vmax.f32 %v1976, 0.0
      %v2001 = vmax.f32 %v1977, 0.0
      %v2002 = vmax.f32 %v1978, 0.0
      %v2003 = vmax.f32 %v1979, 0.0
      %v2004 = vmax.f32 %v1980, 0.0
      %v2005 = vmax.f32 %v1981, 0.0
      %v2006 = vmax.f32 %v1982, 0.0
      %v2007 = vmax.f32 %v1983, 0.0
      %v2008 = vmax.f32 %v1984, 0.0
      %v2009 = vmax.f32 %v1985, 0.0
      %v2010 = vmax.f32 %v1986, 0.0
      %v2011 = vmax.f32 %v1987, 0.0
      %v2012 = vmax.f32 %v1988, 0.0
      %v2013 = vmax.f32 %v1989, 0.0
      %v2014 = vmax.f32 %v1990, 0.0
      %v2015 = vmax.f32 %v1991, 0.0
      %v2016 = vmax.f32 %v1992, 0.0
      %v2017 = vpack.c.bf16 %v1994, %v1993
      %v2018 = vpack.c.bf16 %v1996, %v1995
      %v2019 = vpack.c.bf16 %v1998, %v1997
      %v2020 = vpack.c.bf16 %v2000, %v1999
      %v2021 = vpack.c.bf16 %v2002, %v2001
      %v2022 = vpack.c.bf16 %v2004, %v2003
      %v2023 = vpack.c.bf16 %v2006, %v2005
      %v2024 = vpack.c.bf16 %v2008, %v2007
      %v2025 = vpack.c.bf16 %v2010, %v2009
      %v2026 = vpack.c.bf16 %v2012, %v2011
      %v2027 = vpack.c.bf16 %v2014, %v2013
      %v2028 = vpack.c.bf16 %v2016, %v2015
      %vm2029 = vcmask 785408
      %2030 = vst.msk [vmem:[#allocation3] sm:$0xff] %vm2029, %v2017
      %2031 = vst.msk [vmem:[#allocation3 + $0x8] sm:$0xff] %vm2029, %v2018
      %2032 = vst.msk [vmem:[#allocation3 + $0x10] sm:$0xff] %vm2029, %v2019
      %2033 = vst.msk [vmem:[#allocation3 + $0x18] sm:$0xff] %vm2029, %v2020
      %2034 = vst.msk [vmem:[#allocation3 + $0x20] sm:$0xff] %vm2029, %v2021
      %2035 = vst.msk [vmem:[#allocation3 + $0x28] sm:$0xff] %vm2029, %v2022
      %2036 = vst.msk [vmem:[#allocation3 + $0x30] sm:$0xff] %vm2029, %v2023
      %2037 = vst.msk [vmem:[#allocation3 + $0x38] sm:$0xff] %vm2029, %v2024
      %2038 = vst.msk [vmem:[#allocation3 + $0x40] sm:$0xff] %vm2029, %v2025
      %2039 = vst.msk [vmem:[#allocation3 + $0x48] sm:$0xff] %vm2029, %v2026
      %2040 = vst.msk [vmem:[#allocation3 + $0x50] sm:$0xff] %vm2029, %v2027
      %2041 = vst.msk [vmem:[#allocation3 + $0x58] sm:$0xff] %vm2029, %v2028
      %v2042 = vld [vmem:[#allocation3] sm:$0xff]
      %v2043 = vld [vmem:[#allocation3 + $0x8] sm:$0xff]
      %v2044 = vld [vmem:[#allocation3 + $0x10] sm:$0xff]
      %v2045 = vld [vmem:[#allocation3 + $0x18] sm:$0xff]
      %v2046 = vld [vmem:[#allocation3 + $0x20] sm:$0xff]
      %v2047 = vld [vmem:[#allocation3 + $0x28] sm:$0xff]
      %v2048 = vld [vmem:[#allocation3 + $0x30] sm:$0xff]
      %v2049 = vld [vmem:[#allocation3 + $0x38] sm:$0xff]
      %v2050 = vld [vmem:[#allocation3 + $0x40] sm:$0xff]
      %v2051 = vld [vmem:[#allocation3 + $0x48] sm:$0xff]
      %v2052 = vld [vmem:[%s5] sm:$0xf]
      %v2053 = vld [vmem:[%s5 + $0x4] sm:$0xf]
      %v2054 = vld [vmem:[%s5 + $0x8] sm:$0xf]
      %v2055 = vld [vmem:[%s5 + $0xc] sm:$0xf]
      %v2056 = vld [vmem:[%s5 + $0x10] sm:$0xf]
      %v2057 = vld [vmem:[%s5 + $0x14] sm:$0xf]
      %v2058 = vld [vmem:[%s5 + $0x18] sm:$0xf]
      %v2059 = vld [vmem:[%s5 + $0x1c] sm:$0xf]
      %v2060 = vld [vmem:[%s5 + $0x20] sm:$0xf]
      %v2061 = vld [vmem:[%s5 + $0x24] sm:$0xf]
      %v2062 = vld [vmem:[%s5 + $0x28] sm:$0xf]
      %v2063 = vld [vmem:[%s5 + $0x2c] sm:$0xf]
      %v2064 = vld [vmem:[#allocation3 + $0x50] sm:$0xff]
      %s2065 = scalar_lea.vmem %s5, 48
      %v2066 = vld [vmem:[%s2065] sm:$0xf]
      %v2067 = vld [vmem:[%s2065 + $0x4] sm:$0xf]
      %v2068 = vld [vmem:[%s2065 + $0x8] sm:$0xf]
      %v2069 = vld [vmem:[%s2065 + $0xc] sm:$0xf]
      %v2070 = vld [vmem:[%s2065 + $0x10] sm:$0xf]
      %v2071 = vld [vmem:[%s2065 + $0x14] sm:$0xf]
      %v2072 = vld [vmem:[%s2065 + $0x18] sm:$0xf]
      %v2073 = vld [vmem:[%s2065 + $0x1c] sm:$0xf]
      %v2074 = vld [vmem:[%s2065 + $0x20] sm:$0xf]
      %v2075 = vld [vmem:[%s2065 + $0x24] sm:$0xf]
      %v2076 = vld [vmem:[%s2065 + $0x28] sm:$0xf]
      %v2077 = vld [vmem:[%s2065 + $0x2c] sm:$0xf]
      %v2090 = vunpack.c.l.b16 %v2066
      %v2091 = vunpack.c.l.b16 %v2067
      %v2092 = vunpack.c.l.b16 %v2068
      %v2093 = vunpack.c.l.b16 %v2069
      %v2094 = vunpack.c.l.b16 %v2070
      %v2095 = vunpack.c.l.b16 %v2071
      %v2096 = vunpack.c.l.b16 %v2072
      %v2097 = vunpack.c.l.b16 %v2073
      %v2098 = vunpack.c.l.b16 %v2074
      %v2099 = vunpack.c.l.b16 %v2075
      %v2100 = vunpack.c.l.b16 %v2076
      %v2101 = vunpack.c.l.b16 %v2077
      %v2102 = vpack.c.b16 %v2091, %v2090
      %v2103 = vpack.c.b16 %v2093, %v2092
      %v2104 = vpack.c.b16 %v2095, %v2094
      %v2105 = vpack.c.b16 %v2097, %v2096
      %v2106 = vpack.c.b16 %v2099, %v2098
      %v2107 = vpack.c.b16 %v2101, %v2100
      %v2115 = vsel %vm2029, %v2043, 0
      %v2118 = vsel %vm2029, %v2044, 0
      %v2121 = vsel %vm2029, %v2045, 0
      %v2124 = vsel %vm2029, %v2046, 0
      %v2127 = vsel %vm2029, %v2047, 0
      %v2130 = vsel %vm2029, %v2048, 0
      %v2133 = vsel %vm2029, %v2049, 0
      %v2136 = vsel %vm2029, %v2050, 0
      %v2139 = vsel %vm2029, %v2051, 0
      %v2142 = vsel %vm2029, %v2064, 0
      %2144 = vmatprep.subr.bf16.mxu0 0
      %2145 = vmatpush1.bf16.msra.mxu0 %v2102
      %2146 = vmatprep.subr.bf16.mxu0 0
      %2147 = vmatpush1.bf16.msra.mxu0 %v2103
      %2148 = vmatprep.subr.bf16.mxu0 0
      %2149 = vmatpush1.bf16.msra.mxu0 %v2104
      %2150 = vmatprep.subr.bf16.mxu0 0
      %2151 = vmatpush1.bf16.msra.mxu0 %v2105
      %2152 = vmatprep.subr.bf16.mxu0 0
      %2153 = vmatpush1.bf16.msra.mxu0 %v2106
      %2154 = vmatprep.subr.bf16.mxu0 0
      %2155 = vmatpush1.bf16.msra.mxu0 %v2107
      %2156 = vmatprep.subr.bf16.mxu0 0
      %2157 = vmatpush1.bf16.msra.mxu0 0
      %2158 = vmatprep.subr.bf16.mxu0 0
      %2159 = vmatpush1.bf16.msra.mxu0 0
      %2160 = vmatprep.subr.bf16.mxu0 0
      %2161 = vmatpush1.bf16.msra.mxu0 0
      %2162 = vmatprep.subr.bf16.mxu0 0
      %2163 = vmatpush1.bf16.msra.mxu0 0
      %2164 = vmatprep.subr.bf16.mxu0 0
      %2165 = vmatpush1.bf16.msra.mxu0 0
      %2166 = vmatprep.subr.bf16.mxu0 0
      %2167 = vmatpush1.bf16.msra.mxu0 0
      %2168 = vmatprep.subr.bf16.mxu0 0
      %2169 = vmatpush1.bf16.msra.mxu0 0
      %2170 = vmatprep.subr.bf16.mxu0 0
      %2171 = vmatpush1.bf16.msra.mxu0 0
      %2172 = vmatprep.subr.bf16.mxu0 0
      %2173 = vmatpush1.bf16.msra.mxu0 0
      %2174 = vmatprep.subr.bf16.mxu0 0
      %2175 = vmatpush1.bf16.msra.mxu0 0
      %2176 = vmatprep.mubr.bf16.mxu0 0
      %2177 = vmatmul.mubr.bf16.gmra.mrb[0].mxu0 %v2115
      %v2178 = vpop.f32.mrb[0].mxu0
      %v2179 = vadd.f32 0.0, %v2178
      %v2180 = vpop.f32.mrb[0].mxu0
      %v2181 = vpop.f32.mrb[0].mxu0
      %v2182 = vadd.f32 0.0, %v2181
      %v2183 = vpop.f32.mrb[0].mxu0
      %2184 = vmatprep.mubr.bf16.mxu0 0
      %2185 = vmatmul.mubr.bf16.gmra.mrb[0].mxu0 %v2118
      %v2186 = vpop.f32.mrb[0].mxu0
      %v2187 = vadd.f32 0.0, %v2186
      %v2188 = vpop.f32.mrb[0].mxu0
      %v2189 = vpop.f32.mrb[0].mxu0
      %v2190 = vadd.f32 0.0, %v2189
      %v2191 = vpop.f32.mrb[0].mxu0
      %2192 = vmatprep.mubr.bf16.mxu0 0
      %2193 = vmatmul.mubr.bf16.gmra.mrb[0].mxu0 %v2121
      %v2194 = vpop.f32.mrb[0].mxu0
      %v2195 = vadd.f32 0.0, %v2194
      %v2196 = vpop.f32.mrb[0].mxu0
      %v2197 = vpop.f32.mrb[0].mxu0
      %v2198 = vadd.f32 0.0, %v2197
      %v2199 = vpop.f32.mrb[0].mxu0
      %2200 = vmatprep.mubr.bf16.mxu0 0
      %2201 = vmatmul.mubr.bf16.gmra.mrb[0].mxu0 %v2124
      %v2202 = vpop.f32.mrb[0].mxu0
      %v2203 = vadd.f32 0.0, %v2202
      %v2204 = vpop.f32.mrb[0].mxu0
      %v2205 = vpop.f32.mrb[0].mxu0
      %v2206 = vadd.f32 0.0, %v2205
      %v2207 = vpop.f32.mrb[0].mxu0
      %2208 = vmatprep.mubr.bf16.mxu0 0
      %2209 = vmatmul.mubr.bf16.gmra.mrb[0].mxu0 %v2127
      %v2210 = vpop.f32.mrb[0].mxu0
      %v2211 = vadd.f32 0.0, %v2210
      %v2212 = vpop.f32.mrb[0].mxu0
      %v2213 = vpop.f32.mrb[0].mxu0
      %v2214 = vadd.f32 0.0, %v2213
      %v2215 = vpop.f32.mrb[0].mxu0
      %2216 = vmatprep.mubr.bf16.mxu0 0
      %2217 = vmatmul.mubr.bf16.gmra.mrb[0].mxu0 %v2130
      %v2218 = vpop.f32.mrb[0].mxu0
      %v2219 = vadd.f32 0.0, %v2218
      %v2220 = vpop.f32.mrb[0].mxu0
      %v2221 = vpop.f32.mrb[0].mxu0
      %v2222 = vadd.f32 0.0, %v2221
      %v2223 = vpop.f32.mrb[0].mxu0
      %2224 = vmatprep.mubr.bf16.mxu0 0
      %2225 = vmatmul.mubr.bf16.gmra.mrb[0].mxu0 %v2133
      %v2226 = vpop.f32.mrb[0].mxu0
      %v2227 = vadd.f32 0.0, %v2226
      %v2228 = vpop.f32.mrb[0].mxu0
      %v2229 = vpop.f32.mrb[0].mxu0
      %v2230 = vadd.f32 0.0, %v2229
      %v2231 = vpop.f32.mrb[0].mxu0
      %2232 = vmatprep.mubr.bf16.mxu0 0
      %2233 = vmatmul.mubr.bf16.gmra.mrb[0].mxu0 %v2136
      %v2234 = vpop.f32.mrb[0].mxu0
      %v2235 = vadd.f32 0.0, %v2234
      %v2236 = vpop.f32.mrb[0].mxu0
      %v2237 = vpop.f32.mrb[0].mxu0
      %v2238 = vadd.f32 0.0, %v2237
      %v2239 = vpop.f32.mrb[0].mxu0
      %2240 = vmatprep.mubr.bf16.mxu0 0
      %2241 = vmatmul.mubr.bf16.gmra.mrb[0].mxu0 %v2139
      %v2242 = vpop.f32.mrb[0].mxu0
      %v2243 = vadd.f32 0.0, %v2242
      %v2244 = vpop.f32.mrb[0].mxu0
      %v2245 = vpop.f32.mrb[0].mxu0
      %v2246 = vadd.f32 0.0, %v2245
      %v2247 = vpop.f32.mrb[0].mxu0
      %2248 = vmatprep.mubr.bf16.mxu0 0
      %2249 = vmatmul.mubr.bf16.gmra.mrb[0].mxu0 %v2142
      %v2250 = vpop.f32.mrb[0].mxu0
      %v2251 = vadd.f32 0.0, %v2250
      %v2252 = vpop.f32.mrb[0].mxu0
      %v2253 = vpop.f32.mrb[0].mxu0
      %v2254 = vadd.f32 0.0, %v2253
      %v2255 = vpop.f32.mrb[0].mxu0
      %2256 = vdwg.mxu0
      %v2269 = vunpack.c.l.b16 %v2052
      %v2270 = vunpack.c.l.b16 %v2053
      %v2271 = vunpack.c.l.b16 %v2054
      %v2272 = vunpack.c.l.b16 %v2055
      %v2273 = vunpack.c.l.b16 %v2056
      %v2274 = vunpack.c.l.b16 %v2057
      %v2275 = vunpack.c.l.b16 %v2058
      %v2276 = vunpack.c.l.b16 %v2059
      %v2277 = vunpack.c.l.b16 %v2060
      %v2278 = vunpack.c.l.b16 %v2061
      %v2279 = vunpack.c.l.b16 %v2062
      %v2280 = vunpack.c.l.b16 %v2063
      %v2281 = vpack.c.b16 %v2270, %v2269
      %v2282 = vpack.c.b16 %v2272, %v2271
      %v2283 = vpack.c.b16 %v2274, %v2273
      %v2284 = vpack.c.b16 %v2276, %v2275
      %v2285 = vpack.c.b16 %v2278, %v2277
      %v2286 = vpack.c.b16 %v2280, %v2279
      %v2294 = vsel %vm2029, %v2042, 0
      %2296 = vmatprep.subr.bf16.mxu0 0
      %2297 = vmatpush1.bf16.msra.mxu0 %v2281
      %2298 = vmatprep.subr.bf16.mxu0 0
      %2299 = vmatpush1.bf16.msra.mxu0 %v2282
      %2300 = vmatprep.subr.bf16.mxu0 0
      %2301 = vmatpush1.bf16.msra.mxu0 %v2283
      %2302 = vmatprep.subr.bf16.mxu0 0
      %2303 = vmatpush1.bf16.msra.mxu0 %v2284
      %2304 = vmatprep.subr.bf16.mxu0 0
      %2305 = vmatpush1.bf16.msra.mxu0 %v2285
      %2306 = vmatprep.subr.bf16.mxu0 0
      %2307 = vmatpush1.bf16.msra.mxu0 %v2286
      %2308 = vmatprep.subr.bf16.mxu0 0
      %2309 = vmatpush1.bf16.msra.mxu0 0
      %2310 = vmatprep.subr.bf16.mxu0 0
      %2311 = vmatpush1.bf16.msra.mxu0 0
      %2312 = vmatprep.subr.bf16.mxu0 0
      %2313 = vmatpush1.bf16.msra.mxu0 0
      %2314 = vmatprep.subr.bf16.mxu0 0
      %2315 = vmatpush1.bf16.msra.mxu0 0
      %2316 = vmatprep.subr.bf16.mxu0 0
      %2317 = vmatpush1.bf16.msra.mxu0 0
      %2318 = vmatprep.subr.bf16.mxu0 0
      %2319 = vmatpush1.bf16.msra.mxu0 0
      %2320 = vmatprep.subr.bf16.mxu0 0
      %2321 = vmatpush1.bf16.msra.mxu0 0
      %2322 = vmatprep.subr.bf16.mxu0 0
      %2323 = vmatpush1.bf16.msra.mxu0 0
      %2324 = vmatprep.subr.bf16.mxu0 0
      %2325 = vmatpush1.bf16.msra.mxu0 0
      %2326 = vmatprep.subr.bf16.mxu0 0
      %2327 = vmatpush1.bf16.msra.mxu0 0
      %2328 = vmatprep.mubr.bf16.mxu0 0
      %2329 = vmatmul.mubr.bf16.gmra.mrb[0].mxu0 %v2294
      %v2330 = vpop.f32.mrb[0].mxu0
      %v2331 = vadd.f32 %v2179, %v2330
      %v2332 = vpop.f32.mrb[0].mxu0
      %v2333 = vpop.f32.mrb[0].mxu0
      %v2334 = vadd.f32 %v2182, %v2333
      %v2335 = vpop.f32.mrb[0].mxu0
      %2336 = vmatprep.mubr.bf16.mxu0 0
      %2337 = vmatmul.mubr.bf16.gmra.mrb[0].mxu0 %v2115
      %v2338 = vpop.f32.mrb[0].mxu0
      %v2339 = vadd.f32 %v2187, %v2338
      %v2340 = vpop.f32.mrb[0].mxu0
      %v2341 = vpop.f32.mrb[0].mxu0
      %v2342 = vadd.f32 %v2190, %v2341
      %v2343 = vpop.f32.mrb[0].mxu0
      %2344 = vmatprep.mubr.bf16.mxu0 0
      %2345 = vmatmul.mubr.bf16.gmra.mrb[0].mxu0 %v2118
      %v2346 = vpop.f32.mrb[0].mxu0
      %v2347 = vadd.f32 %v2195, %v2346
      %v2348 = vpop.f32.mrb[0].mxu0
      %v2349 = vpop.f32.mrb[0].mxu0
      %v2350 = vadd.f32 %v2198, %v2349
      %v2351 = vpop.f32.mrb[0].mxu0
      %2352 = vmatprep.mubr.bf16.mxu0 0
      %2353 = vmatmul.mubr.bf16.gmra.mrb[0].mxu0 %v2121
      %v2354 = vpop.f32.mrb[0].mxu0
      %v2355 = vadd.f32 %v2203, %v2354
      %v2356 = vpop.f32.mrb[0].mxu0
      %v2357 = vpop.f32.mrb[0].mxu0
      %v2358 = vadd.f32 %v2206, %v2357
      %v2359 = vpop.f32.mrb[0].mxu0
      %2360 = vmatprep.mubr.bf16.mxu0 0
      %2361 = vmatmul.mubr.bf16.gmra.mrb[0].mxu0 %v2124
      %v2362 = vpop.f32.mrb[0].mxu0
      %v2363 = vadd.f32 %v2211, %v2362
      %v2364 = vpop.f32.mrb[0].mxu0
      %v2365 = vpop.f32.mrb[0].mxu0
      %v2366 = vadd.f32 %v2214, %v2365
      %v2367 = vpop.f32.mrb[0].mxu0
      %2368 = vmatprep.mubr.bf16.mxu0 0
      %2369 = vmatmul.mubr.bf16.gmra.mrb[0].mxu0 %v2127
      %v2370 = vpop.f32.mrb[0].mxu0
      %v2371 = vadd.f32 %v2219, %v2370
      %v2372 = vpop.f32.mrb[0].mxu0
      %v2373 = vpop.f32.mrb[0].mxu0
      %v2374 = vadd.f32 %v2222, %v2373
      %v2375 = vpop.f32.mrb[0].mxu0
      %2376 = vmatprep.mubr.bf16.mxu0 0
      %2377 = vmatmul.mubr.bf16.gmra.mrb[0].mxu0 %v2130
      %v2378 = vpop.f32.mrb[0].mxu0
      %v2379 = vadd.f32 %v2227, %v2378
      %v2380 = vpop.f32.mrb[0].mxu0
      %v2381 = vpop.f32.mrb[0].mxu0
      %v2382 = vadd.f32 %v2230, %v2381
      %v2383 = vpop.f32.mrb[0].mxu0
      %2384 = vmatprep.mubr.bf16.mxu0 0
      %2385 = vmatmul.mubr.bf16.gmra.mrb[0].mxu0 %v2133
      %v2386 = vpop.f32.mrb[0].mxu0
      %v2387 = vadd.f32 %v2235, %v2386
      %v2388 = vpop.f32.mrb[0].mxu0
      %v2389 = vpop.f32.mrb[0].mxu0
      %v2390 = vadd.f32 %v2238, %v2389
      %v2391 = vpop.f32.mrb[0].mxu0
      %2392 = vmatprep.mubr.bf16.mxu0 0
      %2393 = vmatmul.mubr.bf16.gmra.mrb[0].mxu0 %v2136
      %v2394 = vpop.f32.mrb[0].mxu0
      %v2395 = vadd.f32 %v2243, %v2394
      %v2396 = vpop.f32.mrb[0].mxu0
      %v2397 = vpop.f32.mrb[0].mxu0
      %v2398 = vadd.f32 %v2246, %v2397
      %v2399 = vpop.f32.mrb[0].mxu0
      %2400 = vmatprep.mubr.bf16.mxu0 0
      %2401 = vmatmul.mubr.bf16.gmra.mrb[0].mxu0 %v2139
      %v2402 = vpop.f32.mrb[0].mxu0
      %v2403 = vadd.f32 %v2251, %v2402
      %v2404 = vpop.f32.mrb[0].mxu0
      %v2405 = vpop.f32.mrb[0].mxu0
      %v2406 = vadd.f32 %v2254, %v2405
      %v2407 = vpop.f32.mrb[0].mxu0
      %2408 = vdwg.mxu0
      %v2409 = vld [vmem:[#allocation3 + $0x10] sm:$0xff]
      %v2410 = vld [vmem:[#allocation3 + $0x18] sm:$0xff]
      %v2411 = vld [vmem:[#allocation3 + $0x20] sm:$0xff]
      %v2412 = vld [vmem:[#allocation3 + $0x28] sm:$0xff]
      %v2413 = vld [vmem:[#allocation3 + $0x30] sm:$0xff]
      %v2414 = vld [vmem:[#allocation3 + $0x38] sm:$0xff]
      %v2415 = vld [vmem:[#allocation3 + $0x40] sm:$0xff]
      %v2416 = vld [vmem:[#allocation3 + $0x48] sm:$0xff]
      %v2417 = vld [vmem:[#allocation3 + $0x50] sm:$0xff]
      %v2418 = vld [vmem:[#allocation3 + $0x58] sm:$0xff]
      %s2419 = scalar_lea.vmem %s5, 96
      %v2420 = vld [vmem:[%s2419] sm:$0xf]
      %v2421 = vld [vmem:[%s2419 + $0x4] sm:$0xf]
      %v2422 = vld [vmem:[%s2419 + $0x8] sm:$0xf]
      %v2423 = vld [vmem:[%s2419 + $0xc] sm:$0xf]
      %v2424 = vld [vmem:[%s2419 + $0x10] sm:$0xf]
      %v2425 = vld [vmem:[%s2419 + $0x14] sm:$0xf]
      %v2426 = vld [vmem:[%s2419 + $0x18] sm:$0xf]
      %v2427 = vld [vmem:[%s2419 + $0x1c] sm:$0xf]
      %v2428 = vld [vmem:[%s2419 + $0x20] sm:$0xf]
      %v2429 = vld [vmem:[%s2419 + $0x24] sm:$0xf]
      %v2430 = vld [vmem:[%s2419 + $0x28] sm:$0xf]
      %v2431 = vld [vmem:[%s2419 + $0x2c] sm:$0xf]
      %v2444 = vunpack.c.l.b16 %v2420
      %v2445 = vunpack.c.l.b16 %v2421
      %v2446 = vunpack.c.l.b16 %v2422
      %v2447 = vunpack.c.l.b16 %v2423
      %v2448 = vunpack.c.l.b16 %v2424
      %v2449 = vunpack.c.l.b16 %v2425
      %v2450 = vunpack.c.l.b16 %v2426
      %v2451 = vunpack.c.l.b16 %v2427
      %v2452 = vunpack.c.l.b16 %v2428
      %v2453 = vunpack.c.l.b16 %v2429
      %v2454 = vunpack.c.l.b16 %v2430
      %v2455 = vunpack.c.l.b16 %v2431
      %v2456 = vpack.c.b16 %v2445, %v2444
      %v2457 = vpack.c.b16 %v2447, %v2446
      %v2458 = vpack.c.b16 %v2449, %v2448
      %v2459 = vpack.c.b16 %v2451, %v2450
      %v2460 = vpack.c.b16 %v2453, %v2452
      %v2461 = vpack.c.b16 %v2455, %v2454
      %v2469 = vsel %vm2029, %v2409, 0
      %v2472 = vsel %vm2029, %v2410, 0
      %v2475 = vsel %vm2029, %v2411, 0
      %v2478 = vsel %vm2029, %v2412, 0
      %v2481 = vsel %vm2029, %v2413, 0
      %v2484 = vsel %vm2029, %v2414, 0
      %v2487 = vsel %vm2029, %v2415, 0
      %v2490 = vsel %vm2029, %v2416, 0
      %v2493 = vsel %vm2029, %v2417, 0
      %v2496 = vsel %vm2029, %v2418, 0
      %2498 = vmatprep.subr.bf16.mxu0 0
      %2499 = vmatpush1.bf16.msra.mxu0 %v2456
      %2500 = vmatprep.subr.bf16.mxu0 0
      %2501 = vmatpush1.bf16.msra.mxu0 %v2457
      %2502 = vmatprep.subr.bf16.mxu0 0
      %2503 = vmatpush1.bf16.msra.mxu0 %v2458
      %2504 = vmatprep.subr.bf16.mxu0 0
      %2505 = vmatpush1.bf16.msra.mxu0 %v2459
      %2506 = vmatprep.subr.bf16.mxu0 0
      %2507 = vmatpush1.bf16.msra.mxu0 %v2460
      %2508 = vmatprep.subr.bf16.mxu0 0
      %2509 = vmatpush1.bf16.msra.mxu0 %v2461
      %2510 = vmatprep.subr.bf16.mxu0 0
      %2511 = vmatpush1.bf16.msra.mxu0 0
      %2512 = vmatprep.subr.bf16.mxu0 0
      %2513 = vmatpush1.bf16.msra.mxu0 0
      %2514 = vmatprep.subr.bf16.mxu0 0
      %2515 = vmatpush1.bf16.msra.mxu0 0
      %2516 = vmatprep.subr.bf16.mxu0 0
      %2517 = vmatpush1.bf16.msra.mxu0 0
      %2518 = vmatprep.subr.bf16.mxu0 0
      %2519 = vmatpush1.bf16.msra.mxu0 0
      %2520 = vmatprep.subr.bf16.mxu0 0
      %2521 = vmatpush1.bf16.msra.mxu0 0
      %2522 = vmatprep.subr.bf16.mxu0 0
      %2523 = vmatpush1.bf16.msra.mxu0 0
      %2524 = vmatprep.subr.bf16.mxu0 0
      %2525 = vmatpush1.bf16.msra.mxu0 0
      %2526 = vmatprep.subr.bf16.mxu0 0
      %2527 = vmatpush1.bf16.msra.mxu0 0
      %2528 = vmatprep.subr.bf16.mxu0 0
      %2529 = vmatpush1.bf16.msra.mxu0 0
      %2530 = vmatprep.mubr.bf16.mxu0 0
      %2531 = vmatmul.mubr.bf16.gmra.mrb[0].mxu0 %v2469
      %v2532 = vpop.f32.mrb[0].mxu0
      %v2533 = vadd.f32 0.0, %v2532
      %v2534 = vpop.f32.mrb[0].mxu0
      %v2535 = vpop.f32.mrb[0].mxu0
      %v2536 = vadd.f32 0.0, %v2535
      %v2537 = vpop.f32.mrb[0].mxu0
      %2538 = vmatprep.mubr.bf16.mxu0 0
      %2539 = vmatmul.mubr.bf16.gmra.mrb[0].mxu0 %v2472
      %v2540 = vpop.f32.mrb[0].mxu0
      %v2541 = vadd.f32 0.0, %v2540
      %v2542 = vpop.f32.mrb[0].mxu0
      %v2543 = vpop.f32.mrb[0].mxu0
      %v2544 = vadd.f32 0.0, %v2543
      %v2545 = vpop.f32.mrb[0].mxu0
      %2546 = vmatprep.mubr.bf16.mxu0 0
      %2547 = vmatmul.mubr.bf16.gmra.mrb[0].mxu0 %v2475
      %v2548 = vpop.f32.mrb[0].mxu0
      %v2549 = vadd.f32 0.0, %v2548
      %v2550 = vpop.f32.mrb[0].mxu0
      %v2551 = vpop.f32.mrb[0].mxu0
      %v2552 = vadd.f32 0.0, %v2551
      %v2553 = vpop.f32.mrb[0].mxu0
      %2554 = vmatprep.mubr.bf16.mxu0 0
      %2555 = vmatmul.mubr.bf16.gmra.mrb[0].mxu0 %v2478
      %v2556 = vpop.f32.mrb[0].mxu0
      %v2557 = vadd.f32 0.0, %v2556
      %v2558 = vpop.f32.mrb[0].mxu0
      %v2559 = vpop.f32.mrb[0].mxu0
      %v2560 = vadd.f32 0.0, %v2559
      %v2561 = vpop.f32.mrb[0].mxu0
      %2562 = vmatprep.mubr.bf16.mxu0 0
      %2563 = vmatmul.mubr.bf16.gmra.mrb[0].mxu0 %v2481
      %v2564 = vpop.f32.mrb[0].mxu0
      %v2565 = vadd.f32 0.0, %v2564
      %v2566 = vpop.f32.mrb[0].mxu0
      %v2567 = vpop.f32.mrb[0].mxu0
      %v2568 = vadd.f32 0.0, %v2567
      %v2569 = vpop.f32.mrb[0].mxu0
      %2570 = vmatprep.mubr.bf16.mxu0 0
      %2571 = vmatmul.mubr.bf16.gmra.mrb[0].mxu0 %v2484
      %v2572 = vpop.f32.mrb[0].mxu0
      %v2573 = vadd.f32 0.0, %v2572
      %v2574 = vpop.f32.mrb[0].mxu0
      %v2575 = vpop.f32.mrb[0].mxu0
      %v2576 = vadd.f32 0.0, %v2575
      %v2577 = vpop.f32.mrb[0].mxu0
      %2578 = vmatprep.mubr.bf16.mxu0 0
      %2579 = vmatmul.mubr.bf16.gmra.mrb[0].mxu0 %v2487
      %v2580 = vpop.f32.mrb[0].mxu0
      %v2581 = vadd.f32 0.0, %v2580
      %v2582 = vpop.f32.mrb[0].mxu0
      %v2583 = vpop.f32.mrb[0].mxu0
      %v2584 = vadd.f32 0.0, %v2583
      %v2585 = vpop.f32.mrb[0].mxu0
      %2586 = vmatprep.mubr.bf16.mxu0 0
      %2587 = vmatmul.mubr.bf16.gmra.mrb[0].mxu0 %v2490
      %v2588 = vpop.f32.mrb[0].mxu0
      %v2589 = vadd.f32 0.0, %v2588
      %v2590 = vpop.f32.mrb[0].mxu0
      %v2591 = vpop.f32.mrb[0].mxu0
      %v2592 = vadd.f32 0.0, %v2591
      %v2593 = vpop.f32.mrb[0].mxu0
      %2594 = vmatprep.mubr.bf16.mxu0 0
      %2595 = vmatmul.mubr.bf16.gmra.mrb[0].mxu0 %v2493
      %v2596 = vpop.f32.mrb[0].mxu0
      %v2597 = vadd.f32 0.0, %v2596
      %v2598 = vpop.f32.mrb[0].mxu0
      %v2599 = vpop.f32.mrb[0].mxu0
      %v2600 = vadd.f32 0.0, %v2599
      %v2601 = vpop.f32.mrb[0].mxu0
      %2602 = vmatprep.mubr.bf16.mxu0 0
      %2603 = vmatmul.mubr.bf16.gmra.mrb[0].mxu0 %v2496
      %v2604 = vpop.f32.mrb[0].mxu0
      %v2605 = vadd.f32 0.0, %v2604
      %v2606 = vpop.f32.mrb[0].mxu0
      %v2607 = vpop.f32.mrb[0].mxu0
      %v2608 = vadd.f32 0.0, %v2607
      %v2609 = vpop.f32.mrb[0].mxu0
      %2610 = vdwg.mxu0
      %v2611 = vadd.f32 %v2331, %v2533
      %v2612 = vadd.f32 %v2334, %v2536
      %v2613 = vadd.f32 %v2339, %v2541
      %v2614 = vadd.f32 %v2342, %v2544
      %v2615 = vadd.f32 %v2347, %v2549
      %v2616 = vadd.f32 %v2350, %v2552
      %v2617 = vadd.f32 %v2355, %v2557
      %v2618 = vadd.f32 %v2358, %v2560
      %v2619 = vadd.f32 %v2363, %v2565
      %v2620 = vadd.f32 %v2366, %v2568
      %v2621 = vadd.f32 %v2371, %v2573
      %v2622 = vadd.f32 %v2374, %v2576
      %v2623 = vadd.f32 %v2379, %v2581
      %v2624 = vadd.f32 %v2382, %v2584
      %v2625 = vadd.f32 %v2387, %v2589
      %v2626 = vadd.f32 %v2390, %v2592
      %v2627 = vadd.f32 %v2395, %v2597
      %v2628 = vadd.f32 %v2398, %v2600
      %v2629 = vadd.f32 %v2403, %v2605
      %v2630 = vadd.f32 %v2406, %v2608
      %v2631 = vld [vmem:[%s6] sm:$0x1]
      %v2633 = vlaneseq
      %v2634 = vshrl.u32 %v2633, 7
      %v2635 = vsub.s32 0, %v2634
      %v2636 = vrot.slane %v2631, %v2635
      %v2638 = vadd.f32 %v2611, %v2636
      %v2639 = vadd.f32 %v2612, %v2636
      %v2640 = vadd.f32 %v2613, %v2636
      %v2641 = vadd.f32 %v2614, %v2636
      %v2642 = vadd.f32 %v2615, %v2636
      %v2643 = vadd.f32 %v2616, %v2636
      %v2644 = vadd.f32 %v2617, %v2636
      %v2645 = vadd.f32 %v2618, %v2636
      %v2646 = vadd.f32 %v2619, %v2636
      %v2647 = vadd.f32 %v2620, %v2636
      %v2648 = vadd.f32 %v2621, %v2636
      %v2649 = vadd.f32 %v2622, %v2636
      %v2650 = vadd.f32 %v2623, %v2636
      %v2651 = vadd.f32 %v2624, %v2636
      %v2652 = vadd.f32 %v2625, %v2636
      %v2653 = vadd.f32 %v2626, %v2636
      %v2654 = vadd.f32 %v2627, %v2636
      %v2655 = vadd.f32 %v2628, %v2636
      %v2656 = vadd.f32 %v2629, %v2636
      %v2657 = vadd.f32 %v2630, %v2636
      %v2658 = vmax.f32 %v2638, 0.0
      %v2659 = vmax.f32 %v2639, 0.0
      %v2660 = vmax.f32 %v2640, 0.0
      %v2661 = vmax.f32 %v2641, 0.0
      %v2662 = vmax.f32 %v2642, 0.0
      %v2663 = vmax.f32 %v2643, 0.0
      %v2664 = vmax.f32 %v2644, 0.0
      %v2665 = vmax.f32 %v2645, 0.0
      %v2666 = vmax.f32 %v2646, 0.0
      %v2667 = vmax.f32 %v2647, 0.0
      %v2668 = vmax.f32 %v2648, 0.0
      %v2669 = vmax.f32 %v2649, 0.0
      %v2670 = vmax.f32 %v2650, 0.0
      %v2671 = vmax.f32 %v2651, 0.0
      %v2672 = vmax.f32 %v2652, 0.0
      %v2673 = vmax.f32 %v2653, 0.0
      %v2674 = vmax.f32 %v2654, 0.0
      %v2675 = vmax.f32 %v2655, 0.0
      %v2676 = vmax.f32 %v2656, 0.0
      %v2677 = vmax.f32 %v2657, 0.0
      %v2678 = vpack.c.bf16 %v2659, %v2658
      %v2679 = vpack.c.bf16 %v2661, %v2660
      %v2680 = vpack.c.bf16 %v2663, %v2662
      %v2681 = vpack.c.bf16 %v2665, %v2664
      %v2682 = vpack.c.bf16 %v2667, %v2666
      %v2683 = vpack.c.bf16 %v2669, %v2668
      %v2684 = vpack.c.bf16 %v2671, %v2670
      %v2685 = vpack.c.bf16 %v2673, %v2672
      %v2686 = vpack.c.bf16 %v2675, %v2674
      %v2687 = vpack.c.bf16 %v2677, %v2676
      %vm2688 = vcmask 654336
      %2689 = vst.msk [vmem:[#allocation4] sm:$0xff] %vm2688, %v2678
      %2690 = vst.msk [vmem:[#allocation4 + $0x8] sm:$0xff] %vm2688, %v2679
      %2691 = vst.msk [vmem:[#allocation4 + $0x10] sm:$0xff] %vm2688, %v2680
      %2692 = vst.msk [vmem:[#allocation4 + $0x18] sm:$0xff] %vm2688, %v2681
      %2693 = vst.msk [vmem:[#allocation4 + $0x20] sm:$0xff] %vm2688, %v2682
      %2694 = vst.msk [vmem:[#allocation4 + $0x28] sm:$0xff] %vm2688, %v2683
      %2695 = vst.msk [vmem:[#allocation4 + $0x30] sm:$0xff] %vm2688, %v2684
      %2696 = vst.msk [vmem:[#allocation4 + $0x38] sm:$0xff] %vm2688, %v2685
      %2697 = vst.msk [vmem:[#allocation4 + $0x40] sm:$0xff] %vm2688, %v2686
      %2698 = vst.msk [vmem:[#allocation4 + $0x48] sm:$0xff] %vm2688, %v2687
      %v2699 = vld [vmem:[#allocation4] sm:$0xff]
      %v2700 = vld [vmem:[%s7] sm:$0xf]
      %v2701 = vld [vmem:[%s7 + $0x4] sm:$0xf]
      %v2702 = vld [vmem:[%s7 + $0x8] sm:$0xf]
      %v2703 = vld [vmem:[%s7 + $0xc] sm:$0xf]
      %v2704 = vld [vmem:[%s7 + $0x10] sm:$0xf]
      %v2705 = vld [vmem:[%s7 + $0x14] sm:$0xf]
      %v2706 = vld [vmem:[%s7 + $0x18] sm:$0xf]
      %v2707 = vld [vmem:[%s7 + $0x1c] sm:$0xf]
      %v2708 = vld [vmem:[%s7 + $0x20] sm:$0xf]
      %v2709 = vld [vmem:[%s7 + $0x24] sm:$0xf]
      %v2710 = vld [vmem:[#allocation4 + $0x8] sm:$0xff]
      %s2711 = scalar_lea.vmem %s7, 40
      %v2712 = vld [vmem:[%s2711] sm:$0xf]
      %v2713 = vld [vmem:[%s2711 + $0x4] sm:$0xf]
      %v2714 = vld [vmem:[%s2711 + $0x8] sm:$0xf]
      %v2715 = vld [vmem:[%s2711 + $0xc] sm:$0xf]
      %v2716 = vld [vmem:[%s2711 + $0x10] sm:$0xf]
      %v2717 = vld [vmem:[%s2711 + $0x14] sm:$0xf]
      %v2718 = vld [vmem:[%s2711 + $0x18] sm:$0xf]
      %v2719 = vld [vmem:[%s2711 + $0x1c] sm:$0xf]
      %v2720 = vld [vmem:[%s2711 + $0x20] sm:$0xf]
      %v2721 = vld [vmem:[%s2711 + $0x24] sm:$0xf]
      %v2732 = vunpack.c.l.b16 %v2712
      %v2733 = vunpack.c.l.b16 %v2713
      %v2734 = vunpack.c.l.b16 %v2714
      %v2735 = vunpack.c.l.b16 %v2715
      %v2736 = vunpack.c.l.b16 %v2716
      %v2737 = vunpack.c.l.b16 %v2717
      %v2738 = vunpack.c.l.b16 %v2718
      %v2739 = vunpack.c.l.b16 %v2719
      %v2740 = vunpack.c.l.b16 %v2720
      %v2741 = vunpack.c.l.b16 %v2721
      %v2742 = vpack.c.b16 %v2733, %v2732
      %v2743 = vpack.c.b16 %v2735, %v2734
      %v2744 = vpack.c.b16 %v2737, %v2736
      %v2745 = vpack.c.b16 %v2739, %v2738
      %v2746 = vpack.c.b16 %v2741, %v2740
      %v2753 = vsel %vm2688, %v2710, 0
      %2755 = vmatprep.subr.bf16.mxu0 0
      %2756 = vmatpush1.bf16.msra.mxu0 %v2742
      %2757 = vmatprep.subr.bf16.mxu0 0
      %2758 = vmatpush1.bf16.msra.mxu0 %v2743
      %2759 = vmatprep.subr.bf16.mxu0 0
      %2760 = vmatpush1.bf16.msra.mxu0 %v2744
      %2761 = vmatprep.subr.bf16.mxu0 0
      %2762 = vmatpush1.bf16.msra.mxu0 %v2745
      %2763 = vmatprep.subr.bf16.mxu0 0
      %2764 = vmatpush1.bf16.msra.mxu0 %v2746
      %2765 = vmatprep.subr.bf16.mxu0 0
      %2766 = vmatpush1.bf16.msra.mxu0 0
      %2767 = vmatprep.subr.bf16.mxu0 0
      %2768 = vmatpush1.bf16.msra.mxu0 0
      %2769 = vmatprep.subr.bf16.mxu0 0
      %2770 = vmatpush1.bf16.msra.mxu0 0
      %2771 = vmatprep.subr.bf16.mxu0 0
      %2772 = vmatpush1.bf16.msra.mxu0 0
      %2773 = vmatprep.subr.bf16.mxu0 0
      %2774 = vmatpush1.bf16.msra.mxu0 0
      %2775 = vmatprep.subr.bf16.mxu0 0
      %2776 = vmatpush1.bf16.msra.mxu0 0
      %2777 = vmatprep.subr.bf16.mxu0 0
      %2778 = vmatpush1.bf16.msra.mxu0 0
      %2779 = vmatprep.subr.bf16.mxu0 0
      %2780 = vmatpush1.bf16.msra.mxu0 0
      %2781 = vmatprep.subr.bf16.mxu0 0
      %2782 = vmatpush1.bf16.msra.mxu0 0
      %2783 = vmatprep.subr.bf16.mxu0 0
      %2784 = vmatpush1.bf16.msra.mxu0 0
      %2785 = vmatprep.subr.bf16.mxu0 0
      %2786 = vmatpush1.bf16.msra.mxu0 0
      %2787 = vmatprep.mubr.bf16.mxu0 0
      %2788 = vmatmul.mubr.bf16.gmra.mrb[0].mxu0 %v2753
      %v2789 = vpop.f32.mrb[0].mxu0
      %v2790 = vadd.f32 0.0, %v2789
      %v2791 = vpop.f32.mrb[0].mxu0
      %v2792 = vpop.f32.mrb[0].mxu0
      %v2793 = vadd.f32 0.0, %v2792
      %v2794 = vpop.f32.mrb[0].mxu0
      %2795 = vdwg.mxu0
      %v2806 = vunpack.c.l.b16 %v2700
      %v2807 = vunpack.c.l.b16 %v2701
      %v2808 = vunpack.c.l.b16 %v2702
      %v2809 = vunpack.c.l.b16 %v2703
      %v2810 = vunpack.c.l.b16 %v2704
      %v2811 = vunpack.c.l.b16 %v2705
      %v2812 = vunpack.c.l.b16 %v2706
      %v2813 = vunpack.c.l.b16 %v2707
      %v2814 = vunpack.c.l.b16 %v2708
      %v2815 = vunpack.c.l.b16 %v2709
      %v2816 = vpack.c.b16 %v2807, %v2806
      %v2817 = vpack.c.b16 %v2809, %v2808
      %v2818 = vpack.c.b16 %v2811, %v2810
      %v2819 = vpack.c.b16 %v2813, %v2812
      %v2820 = vpack.c.b16 %v2815, %v2814
      %v2827 = vsel %vm2688, %v2699, 0
      %2829 = vmatprep.subr.bf16.mxu0 0
      %2830 = vmatpush1.bf16.msra.mxu0 %v2816
      %2831 = vmatprep.subr.bf16.mxu0 0
      %2832 = vmatpush1.bf16.msra.mxu0 %v2817
      %2833 = vmatprep.subr.bf16.mxu0 0
      %2834 = vmatpush1.bf16.msra.mxu0 %v2818
      %2835 = vmatprep.subr.bf16.mxu0 0
      %2836 = vmatpush1.bf16.msra.mxu0 %v2819
      %2837 = vmatprep.subr.bf16.mxu0 0
      %2838 = vmatpush1.bf16.msra.mxu0 %v2820
      %2839 = vmatprep.subr.bf16.mxu0 0
      %2840 = vmatpush1.bf16.msra.mxu0 0
      %2841 = vmatprep.subr.bf16.mxu0 0
      %2842 = vmatpush1.bf16.msra.mxu0 0
      %2843 = vmatprep.subr.bf16.mxu0 0
      %2844 = vmatpush1.bf16.msra.mxu0 0
      %2845 = vmatprep.subr.bf16.mxu0 0
      %2846 = vmatpush1.bf16.msra.mxu0 0
      %2847 = vmatprep.subr.bf16.mxu0 0
      %2848 = vmatpush1.bf16.msra.mxu0 0
      %2849 = vmatprep.subr.bf16.mxu0 0
      %2850 = vmatpush1.bf16.msra.mxu0 0
      %2851 = vmatprep.subr.bf16.mxu0 0
      %2852 = vmatpush1.bf16.msra.mxu0 0
      %2853 = vmatprep.subr.bf16.mxu0 0
      %2854 = vmatpush1.bf16.msra.mxu0 0
      %2855 = vmatprep.subr.bf16.mxu0 0
      %2856 = vmatpush1.bf16.msra.mxu0 0
      %2857 = vmatprep.subr.bf16.mxu0 0
      %2858 = vmatpush1.bf16.msra.mxu0 0
      %2859 = vmatprep.subr.bf16.mxu0 0
      %2860 = vmatpush1.bf16.msra.mxu0 0
      %2861 = vmatprep.mubr.bf16.mxu0 0
      %2862 = vmatmul.mubr.bf16.gmra.mrb[0].mxu0 %v2827
      %v2863 = vpop.f32.mrb[0].mxu0
      %v2864 = vadd.f32 %v2790, %v2863
      %v2865 = vpop.f32.mrb[0].mxu0
      %v2866 = vpop.f32.mrb[0].mxu0
      %v2867 = vadd.f32 %v2793, %v2866
      %v2868 = vpop.f32.mrb[0].mxu0
      %2869 = vdwg.mxu0
      %v2870 = vld [vmem:[#allocation4 + $0x10] sm:$0xff]
      %s2871 = scalar_lea.vmem %s7, 80
      %v2872 = vld [vmem:[%s2871] sm:$0xf]
      %v2873 = vld [vmem:[%s2871 + $0x4] sm:$0xf]
      %v2874 = vld [vmem:[%s2871 + $0x8] sm:$0xf]
      %v2875 = vld [vmem:[%s2871 + $0xc] sm:$0xf]
      %v2876 = vld [vmem:[%s2871 + $0x10] sm:$0xf]
      %v2877 = vld [vmem:[%s2871 + $0x14] sm:$0xf]
      %v2878 = vld [vmem:[%s2871 + $0x18] sm:$0xf]
      %v2879 = vld [vmem:[%s2871 + $0x1c] sm:$0xf]
      %v2880 = vld [vmem:[%s2871 + $0x20] sm:$0xf]
      %v2881 = vld [vmem:[%s2871 + $0x24] sm:$0xf]
      %v2892 = vunpack.c.l.b16 %v2872
      %v2893 = vunpack.c.l.b16 %v2873
      %v2894 = vunpack.c.l.b16 %v2874
      %v2895 = vunpack.c.l.b16 %v2875
      %v2896 = vunpack.c.l.b16 %v2876
      %v2897 = vunpack.c.l.b16 %v2877
      %v2898 = vunpack.c.l.b16 %v2878
      %v2899 = vunpack.c.l.b16 %v2879
      %v2900 = vunpack.c.l.b16 %v2880
      %v2901 = vunpack.c.l.b16 %v2881
      %v2902 = vpack.c.b16 %v2893, %v2892
      %v2903 = vpack.c.b16 %v2895, %v2894
      %v2904 = vpack.c.b16 %v2897, %v2896
      %v2905 = vpack.c.b16 %v2899, %v2898
      %v2906 = vpack.c.b16 %v2901, %v2900
      %v2913 = vsel %vm2688, %v2870, 0
      %2915 = vmatprep.subr.bf16.mxu0 0
      %2916 = vmatpush1.bf16.msra.mxu0 %v2902
      %2917 = vmatprep.subr.bf16.mxu0 0
      %2918 = vmatpush1.bf16.msra.mxu0 %v2903
      %2919 = vmatprep.subr.bf16.mxu0 0
      %2920 = vmatpush1.bf16.msra.mxu0 %v2904
      %2921 = vmatprep.subr.bf16.mxu0 0
      %2922 = vmatpush1.bf16.msra.mxu0 %v2905
      %2923 = vmatprep.subr.bf16.mxu0 0
      %2924 = vmatpush1.bf16.msra.mxu0 %v2906
      %2925 = vmatprep.subr.bf16.mxu0 0
      %2926 = vmatpush1.bf16.msra.mxu0 0
      %2927 = vmatprep.subr.bf16.mxu0 0
      %2928 = vmatpush1.bf16.msra.mxu0 0
      %2929 = vmatprep.subr.bf16.mxu0 0
      %2930 = vmatpush1.bf16.msra.mxu0 0
      %2931 = vmatprep.subr.bf16.mxu0 0
      %2932 = vmatpush1.bf16.msra.mxu0 0
      %2933 = vmatprep.subr.bf16.mxu0 0
      %2934 = vmatpush1.bf16.msra.mxu0 0
      %2935 = vmatprep.subr.bf16.mxu0 0
      %2936 = vmatpush1.bf16.msra.mxu0 0
      %2937 = vmatprep.subr.bf16.mxu0 0
      %2938 = vmatpush1.bf16.msra.mxu0 0
      %2939 = vmatprep.subr.bf16.mxu0 0
      %2940 = vmatpush1.bf16.msra.mxu0 0
      %2941 = vmatprep.subr.bf16.mxu0 0
      %2942 = vmatpush1.bf16.msra.mxu0 0
      %2943 = vmatprep.subr.bf16.mxu0 0
      %2944 = vmatpush1.bf16.msra.mxu0 0
      %2945 = vmatprep.subr.bf16.mxu0 0
      %2946 = vmatpush1.bf16.msra.mxu0 0
      %2947 = vmatprep.mubr.bf16.mxu0 0
      %2948 = vmatmul.mubr.bf16.gmra.mrb[0].mxu0 %v2913
      %v2949 = vpop.f32.mrb[0].mxu0
      %v2950 = vadd.f32 0.0, %v2949
      %v2951 = vpop.f32.mrb[0].mxu0
      %v2952 = vpop.f32.mrb[0].mxu0
      %v2953 = vadd.f32 0.0, %v2952
      %v2954 = vpop.f32.mrb[0].mxu0
      %2955 = vdwg.mxu0
      %v2956 = vadd.f32 %v2864, %v2950
      %v2957 = vadd.f32 %v2867, %v2953
      %v2958 = vld [vmem:[#allocation4 + $0x18] sm:$0xff]
      %s2959 = scalar_lea.vmem %s7, 120
      %v2960 = vld [vmem:[%s2959] sm:$0xf]
      %v2961 = vld [vmem:[%s2959 + $0x4] sm:$0xf]
      %v2962 = vld [vmem:[%s2959 + $0x8] sm:$0xf]
      %v2963 = vld [vmem:[%s2959 + $0xc] sm:$0xf]
      %v2964 = vld [vmem:[%s2959 + $0x10] sm:$0xf]
      %v2965 = vld [vmem:[%s2959 + $0x14] sm:$0xf]
      %v2966 = vld [vmem:[%s2959 + $0x18] sm:$0xf]
      %v2967 = vld [vmem:[%s2959 + $0x1c] sm:$0xf]
      %v2968 = vld [vmem:[%s2959 + $0x20] sm:$0xf]
      %v2969 = vld [vmem:[%s2959 + $0x24] sm:$0xf]
      %v2980 = vunpack.c.l.b16 %v2960
      %v2981 = vunpack.c.l.b16 %v2961
      %v2982 = vunpack.c.l.b16 %v2962
      %v2983 = vunpack.c.l.b16 %v2963
      %v2984 = vunpack.c.l.b16 %v2964
      %v2985 = vunpack.c.l.b16 %v2965
      %v2986 = vunpack.c.l.b16 %v2966
      %v2987 = vunpack.c.l.b16 %v2967
      %v2988 = vunpack.c.l.b16 %v2968
      %v2989 = vunpack.c.l.b16 %v2969
      %v2990 = vpack.c.b16 %v2981, %v2980
      %v2991 = vpack.c.b16 %v2983, %v2982
      %v2992 = vpack.c.b16 %v2985, %v2984
      %v2993 = vpack.c.b16 %v2987, %v2986
      %v2994 = vpack.c.b16 %v2989, %v2988
      %v3001 = vsel %vm2688, %v2958, 0
      %3003 = vmatprep.subr.bf16.mxu0 0
      %3004 = vmatpush1.bf16.msra.mxu0 %v2990
      %3005 = vmatprep.subr.bf16.mxu0 0
      %3006 = vmatpush1.bf16.msra.mxu0 %v2991
      %3007 = vmatprep.subr.bf16.mxu0 0
      %3008 = vmatpush1.bf16.msra.mxu0 %v2992
      %3009 = vmatprep.subr.bf16.mxu0 0
      %3010 = vmatpush1.bf16.msra.mxu0 %v2993
      %3011 = vmatprep.subr.bf16.mxu0 0
      %3012 = vmatpush1.bf16.msra.mxu0 %v2994
      %3013 = vmatprep.subr.bf16.mxu0 0
      %3014 = vmatpush1.bf16.msra.mxu0 0
      %3015 = vmatprep.subr.bf16.mxu0 0
      %3016 = vmatpush1.bf16.msra.mxu0 0
      %3017 = vmatprep.subr.bf16.mxu0 0
      %3018 = vmatpush1.bf16.msra.mxu0 0
      %3019 = vmatprep.subr.bf16.mxu0 0
      %3020 = vmatpush1.bf16.msra.mxu0 0
      %3021 = vmatprep.subr.bf16.mxu0 0
      %3022 = vmatpush1.bf16.msra.mxu0 0
      %3023 = vmatprep.subr.bf16.mxu0 0
      %3024 = vmatpush1.bf16.msra.mxu0 0
      %3025 = vmatprep.subr.bf16.mxu0 0
      %3026 = vmatpush1.bf16.msra.mxu0 0
      %3027 = vmatprep.subr.bf16.mxu0 0
      %3028 = vmatpush1.bf16.msra.mxu0 0
      %3029 = vmatprep.subr.bf16.mxu0 0
      %3030 = vmatpush1.bf16.msra.mxu0 0
      %3031 = vmatprep.subr.bf16.mxu0 0
      %3032 = vmatpush1.bf16.msra.mxu0 0
      %3033 = vmatprep.subr.bf16.mxu0 0
      %3034 = vmatpush1.bf16.msra.mxu0 0
      %3035 = vmatprep.mubr.bf16.mxu0 0
      %3036 = vmatmul.mubr.bf16.gmra.mrb[0].mxu0 %v3001
      %v3037 = vpop.f32.mrb[0].mxu0
      %v3038 = vadd.f32 0.0, %v3037
      %v3039 = vpop.f32.mrb[0].mxu0
      %v3040 = vpop.f32.mrb[0].mxu0
      %v3041 = vadd.f32 0.0, %v3040
      %v3042 = vpop.f32.mrb[0].mxu0
      %3043 = vdwg.mxu0
      %v3044 = vadd.f32 %v2956, %v3038
      %v3045 = vadd.f32 %v2957, %v3041
      %v3046 = vld [vmem:[#allocation4 + $0x20] sm:$0xff]
      %s3047 = scalar_lea.vmem %s7, 160
      %v3048 = vld [vmem:[%s3047] sm:$0xf]
      %v3049 = vld [vmem:[%s3047 + $0x4] sm:$0xf]
      %v3050 = vld [vmem:[%s3047 + $0x8] sm:$0xf]
      %v3051 = vld [vmem:[%s3047 + $0xc] sm:$0xf]
      %v3052 = vld [vmem:[%s3047 + $0x10] sm:$0xf]
      %v3053 = vld [vmem:[%s3047 + $0x14] sm:$0xf]
      %v3054 = vld [vmem:[%s3047 + $0x18] sm:$0xf]
      %v3055 = vld [vmem:[%s3047 + $0x1c] sm:$0xf]
      %v3056 = vld [vmem:[%s3047 + $0x20] sm:$0xf]
      %v3057 = vld [vmem:[%s3047 + $0x24] sm:$0xf]
      %v3068 = vunpack.c.l.b16 %v3048
      %v3069 = vunpack.c.l.b16 %v3049
      %v3070 = vunpack.c.l.b16 %v3050
      %v3071 = vunpack.c.l.b16 %v3051
      %v3072 = vunpack.c.l.b16 %v3052
      %v3073 = vunpack.c.l.b16 %v3053
      %v3074 = vunpack.c.l.b16 %v3054
      %v3075 = vunpack.c.l.b16 %v3055
      %v3076 = vunpack.c.l.b16 %v3056
      %v3077 = vunpack.c.l.b16 %v3057
      %v3078 = vpack.c.b16 %v3069, %v3068
      %v3079 = vpack.c.b16 %v3071, %v3070
      %v3080 = vpack.c.b16 %v3073, %v3072
      %v3081 = vpack.c.b16 %v3075, %v3074
      %v3082 = vpack.c.b16 %v3077, %v3076
      %v3089 = vsel %vm2688, %v3046, 0
      %3091 = vmatprep.subr.bf16.mxu0 0
      %3092 = vmatpush1.bf16.msra.mxu0 %v3078
      %3093 = vmatprep.subr.bf16.mxu0 0
      %3094 = vmatpush1.bf16.msra.mxu0 %v3079
      %3095 = vmatprep.subr.bf16.mxu0 0
      %3096 = vmatpush1.bf16.msra.mxu0 %v3080
      %3097 = vmatprep.subr.bf16.mxu0 0
      %3098 = vmatpush1.bf16.msra.mxu0 %v3081
      %3099 = vmatprep.subr.bf16.mxu0 0
      %3100 = vmatpush1.bf16.msra.mxu0 %v3082
      %3101 = vmatprep.subr.bf16.mxu0 0
      %3102 = vmatpush1.bf16.msra.mxu0 0
      %3103 = vmatprep.subr.bf16.mxu0 0
      %3104 = vmatpush1.bf16.msra.mxu0 0
      %3105 = vmatprep.subr.bf16.mxu0 0
      %3106 = vmatpush1.bf16.msra.mxu0 0
      %3107 = vmatprep.subr.bf16.mxu0 0
      %3108 = vmatpush1.bf16.msra.mxu0 0
      %3109 = vmatprep.subr.bf16.mxu0 0
      %3110 = vmatpush1.bf16.msra.mxu0 0
      %3111 = vmatprep.subr.bf16.mxu0 0
      %3112 = vmatpush1.bf16.msra.mxu0 0
      %3113 = vmatprep.subr.bf16.mxu0 0
      %3114 = vmatpush1.bf16.msra.mxu0 0
      %3115 = vmatprep.subr.bf16.mxu0 0
      %3116 = vmatpush1.bf16.msra.mxu0 0
      %3117 = vmatprep.subr.bf16.mxu0 0
      %3118 = vmatpush1.bf16.msra.mxu0 0
      %3119 = vmatprep.subr.bf16.mxu0 0
      %3120 = vmatpush1.bf16.msra.mxu0 0
      %3121 = vmatprep.subr.bf16.mxu0 0
      %3122 = vmatpush1.bf16.msra.mxu0 0
      %3123 = vmatprep.mubr.bf16.mxu0 0
      %3124 = vmatmul.mubr.bf16.gmra.mrb[0].mxu0 %v3089
      %v3125 = vpop.f32.mrb[0].mxu0
      %v3126 = vadd.f32 0.0, %v3125
      %v3127 = vpop.f32.mrb[0].mxu0
      %v3128 = vpop.f32.mrb[0].mxu0
      %v3129 = vadd.f32 0.0, %v3128
      %v3130 = vpop.f32.mrb[0].mxu0
      %3131 = vdwg.mxu0
      %v3132 = vadd.f32 %v3044, %v3126
      %v3133 = vadd.f32 %v3045, %v3129
      %v3134 = vld [vmem:[#allocation4 + $0x28] sm:$0xff]
      %s3135 = scalar_lea.vmem %s7, 200
      %v3136 = vld [vmem:[%s3135] sm:$0xf]
      %v3137 = vld [vmem:[%s3135 + $0x4] sm:$0xf]
      %v3138 = vld [vmem:[%s3135 + $0x8] sm:$0xf]
      %v3139 = vld [vmem:[%s3135 + $0xc] sm:$0xf]
      %v3140 = vld [vmem:[%s3135 + $0x10] sm:$0xf]
      %v3141 = vld [vmem:[%s3135 + $0x14] sm:$0xf]
      %v3142 = vld [vmem:[%s3135 + $0x18] sm:$0xf]
      %v3143 = vld [vmem:[%s3135 + $0x1c] sm:$0xf]
      %v3144 = vld [vmem:[%s3135 + $0x20] sm:$0xf]
      %v3145 = vld [vmem:[%s3135 + $0x24] sm:$0xf]
      %v3156 = vunpack.c.l.b16 %v3136
      %v3157 = vunpack.c.l.b16 %v3137
      %v3158 = vunpack.c.l.b16 %v3138
      %v3159 = vunpack.c.l.b16 %v3139
      %v3160 = vunpack.c.l.b16 %v3140
      %v3161 = vunpack.c.l.b16 %v3141
      %v3162 = vunpack.c.l.b16 %v3142
      %v3163 = vunpack.c.l.b16 %v3143
      %v3164 = vunpack.c.l.b16 %v3144
      %v3165 = vunpack.c.l.b16 %v3145
      %v3166 = vpack.c.b16 %v3157, %v3156
      %v3167 = vpack.c.b16 %v3159, %v3158
      %v3168 = vpack.c.b16 %v3161, %v3160
      %v3169 = vpack.c.b16 %v3163, %v3162
      %v3170 = vpack.c.b16 %v3165, %v3164
      %v3177 = vsel %vm2688, %v3134, 0
      %3179 = vmatprep.subr.bf16.mxu0 0
      %3180 = vmatpush1.bf16.msra.mxu0 %v3166
      %3181 = vmatprep.subr.bf16.mxu0 0
      %3182 = vmatpush1.bf16.msra.mxu0 %v3167
      %3183 = vmatprep.subr.bf16.mxu0 0
      %3184 = vmatpush1.bf16.msra.mxu0 %v3168
      %3185 = vmatprep.subr.bf16.mxu0 0
      %3186 = vmatpush1.bf16.msra.mxu0 %v3169
      %3187 = vmatprep.subr.bf16.mxu0 0
      %3188 = vmatpush1.bf16.msra.mxu0 %v3170
      %3189 = vmatprep.subr.bf16.mxu0 0
      %3190 = vmatpush1.bf16.msra.mxu0 0
      %3191 = vmatprep.subr.bf16.mxu0 0
      %3192 = vmatpush1.bf16.msra.mxu0 0
      %3193 = vmatprep.subr.bf16.mxu0 0
      %3194 = vmatpush1.bf16.msra.mxu0 0
      %3195 = vmatprep.subr.bf16.mxu0 0
      %3196 = vmatpush1.bf16.msra.mxu0 0
      %3197 = vmatprep.subr.bf16.mxu0 0
      %3198 = vmatpush1.bf16.msra.mxu0 0
      %3199 = vmatprep.subr.bf16.mxu0 0
      %3200 = vmatpush1.bf16.msra.mxu0 0
      %3201 = vmatprep.subr.bf16.mxu0 0
      %3202 = vmatpush1.bf16.msra.mxu0 0
      %3203 = vmatprep.subr.bf16.mxu0 0
      %3204 = vmatpush1.bf16.msra.mxu0 0
      %3205 = vmatprep.subr.bf16.mxu0 0
      %3206 = vmatpush1.bf16.msra.mxu0 0
      %3207 = vmatprep.subr.bf16.mxu0 0
      %3208 = vmatpush1.bf16.msra.mxu0 0
      %3209 = vmatprep.subr.bf16.mxu0 0
      %3210 = vmatpush1.bf16.msra.mxu0 0
      %3211 = vmatprep.mubr.bf16.mxu0 0
      %3212 = vmatmul.mubr.bf16.gmra.mrb[0].mxu0 %v3177
      %v3213 = vpop.f32.mrb[0].mxu0
      %v3214 = vadd.f32 0.0, %v3213
      %v3215 = vpop.f32.mrb[0].mxu0
      %v3216 = vpop.f32.mrb[0].mxu0
      %v3217 = vadd.f32 0.0, %v3216
      %v3218 = vpop.f32.mrb[0].mxu0
      %3219 = vdwg.mxu0
      %v3220 = vadd.f32 %v3132, %v3214
      %v3221 = vadd.f32 %v3133, %v3217
      %v3222 = vld [vmem:[#allocation4 + $0x30] sm:$0xff]
      %s3223 = scalar_lea.vmem %s7, 240
      %v3224 = vld [vmem:[%s3223] sm:$0xf]
      %v3225 = vld [vmem:[%s3223 + $0x4] sm:$0xf]
      %v3226 = vld [vmem:[%s3223 + $0x8] sm:$0xf]
      %v3227 = vld [vmem:[%s3223 + $0xc] sm:$0xf]
      %v3228 = vld [vmem:[%s3223 + $0x10] sm:$0xf]
      %v3229 = vld [vmem:[%s3223 + $0x14] sm:$0xf]
      %v3230 = vld [vmem:[%s3223 + $0x18] sm:$0xf]
      %v3231 = vld [vmem:[%s3223 + $0x1c] sm:$0xf]
      %v3232 = vld [vmem:[%s3223 + $0x20] sm:$0xf]
      %v3233 = vld [vmem:[%s3223 + $0x24] sm:$0xf]
      %v3244 = vunpack.c.l.b16 %v3224
      %v3245 = vunpack.c.l.b16 %v3225
      %v3246 = vunpack.c.l.b16 %v3226
      %v3247 = vunpack.c.l.b16 %v3227
      %v3248 = vunpack.c.l.b16 %v3228
      %v3249 = vunpack.c.l.b16 %v3229
      %v3250 = vunpack.c.l.b16 %v3230
      %v3251 = vunpack.c.l.b16 %v3231
      %v3252 = vunpack.c.l.b16 %v3232
      %v3253 = vunpack.c.l.b16 %v3233
      %v3254 = vpack.c.b16 %v3245, %v3244
      %v3255 = vpack.c.b16 %v3247, %v3246
      %v3256 = vpack.c.b16 %v3249, %v3248
      %v3257 = vpack.c.b16 %v3251, %v3250
      %v3258 = vpack.c.b16 %v3253, %v3252
      %v3265 = vsel %vm2688, %v3222, 0
      %3267 = vmatprep.subr.bf16.mxu0 0
      %3268 = vmatpush1.bf16.msra.mxu0 %v3254
      %3269 = vmatprep.subr.bf16.mxu0 0
      %3270 = vmatpush1.bf16.msra.mxu0 %v3255
      %3271 = vmatprep.subr.bf16.mxu0 0
      %3272 = vmatpush1.bf16.msra.mxu0 %v3256
      %3273 = vmatprep.subr.bf16.mxu0 0
      %3274 = vmatpush1.bf16.msra.mxu0 %v3257
      %3275 = vmatprep.subr.bf16.mxu0 0
      %3276 = vmatpush1.bf16.msra.mxu0 %v3258
      %3277 = vmatprep.subr.bf16.mxu0 0
      %3278 = vmatpush1.bf16.msra.mxu0 0
      %3279 = vmatprep.subr.bf16.mxu0 0
      %3280 = vmatpush1.bf16.msra.mxu0 0
      %3281 = vmatprep.subr.bf16.mxu0 0
      %3282 = vmatpush1.bf16.msra.mxu0 0
      %3283 = vmatprep.subr.bf16.mxu0 0
      %3284 = vmatpush1.bf16.msra.mxu0 0
      %3285 = vmatprep.subr.bf16.mxu0 0
      %3286 = vmatpush1.bf16.msra.mxu0 0
      %3287 = vmatprep.subr.bf16.mxu0 0
      %3288 = vmatpush1.bf16.msra.mxu0 0
      %3289 = vmatprep.subr.bf16.mxu0 0
      %3290 = vmatpush1.bf16.msra.mxu0 0
      %3291 = vmatprep.subr.bf16.mxu0 0
      %3292 = vmatpush1.bf16.msra.mxu0 0
      %3293 = vmatprep.subr.bf16.mxu0 0
      %3294 = vmatpush1.bf16.msra.mxu0 0
      %3295 = vmatprep.subr.bf16.mxu0 0
      %3296 = vmatpush1.bf16.msra.mxu0 0
      %3297 = vmatprep.subr.bf16.mxu0 0
      %3298 = vmatpush1.bf16.msra.mxu0 0
      %3299 = vmatprep.mubr.bf16.mxu0 0
      %3300 = vmatmul.mubr.bf16.gmra.mrb[0].mxu0 %v3265
      %v3301 = vpop.f32.mrb[0].mxu0
      %v3302 = vadd.f32 0.0, %v3301
      %v3303 = vpop.f32.mrb[0].mxu0
      %v3304 = vpop.f32.mrb[0].mxu0
      %v3305 = vadd.f32 0.0, %v3304
      %v3306 = vpop.f32.mrb[0].mxu0
      %3307 = vdwg.mxu0
      %v3308 = vadd.f32 %v3220, %v3302
      %v3309 = vadd.f32 %v3221, %v3305
      %v3310 = vld [vmem:[#allocation4 + $0x38] sm:$0xff]
      %s3311 = scalar_lea.vmem %s7, 280
      %v3312 = vld [vmem:[%s3311] sm:$0xf]
      %v3313 = vld [vmem:[%s3311 + $0x4] sm:$0xf]
      %v3314 = vld [vmem:[%s3311 + $0x8] sm:$0xf]
      %v3315 = vld [vmem:[%s3311 + $0xc] sm:$0xf]
      %v3316 = vld [vmem:[%s3311 + $0x10] sm:$0xf]
      %v3317 = vld [vmem:[%s3311 + $0x14] sm:$0xf]
      %v3318 = vld [vmem:[%s3311 + $0x18] sm:$0xf]
      %v3319 = vld [vmem:[%s3311 + $0x1c] sm:$0xf]
      %v3320 = vld [vmem:[%s3311 + $0x20] sm:$0xf]
      %v3321 = vld [vmem:[%s3311 + $0x24] sm:$0xf]
      %v3332 = vunpack.c.l.b16 %v3312
      %v3333 = vunpack.c.l.b16 %v3313
      %v3334 = vunpack.c.l.b16 %v3314
      %v3335 = vunpack.c.l.b16 %v3315
      %v3336 = vunpack.c.l.b16 %v3316
      %v3337 = vunpack.c.l.b16 %v3317
      %v3338 = vunpack.c.l.b16 %v3318
      %v3339 = vunpack.c.l.b16 %v3319
      %v3340 = vunpack.c.l.b16 %v3320
      %v3341 = vunpack.c.l.b16 %v3321
      %v3342 = vpack.c.b16 %v3333, %v3332
      %v3343 = vpack.c.b16 %v3335, %v3334
      %v3344 = vpack.c.b16 %v3337, %v3336
      %v3345 = vpack.c.b16 %v3339, %v3338
      %v3346 = vpack.c.b16 %v3341, %v3340
      %v3353 = vsel %vm2688, %v3310, 0
      %3355 = vmatprep.subr.bf16.mxu0 0
      %3356 = vmatpush1.bf16.msra.mxu0 %v3342
      %3357 = vmatprep.subr.bf16.mxu0 0
      %3358 = vmatpush1.bf16.msra.mxu0 %v3343
      %3359 = vmatprep.subr.bf16.mxu0 0
      %3360 = vmatpush1.bf16.msra.mxu0 %v3344
      %3361 = vmatprep.subr.bf16.mxu0 0
      %3362 = vmatpush1.bf16.msra.mxu0 %v3345
      %3363 = vmatprep.subr.bf16.mxu0 0
      %3364 = vmatpush1.bf16.msra.mxu0 %v3346
      %3365 = vmatprep.subr.bf16.mxu0 0
      %3366 = vmatpush1.bf16.msra.mxu0 0
      %3367 = vmatprep.subr.bf16.mxu0 0
      %3368 = vmatpush1.bf16.msra.mxu0 0
      %3369 = vmatprep.subr.bf16.mxu0 0
      %3370 = vmatpush1.bf16.msra.mxu0 0
      %3371 = vmatprep.subr.bf16.mxu0 0
      %3372 = vmatpush1.bf16.msra.mxu0 0
      %3373 = vmatprep.subr.bf16.mxu0 0
      %3374 = vmatpush1.bf16.msra.mxu0 0
      %3375 = vmatprep.subr.bf16.mxu0 0
      %3376 = vmatpush1.bf16.msra.mxu0 0
      %3377 = vmatprep.subr.bf16.mxu0 0
      %3378 = vmatpush1.bf16.msra.mxu0 0
      %3379 = vmatprep.subr.bf16.mxu0 0
      %3380 = vmatpush1.bf16.msra.mxu0 0
      %3381 = vmatprep.subr.bf16.mxu0 0
      %3382 = vmatpush1.bf16.msra.mxu0 0
      %3383 = vmatprep.subr.bf16.mxu0 0
      %3384 = vmatpush1.bf16.msra.mxu0 0
      %3385 = vmatprep.subr.bf16.mxu0 0
      %3386 = vmatpush1.bf16.msra.mxu0 0
      %3387 = vmatprep.mubr.bf16.mxu0 0
      %3388 = vmatmul.mubr.bf16.gmra.mrb[0].mxu0 %v3353
      %v3389 = vpop.f32.mrb[0].mxu0
      %v3390 = vadd.f32 0.0, %v3389
      %v3391 = vpop.f32.mrb[0].mxu0
      %v3392 = vpop.f32.mrb[0].mxu0
      %v3393 = vadd.f32 0.0, %v3392
      %v3394 = vpop.f32.mrb[0].mxu0
      %3395 = vdwg.mxu0
      %v3396 = vadd.f32 %v3308, %v3390
      %v3397 = vadd.f32 %v3309, %v3393
      %v3398 = vld [vmem:[#allocation4 + $0x40] sm:$0xff]
      %s3399 = scalar_lea.vmem %s7, 320
      %v3400 = vld [vmem:[%s3399] sm:$0xf]
      %v3401 = vld [vmem:[%s3399 + $0x4] sm:$0xf]
      %v3402 = vld [vmem:[%s3399 + $0x8] sm:$0xf]
      %v3403 = vld [vmem:[%s3399 + $0xc] sm:$0xf]
      %v3404 = vld [vmem:[%s3399 + $0x10] sm:$0xf]
      %v3405 = vld [vmem:[%s3399 + $0x14] sm:$0xf]
      %v3406 = vld [vmem:[%s3399 + $0x18] sm:$0xf]
      %v3407 = vld [vmem:[%s3399 + $0x1c] sm:$0xf]
      %v3408 = vld [vmem:[%s3399 + $0x20] sm:$0xf]
      %v3409 = vld [vmem:[%s3399 + $0x24] sm:$0xf]
      %v3420 = vunpack.c.l.b16 %v3400
      %v3421 = vunpack.c.l.b16 %v3401
      %v3422 = vunpack.c.l.b16 %v3402
      %v3423 = vunpack.c.l.b16 %v3403
      %v3424 = vunpack.c.l.b16 %v3404
      %v3425 = vunpack.c.l.b16 %v3405
      %v3426 = vunpack.c.l.b16 %v3406
      %v3427 = vunpack.c.l.b16 %v3407
      %v3428 = vunpack.c.l.b16 %v3408
      %v3429 = vunpack.c.l.b16 %v3409
      %v3430 = vpack.c.b16 %v3421, %v3420
      %v3431 = vpack.c.b16 %v3423, %v3422
      %v3432 = vpack.c.b16 %v3425, %v3424
      %v3433 = vpack.c.b16 %v3427, %v3426
      %v3434 = vpack.c.b16 %v3429, %v3428
      %v3441 = vsel %vm2688, %v3398, 0
      %3443 = vmatprep.subr.bf16.mxu0 0
      %3444 = vmatpush1.bf16.msra.mxu0 %v3430
      %3445 = vmatprep.subr.bf16.mxu0 0
      %3446 = vmatpush1.bf16.msra.mxu0 %v3431
      %3447 = vmatprep.subr.bf16.mxu0 0
      %3448 = vmatpush1.bf16.msra.mxu0 %v3432
      %3449 = vmatprep.subr.bf16.mxu0 0
      %3450 = vmatpush1.bf16.msra.mxu0 %v3433
      %3451 = vmatprep.subr.bf16.mxu0 0
      %3452 = vmatpush1.bf16.msra.mxu0 %v3434
      %3453 = vmatprep.subr.bf16.mxu0 0
      %3454 = vmatpush1.bf16.msra.mxu0 0
      %3455 = vmatprep.subr.bf16.mxu0 0
      %3456 = vmatpush1.bf16.msra.mxu0 0
      %3457 = vmatprep.subr.bf16.mxu0 0
      %3458 = vmatpush1.bf16.msra.mxu0 0
      %3459 = vmatprep.subr.bf16.mxu0 0
      %3460 = vmatpush1.bf16.msra.mxu0 0
      %3461 = vmatprep.subr.bf16.mxu0 0
      %3462 = vmatpush1.bf16.msra.mxu0 0
      %3463 = vmatprep.subr.bf16.mxu0 0
      %3464 = vmatpush1.bf16.msra.mxu0 0
      %3465 = vmatprep.subr.bf16.mxu0 0
      %3466 = vmatpush1.bf16.msra.mxu0 0
      %3467 = vmatprep.subr.bf16.mxu0 0
      %3468 = vmatpush1.bf16.msra.mxu0 0
      %3469 = vmatprep.subr.bf16.mxu0 0
      %3470 = vmatpush1.bf16.msra.mxu0 0
      %3471 = vmatprep.subr.bf16.mxu0 0
      %3472 = vmatpush1.bf16.msra.mxu0 0
      %3473 = vmatprep.subr.bf16.mxu0 0
      %3474 = vmatpush1.bf16.msra.mxu0 0
      %3475 = vmatprep.mubr.bf16.mxu0 0
      %3476 = vmatmul.mubr.bf16.gmra.mrb[0].mxu0 %v3441
      %v3477 = vpop.f32.mrb[0].mxu0
      %v3478 = vadd.f32 0.0, %v3477
      %v3479 = vpop.f32.mrb[0].mxu0
      %v3480 = vpop.f32.mrb[0].mxu0
      %v3481 = vadd.f32 0.0, %v3480
      %v3482 = vpop.f32.mrb[0].mxu0
      %3483 = vdwg.mxu0
      %v3484 = vadd.f32 %v3396, %v3478
      %v3485 = vadd.f32 %v3397, %v3481
      %v3486 = vld [vmem:[#allocation4 + $0x48] sm:$0xff]
      %s3487 = scalar_lea.vmem %s7, 360
      %v3488 = vld [vmem:[%s3487] sm:$0xf]
      %v3489 = vld [vmem:[%s3487 + $0x4] sm:$0xf]
      %v3490 = vld [vmem:[%s3487 + $0x8] sm:$0xf]
      %v3491 = vld [vmem:[%s3487 + $0xc] sm:$0xf]
      %v3492 = vld [vmem:[%s3487 + $0x10] sm:$0xf]
      %v3493 = vld [vmem:[%s3487 + $0x14] sm:$0xf]
      %v3494 = vld [vmem:[%s3487 + $0x18] sm:$0xf]
      %v3495 = vld [vmem:[%s3487 + $0x1c] sm:$0xf]
      %v3496 = vld [vmem:[%s3487 + $0x20] sm:$0xf]
      %v3497 = vld [vmem:[%s3487 + $0x24] sm:$0xf]
      %v3508 = vunpack.c.l.b16 %v3488
      %v3509 = vunpack.c.l.b16 %v3489
      %v3510 = vunpack.c.l.b16 %v3490
      %v3511 = vunpack.c.l.b16 %v3491
      %v3512 = vunpack.c.l.b16 %v3492
      %v3513 = vunpack.c.l.b16 %v3493
      %v3514 = vunpack.c.l.b16 %v3494
      %v3515 = vunpack.c.l.b16 %v3495
      %v3516 = vunpack.c.l.b16 %v3496
      %v3517 = vunpack.c.l.b16 %v3497
      %v3518 = vpack.c.b16 %v3509, %v3508
      %v3519 = vpack.c.b16 %v3511, %v3510
      %v3520 = vpack.c.b16 %v3513, %v3512
      %v3521 = vpack.c.b16 %v3515, %v3514
      %v3522 = vpack.c.b16 %v3517, %v3516
      %v3529 = vsel %vm2688, %v3486, 0
      %3531 = vmatprep.subr.bf16.mxu0 0
      %3532 = vmatpush1.bf16.msra.mxu0 %v3518
      %3533 = vmatprep.subr.bf16.mxu0 0
      %3534 = vmatpush1.bf16.msra.mxu0 %v3519
      %3535 = vmatprep.subr.bf16.mxu0 0
      %3536 = vmatpush1.bf16.msra.mxu0 %v3520
      %3537 = vmatprep.subr.bf16.mxu0 0
      %3538 = vmatpush1.bf16.msra.mxu0 %v3521
      %3539 = vmatprep.subr.bf16.mxu0 0
      %3540 = vmatpush1.bf16.msra.mxu0 %v3522
      %3541 = vmatprep.subr.bf16.mxu0 0
      %3542 = vmatpush1.bf16.msra.mxu0 0
      %3543 = vmatprep.subr.bf16.mxu0 0
      %3544 = vmatpush1.bf16.msra.mxu0 0
      %3545 = vmatprep.subr.bf16.mxu0 0
      %3546 = vmatpush1.bf16.msra.mxu0 0
      %3547 = vmatprep.subr.bf16.mxu0 0
      %3548 = vmatpush1.bf16.msra.mxu0 0
      %3549 = vmatprep.subr.bf16.mxu0 0
      %3550 = vmatpush1.bf16.msra.mxu0 0
      %3551 = vmatprep.subr.bf16.mxu0 0
      %3552 = vmatpush1.bf16.msra.mxu0 0
      %3553 = vmatprep.subr.bf16.mxu0 0
      %3554 = vmatpush1.bf16.msra.mxu0 0
      %3555 = vmatprep.subr.bf16.mxu0 0
      %3556 = vmatpush1.bf16.msra.mxu0 0
      %3557 = vmatprep.subr.bf16.mxu0 0
      %3558 = vmatpush1.bf16.msra.mxu0 0
      %3559 = vmatprep.subr.bf16.mxu0 0
      %3560 = vmatpush1.bf16.msra.mxu0 0
      %3561 = vmatprep.subr.bf16.mxu0 0
      %3562 = vmatpush1.bf16.msra.mxu0 0
      %3563 = vmatprep.mubr.bf16.mxu0 0
      %3564 = vmatmul.mubr.bf16.gmra.mrb[0].mxu0 %v3529
      %v3565 = vpop.f32.mrb[0].mxu0
      %v3566 = vadd.f32 0.0, %v3565
      %v3567 = vpop.f32.mrb[0].mxu0
      %v3568 = vpop.f32.mrb[0].mxu0
      %v3569 = vadd.f32 0.0, %v3568
      %v3570 = vpop.f32.mrb[0].mxu0
      %3571 = vdwg.mxu0
      %v3572 = vadd.f32 %v3484, %v3566
      %v3573 = vadd.f32 %v3485, %v3569
      %v3574 = vld [vmem:[%s8] sm:$0x1]
      %v3576 = vlaneseq
      %v3577 = vshrl.u32 %v3576, 7
      %v3578 = vsub.s32 0, %v3577
      %v3579 = vrot.slane %v3574, %v3578
      %v3581 = vadd.f32 %v3572, %v3579
      %v3582 = vadd.f32 %v3573, %v3579
      %vm3583 = vcmask 80896
      %3584 = vst.msk [vmem:[%s334] sm:$0xff] %vm3583, %v3581
      %3585 = vst.msk [vmem:[%s334 + $0x8] sm:$0xff] %vm3583, %v3582
      %s3586 = smul.u32 2, %s20
      %p3587 = scmp.lt.s32.totalorder %s3586, 3
      %s3588 = scalar_select %p3587, %s3586, 3
      %s3589 = smul.addr %s3588, 8
      %s3590 = scalar_lea.vmem %s9, %s3589
      // Predicated region
      $region57: #{tpu_custom_call.1} parent=55 // pred_check
        %p3591 = pneg %p232
      $region58: #{tpu_custom_call.1} parent=55 // pred_check_branch
        %3593 = sbr.rel (%p3591) target = $region60
      $region59: #{tpu_custom_call.1} parent=55 // pred_region
        %s3594 = smul.u32 2, %s20
      $region60: #{tpu_custom_call.1} parent=55 // pred_fallthru
        _
    $region56: #{tpu_custom_call.1} parent=5 // pred_fallthru
      _
    %p3595 = scmp.le.s32.totalorder 2, %s15
    // Predicated region
    $region61: #{tpu_custom_call.1} parent=5 // pred_check
      %p3596 = pneg %p3595
    $region62: #{tpu_custom_call.1} parent=5 // pred_check_branch
      %3598 = sbr.rel (%p3596) target = $region64
    $region63: #{tpu_custom_call.1} parent=5 // pred_region
      %s3599 = ssub.s32 %s15, 2
      // Predicated region
      $region65: #{tpu_custom_call.1} parent=63 // pred_check
        %p3600 = pneg %p238
      $region66: #{tpu_custom_call.1} parent=63 // pred_check_branch
        %3602 = sbr.rel (%p3600) target = $region68
      $region67: #{tpu_custom_call.1} parent=63 // pred_region
        %s3603 = smul.u32 2, %s21
        %p3604 = scmp.lt.s32.totalorder %s3603, 3
        %s3605 = scalar_select %p3604, %s3603, 3
        %s3606 = smul.addr %s3605, 8
        %s3607 = scalar_lea.vmem %s9, %s3606
      $region68: #{tpu_custom_call.1} parent=63 // pred_fallthru
        _
    $region64: #{tpu_custom_call.1} parent=5 // pred_fallthru
      _
  $region6: #{tpu_custom_call.1} parent=0 // loop_footer
    %s19 = sadd.s32 1, %s15
  $region7: #{tpu_custom_call.1} parent=0 // loop_footer_branch
    %14 = sbr.rel target = $region3
  $region8: #{tpu_custom_call.1} parent=0 // loop_exit
    _

</llo_original>
